<compile_context>
chip_gen: v5e
topology: v5e:2x2
jax: 0.10.0
libtpu: 0.0.40
codegen_flags: <defaults>
</compile_context>

<pallas_src>
import functools
import math

import jax
import jax.numpy as jnp
from jax.experimental import pallas as pl
from jax.experimental.pallas import tpu as pltpu


NUM_LAYERS = 3            # matches neural_net(num_layers=3)
HIDDEN = 512              # hardcoded in the PyTorch module
N_DIM = 100 + 1           # n_dim = 101 (kept unpadded; Mosaic pads K)
N_OUTPUT = 1
N_OUT_PAD = 128           # lane-dense output slab; column 0 is the real output
TILE_B_MAX = 1024         # max rows per grid step (~10 MiB VMEM footprint)
BATCH = 256               # example "pathbatch" for the run below


def _elementwise_dtype():
    """bf16 bias/tanh path on chips with bf16 VPU/EUP (v6e/v7x), else f32."""
    try:
        kind = jax.devices()[0].device_kind.lower()
    except Exception:
        return jnp.float32
    if any(tag in kind for tag in ("v6", "v7", "6e", "7x")):
        return jnp.bfloat16
    return jnp.float32


def mlp_kernel(x_ref, w1_ref, b1_ref, w2_ref, b2_ref, w3_ref, b3_ref,
               wo_ref, bo_ref, out_ref, *, elem_dtype):
    """One batch tile of the fused MLP forward.

    x_ref:   (TILE_B, N_DIM)  f32
    w*_ref:  bf16 weights (in, out); b*_ref: f32 biases (1, out)
    out_ref: (TILE_B, N_OUT_PAD) f32 — only column 0 is meaningful.
    """
    h = x_ref[...].astype(jnp.bfloat16)            # bf16 into the MXU
    for w_ref, b_ref in ((w1_ref, b1_ref), (w2_ref, b2_ref), (w3_ref, b3_ref)):
        # bf16 x bf16 -> f32 accumulation on the MXU.
        z = jnp.dot(h, w_ref[...], preferred_element_type=jnp.float32)
        # Bias-add + tanh in the chip-appropriate element-wise dtype.
        zb = z.astype(elem_dtype) + b_ref[...].astype(elem_dtype)
        h = jnp.tanh(zb).astype(jnp.bfloat16)
    out = jnp.dot(h, wo_ref[...], preferred_element_type=jnp.float32)
    out_ref[...] = out + bo_ref[...]


def _replicated(i):
    # Same block for every grid step -> parameter stays resident in VMEM.
    return (0, 0)


def _choose_tiling(batch):
    """Pick (tile_b, num_tiles): big tiles, but >= 2 grid steps when possible
    (so v7x can shard the 'parallel' batch axis across both TensorCores)."""
    target = pl.cdiv(batch, 2)
    tile_b = min(TILE_B_MAX, max(8, target))
    tile_b = ((tile_b + 7) // 8) * 8              # sublane-aligned
    num_tiles = pl.cdiv(batch, tile_b)
    return tile_b, num_tiles


def neural_net_forward(x, kernel_params, *, elem_dtype=None):
    """x: (B, N_DIM) f32; kernel_params: packed params (see pack_params)."""
    batch, n_dim = x.shape
    assert n_dim == N_DIM, (n_dim, N_DIM)
    if elem_dtype is None:
        elem_dtype = _elementwise_dtype()

    tile_b, num_tiles = _choose_tiling(batch)
    b_pad = tile_b * num_tiles
    if b_pad != batch:
        # Batch-tile padding only; feature dim stays at its true size (101).
        x = jnp.pad(x, ((0, b_pad - batch), (0, 0)))

    param_specs = [pl.BlockSpec(p.shape, _replicated) for p in kernel_params]

    flops = 2 * b_pad * (N_DIM * HIDDEN
                         + (NUM_LAYERS - 1) * HIDDEN * HIDDEN
                         + HIDDEN * N_OUT_PAD)
    transcendentals = NUM_LAYERS * b_pad * HIDDEN
    bytes_accessed = (
        b_pad * N_DIM * 4
        + b_pad * N_OUT_PAD * 4
        + sum(int(p.size) * p.dtype.itemsize for p in kernel_params)
    )

    kernel = functools.partial(mlp_kernel, elem_dtype=elem_dtype)

    out_pad = pl.pallas_call(
        kernel,
        out_shape=jax.ShapeDtypeStruct((b_pad, N_OUT_PAD), jnp.float32),
        grid=(num_tiles,),
        in_specs=[pl.BlockSpec((tile_b, N_DIM), lambda i: (i, 0))]
                 + param_specs,
        out_specs=pl.BlockSpec((tile_b, N_OUT_PAD), lambda i: (i, 0)),
        compiler_params=pltpu.CompilerParams(
            dimension_semantics=("parallel",),
            vmem_limit_bytes=32 * 1024 * 1024),
        cost_estimate=pl.CostEstimate(
            flops=flops,
            transcendentals=transcendentals,
            bytes_accessed=bytes_accessed),
    )(x, *kernel_params)

    # Drop batch padding and the lane padding of the output layer.
    return out_pad[:batch, :N_OUTPUT]


def init_params(key):
    """f32 parameters at the module's true shapes (weights as (in, out)).

    fc weights: xavier-uniform (as in the PyTorch __init__); biases and the
    output layer: PyTorch's default Linear init (uniform(+-1/sqrt(fan_in))).
    """
    params = []
    dims = [N_DIM] + [HIDDEN] * NUM_LAYERS
    for i in range(NUM_LAYERS):
        fan_in, fan_out = dims[i], dims[i + 1]
        key, kw, kb = jax.random.split(key, 3)
        limit_w = math.sqrt(6.0 / (fan_in + fan_out))      # xavier_uniform
        w = jax.random.uniform(kw, (fan_in, fan_out), jnp.float32,
                               -limit_w, limit_w)
        limit_b = 1.0 / math.sqrt(fan_in)
        b = jax.random.uniform(kb, (1, fan_out), jnp.float32,
                               -limit_b, limit_b)
        params += [w, b]
    key, kw, kb = jax.random.split(key, 3)
    limit = 1.0 / math.sqrt(HIDDEN)
    w_out = jax.random.uniform(kw, (HIDDEN, N_OUTPUT), jnp.float32,
                               -limit, limit)
    b_out = jax.random.uniform(kb, (1, N_OUTPUT), jnp.float32, -limit, limit)
    params += [w_out, b_out]
    return params


def pack_params(params_f32):
    """Cast weights to bf16 and lane-pad only the output layer (1 -> 128 cols).

    w1 stays at its true (101, 512) shape (no host-side K pad); biases stay
    f32 (tiny; cast to the element-wise dtype inside the kernel).
    """
    w1, b1, w2, b2, w3, b3, wo, bo = params_f32

    wop = jnp.zeros((HIDDEN, N_OUT_PAD), jnp.float32).at[:, :N_OUTPUT].set(wo)
    bop = jnp.zeros((1, N_OUT_PAD), jnp.float32).at[:, :N_OUTPUT].set(bo)

    return (
        w1.astype(jnp.bfloat16), b1,
        w2.astype(jnp.bfloat16), b2,
        w3.astype(jnp.bfloat16), b3,
        wop.astype(jnp.bfloat16), bop,
    )


def reference_forward(x, params_f32):
    """Plain-JAX f32 reference of the original module's forward."""
    h = x
    for i in range(NUM_LAYERS):
        h = jnp.tanh(h @ params_f32[2 * i] + params_f32[2 * i + 1])
    return h @ params_f32[2 * NUM_LAYERS] + params_f32[2 * NUM_LAYERS + 1]


if __name__ == "__main__":
    key = jax.random.PRNGKey(0)
    key, kx = jax.random.split(key)
    x = jax.random.normal(kx, (BATCH, N_DIM), jnp.float32)

    params_f32 = init_params(key)
    kernel_params = pack_params(params_f32)

    out = neural_net_forward(x, kernel_params)
    out = jax.block_until_ready(out)

    ref = reference_forward(x, params_f32)
    assert out.shape == (BATCH, N_OUTPUT), out.shape
    # bf16 weights (and bf16 tanh on v6e/v7x) vs f32 reference -> loose tol.
    assert jnp.allclose(out, ref, atol=5e-2, rtol=1e-2), "mismatch vs reference"

    print("KERNEL_OK")
</pallas_src>

<mosaic_0001>
module attributes {stable_mosaic.version = 11 : i64} {
  func.func @mlp_kernel(%arg0: i32, %arg1: memref<128x101xf32, #tpu.memory_space<vmem>>, %arg2: memref<101x512xbf16, #tpu.memory_space<vmem>>, %arg3: memref<1x512xf32, #tpu.memory_space<vmem>>, %arg4: memref<512x512xbf16, #tpu.memory_space<vmem>>, %arg5: memref<1x512xf32, #tpu.memory_space<vmem>>, %arg6: memref<512x512xbf16, #tpu.memory_space<vmem>>, %arg7: memref<1x512xf32, #tpu.memory_space<vmem>>, %arg8: memref<512x128xbf16, #tpu.memory_space<vmem>>, %arg9: memref<1x128xf32, #tpu.memory_space<vmem>>, %arg10: memref<128x128xf32, #tpu.memory_space<vmem>>) attributes {dimension_semantics = [#tpu.dimension_semantics<parallel>], iteration_bounds = array<i64: 2>, scalar_prefetch = 0 : i64, scratch_operands = 0 : i64, tpu.core_type = #tpu.core_type<tc>, window_params = [{transform_indices = @transform_0, window_bounds = array<i64: 128, 101>}, {pipeline_mode = #tpu.pipeline_mode<synchronous>, transform_indices = @transform_1, window_bounds = array<i64: 101, 512>}, {pipeline_mode = #tpu.pipeline_mode<synchronous>, transform_indices = @transform_2, window_bounds = array<i64: 1, 512>}, {pipeline_mode = #tpu.pipeline_mode<synchronous>, transform_indices = @transform_3, window_bounds = array<i64: 512, 512>}, {pipeline_mode = #tpu.pipeline_mode<synchronous>, transform_indices = @transform_4, window_bounds = array<i64: 1, 512>}, {pipeline_mode = #tpu.pipeline_mode<synchronous>, transform_indices = @transform_5, window_bounds = array<i64: 512, 512>}, {pipeline_mode = #tpu.pipeline_mode<synchronous>, transform_indices = @transform_6, window_bounds = array<i64: 1, 512>}, {pipeline_mode = #tpu.pipeline_mode<synchronous>, transform_indices = @transform_7, window_bounds = array<i64: 512, 128>}, {pipeline_mode = #tpu.pipeline_mode<synchronous>, transform_indices = @transform_8, window_bounds = array<i64: 1, 128>}, {transform_indices = @transform_9, window_bounds = array<i64: 128, 128>}]} {
    %c0 = arith.constant 0 : index
    %c0_0 = arith.constant 0 : index
    %0 = vector.load %arg1[%c0, %c0_0] : memref<128x101xf32, #tpu.memory_space<vmem>>, vector<128x101xf32>
    %1 = arith.truncf %0 : vector<128x101xf32> to vector<128x101xbf16>
    %c0_1 = arith.constant 0 : index
    %c0_2 = arith.constant 0 : index
    %2 = vector.load %arg2[%c0_1, %c0_2] : memref<101x512xbf16, #tpu.memory_space<vmem>>, vector<101x512xbf16>
    %cst = arith.constant dense<0.000000e+00> : vector<128x512xf32>
    %3 = tpu.matmul %1, %2, %cst {dimension_numbers = #tpu.dot_dimension_numbers<[1], [0], [0], [1], [0, 0, 1, 1], [], []>} : vector<128x101xbf16>, vector<101x512xbf16>, vector<128x512xf32> -> vector<128x512xf32>
    %c0_3 = arith.constant 0 : index
    %c0_4 = arith.constant 0 : index
    %4 = vector.load %arg3[%c0_3, %c0_4] : memref<1x512xf32, #tpu.memory_space<vmem>>, vector<1x512xf32>
    %5 = vector.broadcast %4 : vector<1x512xf32> to vector<128x512xf32>
    %6 = arith.addf %3, %5 : vector<128x512xf32>
    %7 = math.tanh %6 : vector<128x512xf32>
    %8 = arith.truncf %7 : vector<128x512xf32> to vector<128x512xbf16>
    %c0_5 = arith.constant 0 : index
    %c0_6 = arith.constant 0 : index
    %9 = vector.load %arg4[%c0_5, %c0_6] : memref<512x512xbf16, #tpu.memory_space<vmem>>, vector<512x512xbf16>
    %cst_7 = arith.constant dense<0.000000e+00> : vector<128x512xf32>
    %10 = tpu.matmul %8, %9, %cst_7 {dimension_numbers = #tpu.dot_dimension_numbers<[1], [0], [0], [1], [0, 0, 1, 1], [], []>} : vector<128x512xbf16>, vector<512x512xbf16>, vector<128x512xf32> -> vector<128x512xf32>
    %c0_8 = arith.constant 0 : index
    %c0_9 = arith.constant 0 : index
    %11 = vector.load %arg5[%c0_8, %c0_9] : memref<1x512xf32, #tpu.memory_space<vmem>>, vector<1x512xf32>
    %12 = vector.broadcast %11 : vector<1x512xf32> to vector<128x512xf32>
    %13 = arith.addf %10, %12 : vector<128x512xf32>
    %14 = math.tanh %13 : vector<128x512xf32>
    %15 = arith.truncf %14 : vector<128x512xf32> to vector<128x512xbf16>
    %c0_10 = arith.constant 0 : index
    %c0_11 = arith.constant 0 : index
    %16 = vector.load %arg6[%c0_10, %c0_11] : memref<512x512xbf16, #tpu.memory_space<vmem>>, vector<512x512xbf16>
    %cst_12 = arith.constant dense<0.000000e+00> : vector<128x512xf32>
    %17 = tpu.matmul %15, %16, %cst_12 {dimension_numbers = #tpu.dot_dimension_numbers<[1], [0], [0], [1], [0, 0, 1, 1], [], []>} : vector<128x512xbf16>, vector<512x512xbf16>, vector<128x512xf32> -> vector<128x512xf32>
    %c0_13 = arith.constant 0 : index
    %c0_14 = arith.constant 0 : index
    %18 = vector.load %arg7[%c0_13, %c0_14] : memref<1x512xf32, #tpu.memory_space<vmem>>, vector<1x512xf32>
    %19 = vector.broadcast %18 : vector<1x512xf32> to vector<128x512xf32>
    %20 = arith.addf %17, %19 : vector<128x512xf32>
    %21 = math.tanh %20 : vector<128x512xf32>
    %22 = arith.truncf %21 : vector<128x512xf32> to vector<128x512xbf16>
    %c0_15 = arith.constant 0 : index
    %c0_16 = arith.constant 0 : index
    %23 = vector.load %arg8[%c0_15, %c0_16] : memref<512x128xbf16, #tpu.memory_space<vmem>>, vector<512x128xbf16>
    %cst_17 = arith.constant dense<0.000000e+00> : vector<128x128xf32>
    %24 = tpu.matmul %22, %23, %cst_17 {dimension_numbers = #tpu.dot_dimension_numbers<[1], [0], [0], [1], [0, 0, 1, 1], [], []>} : vector<128x512xbf16>, vector<512x128xbf16>, vector<128x128xf32> -> vector<128x128xf32>
    %c0_18 = arith.constant 0 : index
    %c0_19 = arith.constant 0 : index
    %25 = vector.load %arg9[%c0_18, %c0_19] : memref<1x128xf32, #tpu.memory_space<vmem>>, vector<1x128xf32>
    %26 = vector.broadcast %25 : vector<1x128xf32> to vector<128x128xf32>
    %27 = arith.addf %24, %26 : vector<128x128xf32>
    %c0_20 = arith.constant 0 : index
    %c0_21 = arith.constant 0 : index
    %28 = vector.load %arg10[%c0_20, %c0_21] : memref<128x128xf32, #tpu.memory_space<vmem>>, vector<128x128xf32>
    tpu.vector_store %arg10[%c0_20, %c0_21], %27 {strides = array<i32>} : memref<128x128xf32, #tpu.memory_space<vmem>>, vector<128x128xf32>,
    return
  }
  func.func @transform_0(%arg0: i32) -> (i32, i32) {
    %c0_i32 = arith.constant 0 : i32
    %c0_i32_0 = arith.constant 0 : i32
    return %arg0, %c0_i32 : i32, i32
  }
  func.func @transform_1(%arg0: i32) -> (i32, i32) {
    %c0_i32 = arith.constant 0 : i32
    %c0_i32_0 = arith.constant 0 : i32
    %c0_i32_1 = arith.constant 0 : i32
    return %c0_i32, %c0_i32_0 : i32, i32
  }
  func.func @transform_2(%arg0: i32) -> (i32, i32) {
    %c0_i32 = arith.constant 0 : i32
    %c0_i32_0 = arith.constant 0 : i32
    %c0_i32_1 = arith.constant 0 : i32
    return %c0_i32, %c0_i32_0 : i32, i32
  }
  func.func @transform_3(%arg0: i32) -> (i32, i32) {
    %c0_i32 = arith.constant 0 : i32
    %c0_i32_0 = arith.constant 0 : i32
    %c0_i32_1 = arith.constant 0 : i32
    return %c0_i32, %c0_i32_0 : i32, i32
  }
  func.func @transform_4(%arg0: i32) -> (i32, i32) {
    %c0_i32 = arith.constant 0 : i32
    %c0_i32_0 = arith.constant 0 : i32
    %c0_i32_1 = arith.constant 0 : i32
    return %c0_i32, %c0_i32_0 : i32, i32
  }
  func.func @transform_5(%arg0: i32) -> (i32, i32) {
    %c0_i32 = arith.constant 0 : i32
    %c0_i32_0 = arith.constant 0 : i32
    %c0_i32_1 = arith.constant 0 : i32
    return %c0_i32, %c0_i32_0 : i32, i32
  }
  func.func @transform_6(%arg0: i32) -> (i32, i32) {
    %c0_i32 = arith.constant 0 : i32
    %c0_i32_0 = arith.constant 0 : i32
    %c0_i32_1 = arith.constant 0 : i32
    return %c0_i32, %c0_i32_0 : i32, i32
  }
  func.func @transform_7(%arg0: i32) -> (i32, i32) {
    %c0_i32 = arith.constant 0 : i32
    %c0_i32_0 = arith.constant 0 : i32
    %c0_i32_1 = arith.constant 0 : i32
    return %c0_i32, %c0_i32_0 : i32, i32
  }
  func.func @transform_8(%arg0: i32) -> (i32, i32) {
    %c0_i32 = arith.constant 0 : i32
    %c0_i32_0 = arith.constant 0 : i32
    %c0_i32_1 = arith.constant 0 : i32
    return %c0_i32, %c0_i32_0 : i32, i32
  }
  func.func @transform_9(%arg0: i32) -> (i32, i32) {
    %c0_i32 = arith.constant 0 : i32
    %c0_i32_0 = arith.constant 0 : i32
    return %arg0, %c0_i32 : i32, i32
  }
}

</mosaic_0001>

<llo_original>
// kernel: tpu_custom_call.1
$region0: #{tpu_custom_call.1}
  #allocation0 [shape = 'u32[]', space=smem, size = 0x4, offset = 0x4, fixed_abs, tag = 'smem constant byte address 0x4 - core index']
  #allocation1 [shape = 'u32[72,128]{1,0:T(1,128)}', space=vmem, size = 0x9000, scoped, tag = 'internal scratch']
  %s0 = inlined_call_operand.vmem [shape: f32[256,101], index: 0, kind: input, shape index: {}]
  %s1 = inlined_call_operand.vmem [shape: bf16[101,512], index: 1, kind: input, shape index: {}]
  %s2 = inlined_call_operand.vmem [shape: f32[1,512], index: 2, kind: input, shape index: {}]
  %s3 = inlined_call_operand.hbm [shape: bf16[512,512], index: 3, kind: input, shape index: {}]
  %s4 = inlined_call_operand.hbm [shape: f32[1,512], index: 4, kind: input, shape index: {}]
  %s5 = inlined_call_operand.hbm [shape: bf16[512,512], index: 5, kind: input, shape index: {}]
  %s6 = inlined_call_operand.hbm [shape: f32[1,512], index: 6, kind: input, shape index: {}]
  %s7 = inlined_call_operand.vmem [shape: bf16[512,128], index: 7, kind: input, shape index: {}]
  %s8 = inlined_call_operand.vmem [shape: f32[1,128], index: 8, kind: input, shape index: {}]
  %s9 = inlined_call_operand.hbm [shape: f32[256,128], index: 9, kind: output, shape index: {}]
  %s10 = sld [smem:[#allocation0]]
  $region85: #{tpu_custom_call.1} parent=0
    _
  %s12 = ssub.s32 1, %s10
  %s13 = scalar_select 0, %s12, %s10
  $region1: #{tpu_custom_call.1} parent=0
    #allocation2 [shape = 'u8[524288]{0}', space=vmem, size = 0x80000, scoped, tag = 'input window, operand 3, single buffered']
    #allocation3 [shape = 's32[2]{0}', space=sflag, size = 0x8, scoped, tag = 'scoped memory for tpu_custom_call.1']
    #allocation4 [shape = 's32[2]{0}', space=sflag, size = 0x8, scoped, tag = 'scoped memory for tpu_custom_call.1']
    #allocation5 [shape = 'u8[2048]{0}', space=vmem, size = 0x800, scoped, tag = 'input window, operand 4, single buffered']
    #allocation6 [shape = 's32[1]{0}', space=sflag, size = 0x4, scoped, tag = 'scoped memory for tpu_custom_call.1']
    #allocation7 [shape = 'u8[524288]{0}', space=vmem, size = 0x80000, scoped, tag = 'input window, operand 5, single buffered']
    #allocation8 [shape = 'u8[2048]{0}', space=vmem, size = 0x800, scoped, tag = 'input window, operand 6, single buffered']
    #allocation9 [shape = 's32[1]{0}', space=sflag, size = 0x4, scoped, tag = 'scoped memory for tpu_custom_call.1']
    #allocation10 [shape = 'u8[131072]{0}', space=vmem, size = 0x20000, scoped, tag = 'output window, operand 0']
    %14 = vsyncpa [#allocation3], 0
    %15 = vsyncpa [#allocation6], 0
    %16 = vsyncpa [#allocation9], 0
    %17 = vsyncpa [#allocation4], 0
    %s18 = scalar_lea.sflag [#allocation4], 1
    %19 = vsyncpa %s18, 0
    loop: start=0, step=1, limit=4
    $region2: #{tpu_custom_call.1} parent=1 // loop_pre_header
      _
    $region3: #{tpu_custom_call.1} parent=1 // loop_header
      %s21 = sphi 0, %s25
      %p22 = scmp.ge.s32.totalorder %s21, 4
      %s31 = sphi 0, %s33
      %s34 = sphi 0, %s31
      %s35 = sphi 0, %s34
      %s51 = sphi 0, %s35
      %s55 = sphi 0, %s55
      %s57 = sphi 0, %s55
      %s58 = sphi 0, %s57
      %s72 = sphi 0, %s58
      %s76 = sphi 0, %s76
      %s78 = sphi 0, %s76
      %s79 = sphi 0, %s78
      %s93 = sphi 0, %s79
      %s97 = sphi 0, %s97
      %s99 = sphi 0, %s97
      %s100 = sphi 0, %s99
      %s114 = sphi 0, %s100
      %s118 = sphi 0, %s118
      %s120 = sphi 0, %s118
      %s121 = sphi 0, %s120
      %s135 = sphi 0, %s121
      %s139 = sphi 0, %s139
      %s141 = sphi 0, %s139
      %s142 = sphi 0, %s141
      %s156 = sphi 0, %s142
      %s160 = sphi 0, %s160
      %s162 = sphi 0, %s160
      %s163 = sphi 0, %s162
      %s177 = sphi 0, %s163
      %s181 = sphi 0, %s181
      %s183 = sphi 0, %s181
      %s184 = sphi 0, %s183
      %s198 = sphi 0, %s184
      %s202 = sphi 0, %s202
      %s204 = sphi 0, %s202
      %s205 = sphi 0, %s204
      %s219 = sphi 0, %s205
      %s225 = sphi 0, %s227
      %s228 = sphi 0, %s225
      %s229 = sphi 0, %s228
      %s245 = sphi 0, %s229
    $region4: #{tpu_custom_call.1} parent=1 // loop_header_branch
      %24 = sbr.rel (%p22) target = $region8
    $region5: #{tpu_custom_call.1} parent=1 // loop_body
      %s26 = ssub.s32 %s21, 1
      %s27 = ssub.s32 %s21, 2
      %s28 = sadd.s32 %s21, 1
      %s29 = ssub.s32 %s21, %s28
      %p30 = scmp.eq.s32.totalorder %s29, 0
      %s32 = sadd.s32 %s31, 1
      %s33 = scalar_select %p30, %s31, %s32
      %p36 = pneg %p30
      %p37 = scmp.eq.s32.totalorder %s21, 1
      %p38 = por %p36, %p37
      %p39 = scmp.ne.s32.totalorder %s31, %s34
      %p40 = scmp.eq.s32.totalorder %s21, 0
      %p41 = por %p39, %p40
      %p42 = scmp.ne.s32.totalorder %s31, %s34
      %p43 = scmp.eq.s32.totalorder %s26, 1
      %p44 = por %p42, %p43
      %p45 = scmp.ne.s32.totalorder %s34, %s35
      %p46 = scmp.eq.s32.totalorder %s26, 0
      %p47 = por %p45, %p46
      %p48 = scmp.ne.s32.totalorder %s34, %s35
      %p49 = scmp.eq.s32.totalorder %s27, 1
      %p50 = por %p48, %p49
      %p52 = scmp.ne.s32.totalorder %s35, %s51
      %p53 = scmp.eq.s32.totalorder %s27, 0
      %p54 = por %p52, %p53
      %s56 = sadd.s32 %s55, 1
      %p59 = scmp.eq.s32.totalorder %s21, 1
      %p60 = scmp.ne.s32.totalorder %s55, %s57
      %p61 = scmp.eq.s32.totalorder %s21, 0
      %p62 = por %p60, %p61
      %p63 = scmp.ne.s32.totalorder %s55, %s57
      %p64 = scmp.eq.s32.totalorder %s26, 1
      %p65 = por %p63, %p64
      %p66 = scmp.ne.s32.totalorder %s57, %s58
      %p67 = scmp.eq.s32.totalorder %s26, 0
      %p68 = por %p66, %p67
      %p69 = scmp.ne.s32.totalorder %s57, %s58
      %p70 = scmp.eq.s32.totalorder %s27, 1
      %p71 = por %p69, %p70
      %p73 = scmp.ne.s32.totalorder %s58, %s72
      %p74 = scmp.eq.s32.totalorder %s27, 0
      %p75 = por %p73, %p74
      %s77 = sadd.s32 %s76, 1
      %p80 = scmp.eq.s32.totalorder %s21, 1
      %p81 = scmp.ne.s32.totalorder %s76, %s78
      %p82 = scmp.eq.s32.totalorder %s21, 0
      %p83 = por %p81, %p82
      %p84 = scmp.ne.s32.totalorder %s76, %s78
      %p85 = scmp.eq.s32.totalorder %s26, 1
      %p86 = por %p84, %p85
      %p87 = scmp.ne.s32.totalorder %s78, %s79
      %p88 = scmp.eq.s32.totalorder %s26, 0
      %p89 = por %p87, %p88
      %p90 = scmp.ne.s32.totalorder %s78, %s79
      %p91 = scmp.eq.s32.totalorder %s27, 1
      %p92 = por %p90, %p91
      %p94 = scmp.ne.s32.totalorder %s79, %s93
      %p95 = scmp.eq.s32.totalorder %s27, 0
      %p96 = por %p94, %p95
      %s98 = sadd.s32 %s97, 1
      %p101 = scmp.eq.s32.totalorder %s21, 1
      %p102 = scmp.ne.s32.totalorder %s97, %s99
      %p103 = scmp.eq.s32.totalorder %s21, 0
      %p104 = por %p102, %p103
      %p105 = scmp.ne.s32.totalorder %s97, %s99
      %p106 = scmp.eq.s32.totalorder %s26, 1
      %p107 = por %p105, %p106
      %p108 = scmp.ne.s32.totalorder %s99, %s100
      %p109 = scmp.eq.s32.totalorder %s26, 0
      %p110 = por %p108, %p109
      %p111 = scmp.ne.s32.totalorder %s99, %s100
      %p112 = scmp.eq.s32.totalorder %s27, 1
      %p113 = por %p111, %p112
      %p115 = scmp.ne.s32.totalorder %s100, %s114
      %p116 = scmp.eq.s32.totalorder %s27, 0
      %p117 = por %p115, %p116
      %s119 = sadd.s32 %s118, 1
      %p122 = scmp.eq.s32.totalorder %s21, 1
      %p123 = scmp.ne.s32.totalorder %s118, %s120
      %p124 = scmp.eq.s32.totalorder %s21, 0
      %p125 = por %p123, %p124
      %p126 = scmp.ne.s32.totalorder %s118, %s120
      %p127 = scmp.eq.s32.totalorder %s26, 1
      %p128 = por %p126, %p127
      %p129 = scmp.ne.s32.totalorder %s120, %s121
      %p130 = scmp.eq.s32.totalorder %s26, 0
      %p131 = por %p129, %p130
      %p132 = scmp.ne.s32.totalorder %s120, %s121
      %p133 = scmp.eq.s32.totalorder %s27, 1
      %p134 = por %p132, %p133
      %p136 = scmp.ne.s32.totalorder %s121, %s135
      %p137 = scmp.eq.s32.totalorder %s27, 0
      %p138 = por %p136, %p137
      %s140 = sadd.s32 %s139, 1
      %p143 = scmp.eq.s32.totalorder %s21, 1
      %p144 = scmp.ne.s32.totalorder %s139, %s141
      %p145 = scmp.eq.s32.totalorder %s21, 0
      %p146 = por %p144, %p145
      %p147 = scmp.ne.s32.totalorder %s139, %s141
      %p148 = scmp.eq.s32.totalorder %s26, 1
      %p149 = por %p147, %p148
      %p150 = scmp.ne.s32.totalorder %s141, %s142
      %p151 = scmp.eq.s32.totalorder %s26, 0
      %p152 = por %p150, %p151
      %p153 = scmp.ne.s32.totalorder %s141, %s142
      %p154 = scmp.eq.s32.totalorder %s27, 1
      %p155 = por %p153, %p154
      %p157 = scmp.ne.s32.totalorder %s142, %s156
      %p158 = scmp.eq.s32.totalorder %s27, 0
      %p159 = por %p157, %p158
      %s161 = sadd.s32 %s160, 1
      %p164 = scmp.eq.s32.totalorder %s21, 1
      %p165 = scmp.ne.s32.totalorder %s160, %s162
      %p166 = scmp.eq.s32.totalorder %s21, 0
      %p167 = por %p165, %p166
      %p168 = scmp.ne.s32.totalorder %s160, %s162
      %p169 = scmp.eq.s32.totalorder %s26, 1
      %p170 = por %p168, %p169
      %p171 = scmp.ne.s32.totalorder %s162, %s163
      %p172 = scmp.eq.s32.totalorder %s26, 0
      %p173 = por %p171, %p172
      %p174 = scmp.ne.s32.totalorder %s162, %s163
      %p175 = scmp.eq.s32.totalorder %s27, 1
      %p176 = por %p174, %p175
      %p178 = scmp.ne.s32.totalorder %s163, %s177
      %p179 = scmp.eq.s32.totalorder %s27, 0
      %p180 = por %p178, %p179
      %s182 = sadd.s32 %s181, 1
      %p185 = scmp.eq.s32.totalorder %s21, 1
      %p186 = scmp.ne.s32.totalorder %s181, %s183
      %p187 = scmp.eq.s32.totalorder %s21, 0
      %p188 = por %p186, %p187
      %p189 = scmp.ne.s32.totalorder %s181, %s183
      %p190 = scmp.eq.s32.totalorder %s26, 1
      %p191 = por %p189, %p190
      %p192 = scmp.ne.s32.totalorder %s183, %s184
      %p193 = scmp.eq.s32.totalorder %s26, 0
      %p194 = por %p192, %p193
      %p195 = scmp.ne.s32.totalorder %s183, %s184
      %p196 = scmp.eq.s32.totalorder %s27, 1
      %p197 = por %p195, %p196
      %p199 = scmp.ne.s32.totalorder %s184, %s198
      %p200 = scmp.eq.s32.totalorder %s27, 0
      %p201 = por %p199, %p200
      %s203 = sadd.s32 %s202, 1
      %p206 = scmp.eq.s32.totalorder %s21, 1
      %p207 = scmp.ne.s32.totalorder %s202, %s204
      %p208 = scmp.eq.s32.totalorder %s21, 0
      %p209 = por %p207, %p208
      %p210 = scmp.ne.s32.totalorder %s202, %s204
      %p211 = scmp.eq.s32.totalorder %s26, 1
      %p212 = por %p210, %p211
      %p213 = scmp.ne.s32.totalorder %s204, %s205
      %p214 = scmp.eq.s32.totalorder %s26, 0
      %p215 = por %p213, %p214
      %p216 = scmp.ne.s32.totalorder %s204, %s205
      %p217 = scmp.eq.s32.totalorder %s27, 1
      %p218 = por %p216, %p217
      %p220 = scmp.ne.s32.totalorder %s205, %s219
      %p221 = scmp.eq.s32.totalorder %s27, 0
      %p222 = por %p220, %p221
      %s223 = ssub.s32 %s21, %s28
      %p224 = scmp.eq.s32.totalorder %s223, 0
      %s226 = sadd.s32 %s225, 1
      %s227 = scalar_select %p224, %s225, %s226
      %p230 = pneg %p224
      %p231 = scmp.eq.s32.totalorder %s21, 1
      %p232 = por %p230, %p231
      %p233 = scmp.ne.s32.totalorder %s225, %s228
      %p234 = scmp.eq.s32.totalorder %s21, 0
      %p235 = por %p233, %p234
      %p236 = scmp.ne.s32.totalorder %s225, %s228
      %p237 = scmp.eq.s32.totalorder %s26, 1
      %p238 = por %p236, %p237
      %p239 = scmp.ne.s32.totalorder %s228, %s229
      %p240 = scmp.eq.s32.totalorder %s26, 0
      %p241 = por %p239, %p240
      %p242 = scmp.ne.s32.totalorder %s228, %s229
      %p243 = scmp.eq.s32.totalorder %s27, 1
      %p244 = por %p242, %p243
      %p246 = scmp.ne.s32.totalorder %s229, %s245
      %p247 = scmp.eq.s32.totalorder %s27, 0
      %p248 = por %p246, %p247
      %p249 = scmp.le.s32.totalorder 1, %s21
      %p250 = scmp.lt.s32.totalorder %s21, 3
      %p251 = pnand %p249, %p250
      %p252 = pneg %p251
      // Predicated region
      $region9: #{tpu_custom_call.1} parent=5 // pred_check
        _
      $region10: #{tpu_custom_call.1} parent=5 // pred_check_branch
        %254 = sbr.rel (%p251) target = $region12
      $region11: #{tpu_custom_call.1} parent=5 // pred_region
        %s255 = ssub.s32 %s21, 1
        // Predicated region
        $region13: #{tpu_custom_call.1} parent=11 // pred_check
          %p256 = pneg %p68
        $region14: #{tpu_custom_call.1} parent=11 // pred_check_branch
          %258 = sbr.rel (%p256) target = $region16
        $region15: #{tpu_custom_call.1} parent=11 // pred_region
          _
        $region16: #{tpu_custom_call.1} parent=11 // pred_fallthru
          _
        // Predicated region
        $region17: #{tpu_custom_call.1} parent=11 // pred_check
          %p259 = pneg %p89
        $region18: #{tpu_custom_call.1} parent=11 // pred_check_branch
          %261 = sbr.rel (%p259) target = $region20
        $region19: #{tpu_custom_call.1} parent=11 // pred_region
          _
        $region20: #{tpu_custom_call.1} parent=11 // pred_fallthru
          _
        // Predicated region
        $region21: #{tpu_custom_call.1} parent=11 // pred_check
          %p262 = pneg %p110
        $region22: #{tpu_custom_call.1} parent=11 // pred_check_branch
          %264 = sbr.rel (%p262) target = $region24
        $region23: #{tpu_custom_call.1} parent=11 // pred_region
          %266 = vsyncadd [#allocation3], 0
          %s267 = sshll.u32 %s3, 4
          %s268 = int_to_ptr.hbm [resolvable:$true] %s267
          %s269 = sshll.u32 [#allocation2], 4
          %s270 = int_to_ptr.vmem [resolvable:$true] %s269
          %275 = dma.hbm_to_vmem [thread:$0]  %s268, 16384, %s270, [#allocation3], 256, 256, 16
        $region24: #{tpu_custom_call.1} parent=11 // pred_fallthru
          _
        // Predicated region
        $region25: #{tpu_custom_call.1} parent=11 // pred_check
          %p276 = pneg %p131
        $region26: #{tpu_custom_call.1} parent=11 // pred_check_branch
          %278 = sbr.rel (%p276) target = $region28
        $region27: #{tpu_custom_call.1} parent=11 // pred_region
          %280 = vsyncadd [#allocation6], 0
          %s282 = sshll.u32 %s4, 4
          %s283 = int_to_ptr.hbm [resolvable:$true] %s282
          %s284 = sshll.u32 [#allocation5], 4
          %s285 = int_to_ptr.vmem [resolvable:$true] %s284
          %287 = dma.hbm_to_vmem [thread:$0]  %s283, 64, %s285, [#allocation6]
        $region28: #{tpu_custom_call.1} parent=11 // pred_fallthru
          _
        // Predicated region
        $region29: #{tpu_custom_call.1} parent=11 // pred_check
          %p288 = pneg %p152
        $region30: #{tpu_custom_call.1} parent=11 // pred_check_branch
          %290 = sbr.rel (%p288) target = $region32
        $region31: #{tpu_custom_call.1} parent=11 // pred_region
          %292 = vsyncadd [#allocation6], 0
          %s293 = sshll.u32 %s5, 4
          %s294 = int_to_ptr.hbm [resolvable:$true] %s293
          %s295 = sshll.u32 [#allocation7], 4
          %s296 = int_to_ptr.vmem [resolvable:$true] %s295
          %301 = dma.hbm_to_vmem [thread:$0]  %s294, 16384, %s296, [#allocation6], 256, 256, 16
        $region32: #{tpu_custom_call.1} parent=11 // pred_fallthru
          _
        // Predicated region
        $region33: #{tpu_custom_call.1} parent=11 // pred_check
          %p302 = pneg %p173
        $region34: #{tpu_custom_call.1} parent=11 // pred_check_branch
          %304 = sbr.rel (%p302) target = $region36
        $region35: #{tpu_custom_call.1} parent=11 // pred_region
          %306 = vsyncadd [#allocation9], 0
          %s308 = sshll.u32 %s6, 4
          %s309 = int_to_ptr.hbm [resolvable:$true] %s308
          %s310 = sshll.u32 [#allocation8], 4
          %s311 = int_to_ptr.vmem [resolvable:$true] %s310
          %313 = dma.hbm_to_vmem [thread:$0]  %s309, 64, %s311, [#allocation9]
        $region36: #{tpu_custom_call.1} parent=11 // pred_fallthru
          _
        // Predicated region
        $region37: #{tpu_custom_call.1} parent=11 // pred_check
          %p314 = pneg %p194
        $region38: #{tpu_custom_call.1} parent=11 // pred_check_branch
          %316 = sbr.rel (%p314) target = $region40
        $region39: #{tpu_custom_call.1} parent=11 // pred_region
          _
        $region40: #{tpu_custom_call.1} parent=11 // pred_fallthru
          _
        // Predicated region
        $region41: #{tpu_custom_call.1} parent=11 // pred_check
          %p317 = pneg %p215
        $region42: #{tpu_custom_call.1} parent=11 // pred_check_branch
          %319 = sbr.rel (%p317) target = $region44
        $region43: #{tpu_custom_call.1} parent=11 // pred_region
          _
        $region44: #{tpu_custom_call.1} parent=11 // pred_fallthru
          _
      $region12: #{tpu_custom_call.1} parent=5 // pred_fallthru
        _
      %p320 = scmp.lt.s32.totalorder %s21, 2
      // Predicated region
      $region45: #{tpu_custom_call.1} parent=5 // pred_check
        %p321 = pneg %p320
      $region46: #{tpu_custom_call.1} parent=5 // pred_check_branch
        %323 = sbr.rel (%p321) target = $region48
      $region47: #{tpu_custom_call.1} parent=5 // pred_region
        // Predicated region
        $region49: #{tpu_custom_call.1} parent=47 // pred_check
          %p324 = pneg %p41
        $region50: #{tpu_custom_call.1} parent=47 // pred_check_branch
          %326 = sbr.rel (%p324) target = $region52
        $region51: #{tpu_custom_call.1} parent=47 // pred_region
          %s327 = smul.u32 16, %s21
          %p328 = scmp.lt.s32.totalorder %s327, 31
          %s329 = scalar_select %p328, %s327, 31
          %s330 = smul.addr %s329, 8
          %s331 = scalar_lea.vmem %s0, %s330
          %s332 = smul.u32 16, %s21
        $region52: #{tpu_custom_call.1} parent=47 // pred_fallthru
          _
      $region48: #{tpu_custom_call.1} parent=5 // pred_fallthru
        _
      %p333 = scmp.le.s32.totalorder 1, %s21
      %p334 = scmp.lt.s32.totalorder %s21, 3
      %p335 = pnand %p333, %p334
      %p336 = pneg %p335
      // Predicated region
      $region53: #{tpu_custom_call.1} parent=5 // pred_check
        _
      $region54: #{tpu_custom_call.1} parent=5 // pred_check_branch
        %338 = sbr.rel (%p335) target = $region56
      $region55: #{tpu_custom_call.1} parent=5 // pred_region
        %s339 = ssub.s32 %s21, 1
        // Predicated region
        $region57: #{tpu_custom_call.1} parent=55 // pred_check
          %p340 = pneg %p110
        $region58: #{tpu_custom_call.1} parent=55 // pred_check_branch
          %342 = sbr.rel (%p340) target = $region60
        $region59: #{tpu_custom_call.1} parent=55 // pred_region
          %344 = dma.done [#allocation3], 16384
        $region60: #{tpu_custom_call.1} parent=55 // pred_fallthru
          _
        // Predicated region
        $region61: #{tpu_custom_call.1} parent=55 // pred_check
          %p345 = pneg %p131
        $region62: #{tpu_custom_call.1} parent=55 // pred_check_branch
          %347 = sbr.rel (%p345) target = $region64
        $region63: #{tpu_custom_call.1} parent=55 // pred_region
          %349 = dma.done [#allocation6], 64
        $region64: #{tpu_custom_call.1} parent=55 // pred_fallthru
          _
        // Predicated region
        $region65: #{tpu_custom_call.1} parent=55 // pred_check
          %p350 = pneg %p152
        $region66: #{tpu_custom_call.1} parent=55 // pred_check_branch
          %352 = sbr.rel (%p350) target = $region68
        $region67: #{tpu_custom_call.1} parent=55 // pred_region
          %354 = dma.done [#allocation6], 16384
        $region68: #{tpu_custom_call.1} parent=55 // pred_fallthru
          _
        // Predicated region
        $region69: #{tpu_custom_call.1} parent=55 // pred_check
          %p355 = pneg %p173
        $region70: #{tpu_custom_call.1} parent=55 // pred_check_branch
          %357 = sbr.rel (%p355) target = $region72
        $region71: #{tpu_custom_call.1} parent=55 // pred_region
          %359 = dma.done [#allocation9], 64
        $region72: #{tpu_custom_call.1} parent=55 // pred_fallthru
          _
        %s360 = smul.u32 16, %s26
        %p361 = scmp.lt.s32.totalorder %s360, 31
        %s362 = scalar_select %p361, %s360, 31
        %s363 = smul.addr %s362, 8
        %s364 = scalar_lea.vmem %s0, %s363
        %p365 = pneg %p47
        %p366 = pneg %p44
        %p367 = pneg %p68
        %p368 = pneg %p65
        %p369 = pneg %p89
        %p370 = pneg %p86
        %p371 = pneg %p110
        %p372 = pneg %p107
        %p373 = pneg %p131
        %p374 = pneg %p128
        %p375 = pneg %p152
        %p376 = pneg %p149
        %p377 = pneg %p173
        %p378 = pneg %p170
        %p379 = pneg %p194
        %p380 = pneg %p191
        %p381 = pneg %p215
        %p382 = pneg %p212
        %p383 = pneg %p241
        %p384 = pneg %p238
        %s385 = sand.u32 %s228, 1
        %s386 = scalar_lea.sflag [#allocation4], %s385
        %s387 = sand.u32 %s228, 1
        %s388 = smul.addr %s387, 128
        %s389 = scalar_lea.vmem [#allocation10], %s388
        %s390 = smul.u32 16, %s26
        %p391 = scmp.lt.s32.totalorder %s390, 31
        %s392 = scalar_select %p391, %s390, 31
        %s393 = smul.addr %s392, 8
        %s394 = scalar_lea.vmem %s0, %s393
        %s395 = smul.u32 16, %s26
        %s396 = smul.u32 16, %s26
        %v398 = vld [vmem:[%s394] sm:$0xff]
        %v399 = vld [vmem:[%s394 + $0x8] sm:$0xff]
        %v400 = vld [vmem:[%s394 + $0x10] sm:$0xff]
        %v401 = vld [vmem:[%s394 + $0x18] sm:$0xff]
        %v402 = vld [vmem:[%s394 + $0x20] sm:$0xff]
        %v403 = vld [vmem:[%s394 + $0x28] sm:$0xff]
        %v404 = vld [vmem:[%s394 + $0x30] sm:$0xff]
        %v405 = vld [vmem:[%s394 + $0x38] sm:$0xff]
        %v406 = vld [vmem:[%s394 + $0x40] sm:$0xff]
        %v407 = vld [vmem:[%s394 + $0x48] sm:$0xff]
        %v408 = vld [vmem:[%s394 + $0x50] sm:$0xff]
        %v409 = vld [vmem:[%s394 + $0x58] sm:$0xff]
        %v410 = vld [vmem:[%s394 + $0x60] sm:$0xff]
        %v411 = vld [vmem:[%s394 + $0x68] sm:$0xff]
        %v412 = vld [vmem:[%s394 + $0x70] sm:$0xff]
        %v413 = vld [vmem:[%s394 + $0x78] sm:$0xff]
        %v414 = vpack.c.bf16 %v399, %v398
        %v415 = vpack.c.bf16 %v401, %v400
        %v416 = vpack.c.bf16 %v403, %v402
        %v417 = vpack.c.bf16 %v405, %v404
        %v418 = vpack.c.bf16 %v407, %v406
        %v419 = vpack.c.bf16 %v409, %v408
        %v420 = vpack.c.bf16 %v411, %v410
        %v421 = vpack.c.bf16 %v413, %v412
        %v422 = vld [vmem:[%s1] sm:$0xff]
        %v423 = vld [vmem:[%s1 + $0x8] sm:$0xff]
        %v424 = vld [vmem:[%s1 + $0x10] sm:$0xff]
        %v425 = vld [vmem:[%s1 + $0x18] sm:$0xff]
        %v426 = vld [vmem:[%s1 + $0x20] sm:$0xff]
        %v427 = vld [vmem:[%s1 + $0x28] sm:$0xff]
        %v428 = vld [vmem:[%s1 + $0x30] sm:$0xff]
        %v429 = vld [vmem:[%s1 + $0x38] sm:$0xff]
        %v430 = vld [vmem:[%s1 + $0x40] sm:$0xff]
        %v431 = vld [vmem:[%s1 + $0x48] sm:$0xff]
        %v432 = vld [vmem:[%s1 + $0x50] sm:$0xff]
        %v433 = vld [vmem:[%s1 + $0x58] sm:$0xff]
        %v434 = vld [vmem:[%s1 + $0x60] sm:$0xff]
        %v435 = vld [vmem:[%s1 + $0x68] sm:$0xff]
        %v436 = vld [vmem:[%s1 + $0x70] sm:$0xff]
        %v437 = vld [vmem:[%s1 + $0x78] sm:$0xff]
        %v438 = vld [vmem:[%s1 + $0x80] sm:$0xff]
        %v439 = vld [vmem:[%s1 + $0x88] sm:$0xff]
        %v440 = vld [vmem:[%s1 + $0x90] sm:$0xff]
        %v441 = vld [vmem:[%s1 + $0x98] sm:$0xff]
        %v442 = vld [vmem:[%s1 + $0xa0] sm:$0xff]
        %v443 = vld [vmem:[%s1 + $0xa8] sm:$0xff]
        %v444 = vld [vmem:[%s1 + $0xb0] sm:$0xff]
        %v445 = vld [vmem:[%s1 + $0xb8] sm:$0xff]
        %v446 = vld [vmem:[%s1 + $0xc0] sm:$0x77]
        %v447 = vld [vmem:[%s1 + $0xc8] sm:$0x77]
        %v448 = vld [vmem:[%s2] sm:$0xf]
        %v450 = vperm.slane %v448, 0
        %v451 = vperm.slane %v448, 1
        %v452 = vperm.slane %v448, 2
        %v453 = vperm.slane %v448, 3
        %v484 = vunpack.c.l.b16 %v422
        %v485 = vunpack.c.h.b16 %v422
        %v486 = vunpack.c.l.b16 %v423
        %v487 = vunpack.c.h.b16 %v423
        %v488 = vunpack.c.l.b16 %v424
        %v489 = vunpack.c.h.b16 %v424
        %v490 = vunpack.c.l.b16 %v425
        %v491 = vunpack.c.h.b16 %v425
        %v492 = vunpack.c.l.b16 %v426
        %v493 = vunpack.c.h.b16 %v426
        %v494 = vunpack.c.l.b16 %v427
        %v495 = vunpack.c.h.b16 %v427
        %v496 = vunpack.c.l.b16 %v428
        %v497 = vunpack.c.h.b16 %v428
        %v498 = vunpack.c.l.b16 %v429
        %v499 = vunpack.c.h.b16 %v429
        %v500 = vunpack.c.l.b16 %v430
        %v501 = vunpack.c.h.b16 %v430
        %v502 = vunpack.c.l.b16 %v431
        %v503 = vunpack.c.h.b16 %v431
        %v504 = vunpack.c.l.b16 %v432
        %v505 = vunpack.c.h.b16 %v432
        %v506 = vunpack.c.l.b16 %v433
        %v507 = vunpack.c.h.b16 %v433
        %v508 = vunpack.c.l.b16 %v434
        %v509 = vunpack.c.h.b16 %v434
        %v510 = vunpack.c.l.b16 %v435
        %v511 = vunpack.c.h.b16 %v435
        %v512 = vunpack.c.l.b16 %v436
        %v513 = vunpack.c.h.b16 %v436
        %v514 = vunpack.c.l.b16 %v437
        %v515 = vunpack.c.h.b16 %v437
        %v516 = vunpack.c.l.b16 %v438
        %v517 = vunpack.c.h.b16 %v438
        %v518 = vunpack.c.l.b16 %v439
        %v519 = vunpack.c.h.b16 %v439
        %v520 = vunpack.c.l.b16 %v440
        %v521 = vunpack.c.h.b16 %v440
        %v522 = vunpack.c.l.b16 %v441
        %v523 = vunpack.c.h.b16 %v441
        %v524 = vunpack.c.l.b16 %v442
        %v525 = vunpack.c.h.b16 %v442
        %v526 = vunpack.c.l.b16 %v443
        %v527 = vunpack.c.h.b16 %v443
        %v528 = vunpack.c.l.b16 %v444
        %v529 = vunpack.c.h.b16 %v444
        %v530 = vunpack.c.l.b16 %v445
        %v531 = vunpack.c.h.b16 %v445
        %v532 = vunpack.c.l.b16 %v446
        %v533 = vunpack.c.h.b16 %v446
        %v534 = vunpack.c.l.b16 %v447
        %v535 = vunpack.c.h.b16 %v447
        %v536 = vpack.c.b16 %v488, %v484
        %v537 = vpack.c.b16 %v489, %v485
        %v538 = vpack.c.b16 %v490, %v486
        %v539 = vpack.c.b16 %v491, %v487
        %v540 = vpack.c.b16 %v496, %v492
        %v541 = vpack.c.b16 %v497, %v493
        %v542 = vpack.c.b16 %v498, %v494
        %v543 = vpack.c.b16 %v499, %v495
        %v544 = vpack.c.b16 %v504, %v500
        %v545 = vpack.c.b16 %v505, %v501
        %v546 = vpack.c.b16 %v506, %v502
        %v547 = vpack.c.b16 %v507, %v503
        %v548 = vpack.c.b16 %v512, %v508
        %v549 = vpack.c.b16 %v513, %v509
        %v550 = vpack.c.b16 %v514, %v510
        %v551 = vpack.c.b16 %v515, %v511
        %v552 = vpack.c.b16 %v520, %v516
        %v553 = vpack.c.b16 %v521, %v517
        %v554 = vpack.c.b16 %v522, %v518
        %v555 = vpack.c.b16 %v523, %v519
        %v556 = vpack.c.b16 %v528, %v524
        %v557 = vpack.c.b16 %v529, %v525
        %v558 = vpack.c.b16 %v530, %v526
        %v559 = vpack.c.b16 %v531, %v527
        %v560 = vpack.c.b16 %v532, %v532
        %v561 = vpack.c.b16 %v533, %v533
        %v562 = vpack.c.b16 %v534, %v534
        %v563 = vpack.c.b16 %v535, %v535
        %vm588 = vcmask 826368
        %v590 = vsel %vm588, %v414, 0
        %v593 = vsel %vm588, %v415, 0
        %v596 = vsel %vm588, %v416, 0
        %v599 = vsel %vm588, %v417, 0
        %v602 = vsel %vm588, %v418, 0
        %v605 = vsel %vm588, %v419, 0
        %v608 = vsel %vm588, %v420, 0
        %v611 = vsel %vm588, %v421, 0
        %vm613 = vcmask 1041408
        %vm614 = vcmask 1042432
        %v615 = vsel %vm613, 4294967295, 65535
        %v616 = vsel %vm614, %v615, 0
        %v618 = vand.u32 %v560, %v616
        %v621 = vand.u32 %v561, %v616
        %v624 = vand.u32 %v562, %v616
        %v627 = vand.u32 %v563, %v616
        %629 = vmatpush.bf16.msra.mxu0 0
        %630 = vmatpush.bf16.msra.mxu0 %v618
        %631 = vmatpush.bf16.msra.mxu0 %v556
        %632 = vmatpush.bf16.msra.mxu0 %v552
        %633 = vmatpush.bf16.msra.mxu0 %v548
        %634 = vmatpush.bf16.msra.mxu0 %v544
        %635 = vmatpush.bf16.msra.mxu0 %v540
        %636 = vmatpush.bf16.msra.mxu0 %v536
        %637 = vmatmul.bf16.gmra.mxu0 %v590
        %v638 = vpop.f32.mrf.mxu0
        %v639 = vadd.f32 %v450, %v638
        %v640 = vpop.f32.mrf.mxu0
        %v641 = vadd.f32 %v450, %v640
        %642 = vmatmul.bf16.gmra.mxu0 %v593
        %v643 = vpop.f32.mrf.mxu0
        %v644 = vadd.f32 %v450, %v643
        %v645 = vpop.f32.mrf.mxu0
        %v646 = vadd.f32 %v450, %v645
        %647 = vmatmul.bf16.gmra.mxu0 %v596
        %v648 = vpop.f32.mrf.mxu0
        %v649 = vadd.f32 %v450, %v648
        %v650 = vpop.f32.mrf.mxu0
        %v651 = vadd.f32 %v450, %v650
        %652 = vmatmul.bf16.gmra.mxu0 %v599
        %v653 = vpop.f32.mrf.mxu0
        %v654 = vadd.f32 %v450, %v653
        %v655 = vpop.f32.mrf.mxu0
        %v656 = vadd.f32 %v450, %v655
        %657 = vmatmul.bf16.gmra.mxu0 %v602
        %v658 = vpop.f32.mrf.mxu0
        %v659 = vadd.f32 %v450, %v658
        %v660 = vpop.f32.mrf.mxu0
        %v661 = vadd.f32 %v450, %v660
        %662 = vmatmul.bf16.gmra.mxu0 %v605
        %v663 = vpop.f32.mrf.mxu0
        %v664 = vadd.f32 %v450, %v663
        %v665 = vpop.f32.mrf.mxu0
        %v666 = vadd.f32 %v450, %v665
        %667 = vmatmul.bf16.gmra.mxu0 %v608
        %v668 = vpop.f32.mrf.mxu0
        %v669 = vadd.f32 %v450, %v668
        %v670 = vpop.f32.mrf.mxu0
        %v671 = vadd.f32 %v450, %v670
        %672 = vmatmul.bf16.gmra.mxu0 %v611
        %v673 = vpop.f32.mrf.mxu0
        %v674 = vadd.f32 %v450, %v673
        %v675 = vpop.f32.mrf.mxu0
        %v676 = vadd.f32 %v450, %v675
        %677 = vdwg.mxu0
        %678 = vmatpush.bf16.msra.mxu0 0
        %679 = vmatpush.bf16.msra.mxu0 %v621
        %680 = vmatpush.bf16.msra.mxu0 %v557
        %681 = vmatpush.bf16.msra.mxu0 %v553
        %682 = vmatpush.bf16.msra.mxu0 %v549
        %683 = vmatpush.bf16.msra.mxu0 %v545
        %684 = vmatpush.bf16.msra.mxu0 %v541
        %685 = vmatpush.bf16.msra.mxu0 %v537
        %686 = vmatmul.bf16.gmra.mxu0 %v590
        %v687 = vpop.f32.mrf.mxu0
        %v688 = vadd.f32 %v451, %v687
        %v689 = vpop.f32.mrf.mxu0
        %v690 = vadd.f32 %v451, %v689
        %691 = vmatmul.bf16.gmra.mxu0 %v593
        %v692 = vpop.f32.mrf.mxu0
        %v693 = vadd.f32 %v451, %v692
        %v694 = vpop.f32.mrf.mxu0
        %v695 = vadd.f32 %v451, %v694
        %696 = vmatmul.bf16.gmra.mxu0 %v596
        %v697 = vpop.f32.mrf.mxu0
        %v698 = vadd.f32 %v451, %v697
        %v699 = vpop.f32.mrf.mxu0
        %v700 = vadd.f32 %v451, %v699
        %701 = vmatmul.bf16.gmra.mxu0 %v599
        %v702 = vpop.f32.mrf.mxu0
        %v703 = vadd.f32 %v451, %v702
        %v704 = vpop.f32.mrf.mxu0
        %v705 = vadd.f32 %v451, %v704
        %706 = vmatmul.bf16.gmra.mxu0 %v602
        %v707 = vpop.f32.mrf.mxu0
        %v708 = vadd.f32 %v451, %v707
        %v709 = vpop.f32.mrf.mxu0
        %v710 = vadd.f32 %v451, %v709
        %711 = vmatmul.bf16.gmra.mxu0 %v605
        %v712 = vpop.f32.mrf.mxu0
        %v713 = vadd.f32 %v451, %v712
        %v714 = vpop.f32.mrf.mxu0
        %v715 = vadd.f32 %v451, %v714
        %716 = vmatmul.bf16.gmra.mxu0 %v608
        %v717 = vpop.f32.mrf.mxu0
        %v718 = vadd.f32 %v451, %v717
        %v719 = vpop.f32.mrf.mxu0
        %v720 = vadd.f32 %v451, %v719
        %721 = vmatmul.bf16.gmra.mxu0 %v611
        %v722 = vpop.f32.mrf.mxu0
        %v723 = vadd.f32 %v451, %v722
        %v724 = vpop.f32.mrf.mxu0
        %v725 = vadd.f32 %v451, %v724
        %726 = vdwg.mxu0
        %727 = vmatpush.bf16.msra.mxu0 0
        %728 = vmatpush.bf16.msra.mxu0 %v624
        %729 = vmatpush.bf16.msra.mxu0 %v558
        %730 = vmatpush.bf16.msra.mxu0 %v554
        %731 = vmatpush.bf16.msra.mxu0 %v550
        %732 = vmatpush.bf16.msra.mxu0 %v546
        %733 = vmatpush.bf16.msra.mxu0 %v542
        %734 = vmatpush.bf16.msra.mxu0 %v538
        %735 = vmatmul.bf16.gmra.mxu0 %v590
        %v736 = vpop.f32.mrf.mxu0
        %v737 = vadd.f32 %v452, %v736
        %v738 = vpop.f32.mrf.mxu0
        %v739 = vadd.f32 %v452, %v738
        %740 = vmatmul.bf16.gmra.mxu0 %v593
        %v741 = vpop.f32.mrf.mxu0
        %v742 = vadd.f32 %v452, %v741
        %v743 = vpop.f32.mrf.mxu0
        %v744 = vadd.f32 %v452, %v743
        %745 = vmatmul.bf16.gmra.mxu0 %v596
        %v746 = vpop.f32.mrf.mxu0
        %v747 = vadd.f32 %v452, %v746
        %v748 = vpop.f32.mrf.mxu0
        %v749 = vadd.f32 %v452, %v748
        %750 = vmatmul.bf16.gmra.mxu0 %v599
        %v751 = vpop.f32.mrf.mxu0
        %v752 = vadd.f32 %v452, %v751
        %v753 = vpop.f32.mrf.mxu0
        %v754 = vadd.f32 %v452, %v753
        %755 = vmatmul.bf16.gmra.mxu0 %v602
        %v756 = vpop.f32.mrf.mxu0
        %v757 = vadd.f32 %v452, %v756
        %v758 = vpop.f32.mrf.mxu0
        %v759 = vadd.f32 %v452, %v758
        %760 = vmatmul.bf16.gmra.mxu0 %v605
        %v761 = vpop.f32.mrf.mxu0
        %v762 = vadd.f32 %v452, %v761
        %v763 = vpop.f32.mrf.mxu0
        %v764 = vadd.f32 %v452, %v763
        %765 = vmatmul.bf16.gmra.mxu0 %v608
        %v766 = vpop.f32.mrf.mxu0
        %v767 = vadd.f32 %v452, %v766
        %v768 = vpop.f32.mrf.mxu0
        %v769 = vadd.f32 %v452, %v768
        %770 = vmatmul.bf16.gmra.mxu0 %v611
        %v771 = vpop.f32.mrf.mxu0
        %v772 = vadd.f32 %v452, %v771
        %v773 = vpop.f32.mrf.mxu0
        %v774 = vadd.f32 %v452, %v773
        %775 = vdwg.mxu0
        %776 = vmatpush.bf16.msra.mxu0 0
        %777 = vmatpush.bf16.msra.mxu0 %v627
        %778 = vmatpush.bf16.msra.mxu0 %v559
        %779 = vmatpush.bf16.msra.mxu0 %v555
        %780 = vmatpush.bf16.msra.mxu0 %v551
        %781 = vmatpush.bf16.msra.mxu0 %v547
        %782 = vmatpush.bf16.msra.mxu0 %v543
        %783 = vmatpush.bf16.msra.mxu0 %v539
        %784 = vmatmul.bf16.gmra.mxu0 %v590
        %v785 = vpop.f32.mrf.mxu0
        %v786 = vadd.f32 %v453, %v785
        %v787 = vpop.f32.mrf.mxu0
        %v788 = vadd.f32 %v453, %v787
        %789 = vmatmul.bf16.gmra.mxu0 %v593
        %v790 = vpop.f32.mrf.mxu0
        %v791 = vadd.f32 %v453, %v790
        %v792 = vpop.f32.mrf.mxu0
        %v793 = vadd.f32 %v453, %v792
        %794 = vmatmul.bf16.gmra.mxu0 %v596
        %v795 = vpop.f32.mrf.mxu0
        %v796 = vadd.f32 %v453, %v795
        %v797 = vpop.f32.mrf.mxu0
        %v798 = vadd.f32 %v453, %v797
        %799 = vmatmul.bf16.gmra.mxu0 %v599
        %v800 = vpop.f32.mrf.mxu0
        %v801 = vadd.f32 %v453, %v800
        %v802 = vpop.f32.mrf.mxu0
        %v803 = vadd.f32 %v453, %v802
        %804 = vmatmul.bf16.gmra.mxu0 %v602
        %v805 = vpop.f32.mrf.mxu0
        %v806 = vadd.f32 %v453, %v805
        %v807 = vpop.f32.mrf.mxu0
        %v808 = vadd.f32 %v453, %v807
        %809 = vmatmul.bf16.gmra.mxu0 %v605
        %v810 = vpop.f32.mrf.mxu0
        %v811 = vadd.f32 %v453, %v810
        %v812 = vpop.f32.mrf.mxu0
        %v813 = vadd.f32 %v453, %v812
        %814 = vmatmul.bf16.gmra.mxu0 %v608
        %v815 = vpop.f32.mrf.mxu0
        %v816 = vadd.f32 %v453, %v815
        %v817 = vpop.f32.mrf.mxu0
        %v818 = vadd.f32 %v453, %v817
        %819 = vmatmul.bf16.gmra.mxu0 %v611
        %v820 = vpop.f32.mrf.mxu0
        %v821 = vadd.f32 %v453, %v820
        %v822 = vpop.f32.mrf.mxu0
        %v823 = vadd.f32 %v453, %v822
        %824 = vdwg.mxu0
        %v825 = vtanh.pop %v639
        %v826 = vtanh.pop %v688
        %v827 = vtanh.pop %v737
        %v828 = vtanh.pop %v786
        %v829 = vtanh.pop %v641
        %v830 = vtanh.pop %v690
        %v831 = vtanh.pop %v739
        %v832 = vtanh.pop %v788
        %v833 = vtanh.pop %v644
        %v834 = vtanh.pop %v693
        %v835 = vtanh.pop %v742
        %v836 = vtanh.pop %v791
        %v837 = vtanh.pop %v646
        %v838 = vtanh.pop %v695
        %v839 = vtanh.pop %v744
        %v840 = vtanh.pop %v793
        %v841 = vtanh.pop %v649
        %v842 = vtanh.pop %v698
        %v843 = vtanh.pop %v747
        %v844 = vtanh.pop %v796
        %v845 = vtanh.pop %v651
        %v846 = vtanh.pop %v700
        %v847 = vtanh.pop %v749
        %v848 = vtanh.pop %v798
        %v849 = vtanh.pop %v654
        %v850 = vtanh.pop %v703
        %v851 = vtanh.pop %v752
        %v852 = vtanh.pop %v801
        %v853 = vtanh.pop %v656
        %v854 = vtanh.pop %v705
        %v855 = vtanh.pop %v754
        %v856 = vtanh.pop %v803
        %v857 = vtanh.pop %v659
        %v858 = vtanh.pop %v708
        %v859 = vtanh.pop %v757
        %v860 = vtanh.pop %v806
        %v861 = vtanh.pop %v661
        %v862 = vtanh.pop %v710
        %v863 = vtanh.pop %v759
        %v864 = vtanh.pop %v808
        %v865 = vtanh.pop %v664
        %v866 = vtanh.pop %v713
        %v867 = vtanh.pop %v762
        %v868 = vtanh.pop %v811
        %v869 = vtanh.pop %v666
        %v870 = vtanh.pop %v715
        %v871 = vtanh.pop %v764
        %v872 = vtanh.pop %v813
        %v873 = vtanh.pop %v669
        %v874 = vtanh.pop %v718
        %v875 = vtanh.pop %v767
        %v876 = vtanh.pop %v816
        %v877 = vtanh.pop %v671
        %v878 = vtanh.pop %v720
        %v879 = vtanh.pop %v769
        %v880 = vtanh.pop %v818
        %v881 = vtanh.pop %v674
        %v882 = vtanh.pop %v723
        %v883 = vtanh.pop %v772
        %v884 = vtanh.pop %v821
        %v885 = vtanh.pop %v676
        %v886 = vtanh.pop %v725
        %v887 = vtanh.pop %v774
        %v888 = vtanh.pop %v823
        %v889 = vpack.c.bf16 %v829, %v825
        %v890 = vpack.c.bf16 %v830, %v826
        %v891 = vpack.c.bf16 %v831, %v827
        %v892 = vpack.c.bf16 %v832, %v828
        %v893 = vpack.c.bf16 %v837, %v833
        %v894 = vpack.c.bf16 %v838, %v834
        %v895 = vpack.c.bf16 %v839, %v835
        %v896 = vpack.c.bf16 %v840, %v836
        %v897 = vpack.c.bf16 %v845, %v841
        %v898 = vpack.c.bf16 %v846, %v842
        %v899 = vpack.c.bf16 %v847, %v843
        %v900 = vpack.c.bf16 %v848, %v844
        %v901 = vpack.c.bf16 %v853, %v849
        %v902 = vpack.c.bf16 %v854, %v850
        %v903 = vpack.c.bf16 %v855, %v851
        %v904 = vpack.c.bf16 %v856, %v852
        %v905 = vpack.c.bf16 %v861, %v857
        %v906 = vpack.c.bf16 %v862, %v858
        %v907 = vpack.c.bf16 %v863, %v859
        %v908 = vpack.c.bf16 %v864, %v860
        %v909 = vpack.c.bf16 %v869, %v865
        %v910 = vpack.c.bf16 %v870, %v866
        %v911 = vpack.c.bf16 %v871, %v867
        %v912 = vpack.c.bf16 %v872, %v868
        %v913 = vpack.c.bf16 %v877, %v873
        %v914 = vpack.c.bf16 %v878, %v874
        %v915 = vpack.c.bf16 %v879, %v875
        %v916 = vpack.c.bf16 %v880, %v876
        %v917 = vpack.c.bf16 %v885, %v881
        %v918 = vpack.c.bf16 %v886, %v882
        %v919 = vpack.c.bf16 %v887, %v883
        %v920 = vpack.c.bf16 %v888, %v884
        %v921 = vld [vmem:[#allocation2] sm:$0xff]
        %v922 = vld [vmem:[#allocation2 + $0x8] sm:$0xff]
        %v923 = vld [vmem:[#allocation2 + $0x10] sm:$0xff]
        %v924 = vld [vmem:[#allocation2 + $0x18] sm:$0xff]
        %v925 = vld [vmem:[#allocation2 + $0x20] sm:$0xff]
        %v926 = vld [vmem:[#allocation2 + $0x28] sm:$0xff]
        %v927 = vld [vmem:[#allocation2 + $0x30] sm:$0xff]
        %v928 = vld [vmem:[#allocation2 + $0x38] sm:$0xff]
        %v929 = vld [vmem:[#allocation2 + $0x40] sm:$0xff]
        %v930 = vld [vmem:[#allocation2 + $0x48] sm:$0xff]
        %v931 = vld [vmem:[#allocation2 + $0x50] sm:$0xff]
        %v932 = vld [vmem:[#allocation2 + $0x58] sm:$0xff]
        %v933 = vld [vmem:[#allocation2 + $0x60] sm:$0xff]
        %v934 = vld [vmem:[#allocation2 + $0x68] sm:$0xff]
        %v935 = vld [vmem:[#allocation2 + $0x70] sm:$0xff]
        %v936 = vld [vmem:[#allocation2 + $0x78] sm:$0xff]
        %v937 = vld [vmem:[#allocation2 + $0x80] sm:$0xff]
        %v938 = vld [vmem:[#allocation2 + $0x88] sm:$0xff]
        %v939 = vld [vmem:[#allocation2 + $0x90] sm:$0xff]
        %v940 = vld [vmem:[#allocation2 + $0x98] sm:$0xff]
        %v941 = vld [vmem:[#allocation2 + $0xa0] sm:$0xff]
        %v942 = vld [vmem:[#allocation2 + $0xa8] sm:$0xff]
        %v943 = vld [vmem:[#allocation2 + $0xb0] sm:$0xff]
        %v944 = vld [vmem:[#allocation2 + $0xb8] sm:$0xff]
        %v945 = vld [vmem:[#allocation2 + $0xc0] sm:$0xff]
        %v946 = vld [vmem:[#allocation2 + $0xc8] sm:$0xff]
        %v947 = vld [vmem:[#allocation2 + $0xd0] sm:$0xff]
        %v948 = vld [vmem:[#allocation2 + $0xd8] sm:$0xff]
        %v949 = vld [vmem:[#allocation2 + $0xe0] sm:$0xff]
        %v950 = vld [vmem:[#allocation2 + $0xe8] sm:$0xff]
        %v951 = vld [vmem:[#allocation2 + $0xf0] sm:$0xff]
        %v952 = vld [vmem:[#allocation2 + $0xf8] sm:$0xff]
        %v953 = vld [vmem:[#allocation2 + $0x100] sm:$0xff]
        %v954 = vld [vmem:[#allocation2 + $0x108] sm:$0xff]
        %v955 = vld [vmem:[#allocation2 + $0x110] sm:$0xff]
        %v956 = vld [vmem:[#allocation2 + $0x118] sm:$0xff]
        %v957 = vld [vmem:[#allocation2 + $0x120] sm:$0xff]
        %v958 = vld [vmem:[#allocation2 + $0x128] sm:$0xff]
        %v959 = vld [vmem:[#allocation2 + $0x130] sm:$0xff]
        %v960 = vld [vmem:[#allocation2 + $0x138] sm:$0xff]
        %v961 = vld [vmem:[#allocation2 + $0x140] sm:$0xff]
        %v962 = vld [vmem:[#allocation2 + $0x148] sm:$0xff]
        %v963 = vld [vmem:[#allocation2 + $0x150] sm:$0xff]
        %v964 = vld [vmem:[#allocation2 + $0x158] sm:$0xff]
        %v965 = vld [vmem:[#allocation2 + $0x160] sm:$0xff]
        %v966 = vld [vmem:[#allocation2 + $0x168] sm:$0xff]
        %v967 = vld [vmem:[#allocation2 + $0x170] sm:$0xff]
        %v968 = vld [vmem:[#allocation2 + $0x178] sm:$0xff]
        %v969 = vld [vmem:[#allocation2 + $0x180] sm:$0xff]
        %v970 = vld [vmem:[#allocation2 + $0x188] sm:$0xff]
        %v971 = vld [vmem:[#allocation2 + $0x190] sm:$0xff]
        %v972 = vld [vmem:[#allocation2 + $0x198] sm:$0xff]
        %v973 = vld [vmem:[#allocation2 + $0x1a0] sm:$0xff]
        %v974 = vld [vmem:[#allocation2 + $0x1a8] sm:$0xff]
        %v975 = vld [vmem:[#allocation2 + $0x1b0] sm:$0xff]
        %v976 = vld [vmem:[#allocation2 + $0x1b8] sm:$0xff]
        %v977 = vld [vmem:[#allocation2 + $0x1c0] sm:$0xff]
        %v978 = vld [vmem:[#allocation2 + $0x1c8] sm:$0xff]
        %v979 = vld [vmem:[#allocation2 + $0x1d0] sm:$0xff]
        %v980 = vld [vmem:[#allocation2 + $0x1d8] sm:$0xff]
        %v981 = vld [vmem:[#allocation2 + $0x1e0] sm:$0xff]
        %v982 = vld [vmem:[#allocation2 + $0x1e8] sm:$0xff]
        %v983 = vld [vmem:[#allocation2 + $0x1f0] sm:$0xff]
        %v984 = vld [vmem:[#allocation2 + $0x1f8] sm:$0xff]
        %v985 = vld [vmem:[#allocation2 + $0x200] sm:$0xff]
        %v986 = vld [vmem:[#allocation2 + $0x208] sm:$0xff]
        %v987 = vld [vmem:[#allocation2 + $0x210] sm:$0xff]
        %v988 = vld [vmem:[#allocation2 + $0x218] sm:$0xff]
        %v989 = vld [vmem:[#allocation2 + $0x220] sm:$0xff]
        %v990 = vld [vmem:[#allocation2 + $0x228] sm:$0xff]
        %v991 = vld [vmem:[#allocation2 + $0x230] sm:$0xff]
        %v992 = vld [vmem:[#allocation2 + $0x238] sm:$0xff]
        %v993 = vld [vmem:[#allocation2 + $0x240] sm:$0xff]
        %v994 = vld [vmem:[#allocation2 + $0x248] sm:$0xff]
        %v995 = vld [vmem:[#allocation2 + $0x250] sm:$0xff]
        %v996 = vld [vmem:[#allocation2 + $0x258] sm:$0xff]
        %v997 = vld [vmem:[#allocation2 + $0x260] sm:$0xff]
        %v998 = vld [vmem:[#allocation2 + $0x268] sm:$0xff]
        %v999 = vld [vmem:[#allocation2 + $0x270] sm:$0xff]
        %v1000 = vld [vmem:[#allocation2 + $0x278] sm:$0xff]
        %v1001 = vld [vmem:[#allocation2 + $0x280] sm:$0xff]
        %v1002 = vld [vmem:[#allocation2 + $0x288] sm:$0xff]
        %v1003 = vld [vmem:[#allocation2 + $0x290] sm:$0xff]
        %v1004 = vld [vmem:[#allocation2 + $0x298] sm:$0xff]
        %v1005 = vld [vmem:[#allocation2 + $0x2a0] sm:$0xff]
        %v1006 = vld [vmem:[#allocation2 + $0x2a8] sm:$0xff]
        %v1007 = vld [vmem:[#allocation2 + $0x2b0] sm:$0xff]
        %v1008 = vld [vmem:[#allocation2 + $0x2b8] sm:$0xff]
        %v1009 = vld [vmem:[#allocation2 + $0x2c0] sm:$0xff]
        %v1010 = vld [vmem:[#allocation2 + $0x2c8] sm:$0xff]
        %v1011 = vld [vmem:[#allocation2 + $0x2d0] sm:$0xff]
        %v1012 = vld [vmem:[#allocation2 + $0x2d8] sm:$0xff]
        %v1013 = vld [vmem:[#allocation2 + $0x2e0] sm:$0xff]
        %v1014 = vld [vmem:[#allocation2 + $0x2e8] sm:$0xff]
        %v1015 = vld [vmem:[#allocation2 + $0x2f0] sm:$0xff]
        %v1016 = vld [vmem:[#allocation2 + $0x2f8] sm:$0xff]
        %v1017 = vld [vmem:[#allocation2 + $0x300] sm:$0xff]
        %v1018 = vld [vmem:[#allocation2 + $0x308] sm:$0xff]
        %v1019 = vld [vmem:[#allocation2 + $0x310] sm:$0xff]
        %v1020 = vld [vmem:[#allocation2 + $0x318] sm:$0xff]
        %v1021 = vld [vmem:[#allocation2 + $0x320] sm:$0xff]
        %v1022 = vld [vmem:[#allocation2 + $0x328] sm:$0xff]
        %v1023 = vld [vmem:[#allocation2 + $0x330] sm:$0xff]
        %v1024 = vld [vmem:[#allocation2 + $0x338] sm:$0xff]
        %v1025 = vld [vmem:[#allocation2 + $0x340] sm:$0xff]
        %v1026 = vld [vmem:[#allocation2 + $0x348] sm:$0xff]
        %v1027 = vld [vmem:[#allocation2 + $0x350] sm:$0xff]
        %v1028 = vld [vmem:[#allocation2 + $0x358] sm:$0xff]
        %v1029 = vld [vmem:[#allocation2 + $0x360] sm:$0xff]
        %v1030 = vld [vmem:[#allocation2 + $0x368] sm:$0xff]
        %v1031 = vld [vmem:[#allocation2 + $0x370] sm:$0xff]
        %v1032 = vld [vmem:[#allocation2 + $0x378] sm:$0xff]
        %v1033 = vld [vmem:[#allocation2 + $0x380] sm:$0xff]
        %v1034 = vld [vmem:[#allocation2 + $0x388] sm:$0xff]
        %v1035 = vld [vmem:[#allocation2 + $0x390] sm:$0xff]
        %v1036 = vld [vmem:[#allocation2 + $0x398] sm:$0xff]
        %v1037 = vld [vmem:[#allocation2 + $0x3a0] sm:$0xff]
        %v1038 = vld [vmem:[#allocation2 + $0x3a8] sm:$0xff]
        %v1039 = vld [vmem:[#allocation2 + $0x3b0] sm:$0xff]
        %v1040 = vld [vmem:[#allocation2 + $0x3b8] sm:$0xff]
        %v1041 = vld [vmem:[#allocation2 + $0x3c0] sm:$0xff]
        %v1042 = vld [vmem:[#allocation2 + $0x3c8] sm:$0xff]
        %v1043 = vld [vmem:[#allocation2 + $0x3d0] sm:$0xff]
        %v1044 = vld [vmem:[#allocation2 + $0x3d8] sm:$0xff]
        %v1045 = vld [vmem:[#allocation2 + $0x3e0] sm:$0xff]
        %v1046 = vld [vmem:[#allocation2 + $0x3e8] sm:$0xff]
        %v1047 = vld [vmem:[#allocation2 + $0x3f0] sm:$0xff]
        %v1048 = vld [vmem:[#allocation2 + $0x3f8] sm:$0xff]
        %v1049 = vld [vmem:[#allocation5] sm:$0xf]
        %v1051 = vperm.slane %v1049, 0
        %v1052 = vperm.slane %v1049, 1
        %v1053 = vperm.slane %v1049, 2
        %v1054 = vperm.slane %v1049, 3
        %v1187 = vunpack.c.l.b16 %v921
        %v1188 = vunpack.c.h.b16 %v921
        %v1189 = vunpack.c.l.b16 %v922
        %v1190 = vunpack.c.h.b16 %v922
        %v1191 = vunpack.c.l.b16 %v923
        %v1192 = vunpack.c.h.b16 %v923
        %v1193 = vunpack.c.l.b16 %v924
        %v1194 = vunpack.c.h.b16 %v924
        %v1195 = vunpack.c.l.b16 %v925
        %v1196 = vunpack.c.h.b16 %v925
        %v1197 = vunpack.c.l.b16 %v926
        %v1198 = vunpack.c.h.b16 %v926
        %v1199 = vunpack.c.l.b16 %v927
        %v1200 = vunpack.c.h.b16 %v927
        %v1201 = vunpack.c.l.b16 %v928
        %v1202 = vunpack.c.h.b16 %v928
        %v1203 = vunpack.c.l.b16 %v929
        %v1204 = vunpack.c.h.b16 %v929
        %v1205 = vunpack.c.l.b16 %v930
        %v1206 = vunpack.c.h.b16 %v930
        %v1207 = vunpack.c.l.b16 %v931
        %v1208 = vunpack.c.h.b16 %v931
        %v1209 = vunpack.c.l.b16 %v932
        %v1210 = vunpack.c.h.b16 %v932
        %v1211 = vunpack.c.l.b16 %v933
        %v1212 = vunpack.c.h.b16 %v933
        %v1213 = vunpack.c.l.b16 %v934
        %v1214 = vunpack.c.h.b16 %v934
        %v1215 = vunpack.c.l.b16 %v935
        %v1216 = vunpack.c.h.b16 %v935
        %v1217 = vunpack.c.l.b16 %v936
        %v1218 = vunpack.c.h.b16 %v936
        %v1219 = vunpack.c.l.b16 %v937
        %v1220 = vunpack.c.h.b16 %v937
        %v1221 = vunpack.c.l.b16 %v938
        %v1222 = vunpack.c.h.b16 %v938
        %v1223 = vunpack.c.l.b16 %v939
        %v1224 = vunpack.c.h.b16 %v939
        %v1225 = vunpack.c.l.b16 %v940
        %v1226 = vunpack.c.h.b16 %v940
        %v1227 = vunpack.c.l.b16 %v941
        %v1228 = vunpack.c.h.b16 %v941
        %v1229 = vunpack.c.l.b16 %v942
        %v1230 = vunpack.c.h.b16 %v942
        %v1231 = vunpack.c.l.b16 %v943
        %v1232 = vunpack.c.h.b16 %v943
        %v1233 = vunpack.c.l.b16 %v944
        %v1234 = vunpack.c.h.b16 %v944
        %v1235 = vunpack.c.l.b16 %v945
        %v1236 = vunpack.c.h.b16 %v945
        %v1237 = vunpack.c.l.b16 %v946
        %v1238 = vunpack.c.h.b16 %v946
        %v1239 = vunpack.c.l.b16 %v947
        %v1240 = vunpack.c.h.b16 %v947
        %v1241 = vunpack.c.l.b16 %v948
        %v1242 = vunpack.c.h.b16 %v948
        %v1243 = vunpack.c.l.b16 %v949
        %v1244 = vunpack.c.h.b16 %v949
        %v1245 = vunpack.c.l.b16 %v950
        %v1246 = vunpack.c.h.b16 %v950
        %v1247 = vunpack.c.l.b16 %v951
        %v1248 = vunpack.c.h.b16 %v951
        %v1249 = vunpack.c.l.b16 %v952
        %v1250 = vunpack.c.h.b16 %v952
        %v1251 = vunpack.c.l.b16 %v953
        %v1252 = vunpack.c.h.b16 %v953
        %v1253 = vunpack.c.l.b16 %v954
        %v1254 = vunpack.c.h.b16 %v954
        %v1255 = vunpack.c.l.b16 %v955
        %v1256 = vunpack.c.h.b16 %v955
        %v1257 = vunpack.c.l.b16 %v956
        %v1258 = vunpack.c.h.b16 %v956
        %v1259 = vunpack.c.l.b16 %v957
        %v1260 = vunpack.c.h.b16 %v957
        %v1261 = vunpack.c.l.b16 %v958
        %v1262 = vunpack.c.h.b16 %v958
        %v1263 = vunpack.c.l.b16 %v959
        %v1264 = vunpack.c.h.b16 %v959
        %v1265 = vunpack.c.l.b16 %v960
        %v1266 = vunpack.c.h.b16 %v960
        %v1267 = vunpack.c.l.b16 %v961
        %v1268 = vunpack.c.h.b16 %v961
        %v1269 = vunpack.c.l.b16 %v962
        %v1270 = vunpack.c.h.b16 %v962
        %v1271 = vunpack.c.l.b16 %v963
        %v1272 = vunpack.c.h.b16 %v963
        %v1273 = vunpack.c.l.b16 %v964
        %v1274 = vunpack.c.h.b16 %v964
        %v1275 = vunpack.c.l.b16 %v965
        %v1276 = vunpack.c.h.b16 %v965
        %v1277 = vunpack.c.l.b16 %v966
        %v1278 = vunpack.c.h.b16 %v966
        %v1279 = vunpack.c.l.b16 %v967
        %v1280 = vunpack.c.h.b16 %v967
        %v1281 = vunpack.c.l.b16 %v968
        %v1282 = vunpack.c.h.b16 %v968
        %v1283 = vunpack.c.l.b16 %v969
        %v1284 = vunpack.c.h.b16 %v969
        %v1285 = vunpack.c.l.b16 %v970
        %v1286 = vunpack.c.h.b16 %v970
        %v1287 = vunpack.c.l.b16 %v971
        %v1288 = vunpack.c.h.b16 %v971
        %v1289 = vunpack.c.l.b16 %v972
        %v1290 = vunpack.c.h.b16 %v972
        %v1291 = vunpack.c.l.b16 %v973
        %v1292 = vunpack.c.h.b16 %v973
        %v1293 = vunpack.c.l.b16 %v974
        %v1294 = vunpack.c.h.b16 %v974
        %v1295 = vunpack.c.l.b16 %v975
        %v1296 = vunpack.c.h.b16 %v975
        %v1297 = vunpack.c.l.b16 %v976
        %v1298 = vunpack.c.h.b16 %v976
        %v1299 = vunpack.c.l.b16 %v977
        %v1300 = vunpack.c.h.b16 %v977
        %v1301 = vunpack.c.l.b16 %v978
        %v1302 = vunpack.c.h.b16 %v978
        %v1303 = vunpack.c.l.b16 %v979
        %v1304 = vunpack.c.h.b16 %v979
        %v1305 = vunpack.c.l.b16 %v980
        %v1306 = vunpack.c.h.b16 %v980
        %v1307 = vunpack.c.l.b16 %v981
        %v1308 = vunpack.c.h.b16 %v981
        %v1309 = vunpack.c.l.b16 %v982
        %v1310 = vunpack.c.h.b16 %v982
        %v1311 = vunpack.c.l.b16 %v983
        %v1312 = vunpack.c.h.b16 %v983
        %v1313 = vunpack.c.l.b16 %v984
        %v1314 = vunpack.c.h.b16 %v984
        %v1315 = vunpack.c.l.b16 %v985
        %v1316 = vunpack.c.h.b16 %v985
        %v1317 = vunpack.c.l.b16 %v986
        %v1318 = vunpack.c.h.b16 %v986
        %v1319 = vunpack.c.l.b16 %v987
        %v1320 = vunpack.c.h.b16 %v987
        %v1321 = vunpack.c.l.b16 %v988
        %v1322 = vunpack.c.h.b16 %v988
        %v1323 = vunpack.c.l.b16 %v989
        %v1324 = vunpack.c.h.b16 %v989
        %v1325 = vunpack.c.l.b16 %v990
        %v1326 = vunpack.c.h.b16 %v990
        %v1327 = vunpack.c.l.b16 %v991
        %v1328 = vunpack.c.h.b16 %v991
        %v1329 = vunpack.c.l.b16 %v992
        %v1330 = vunpack.c.h.b16 %v992
        %v1331 = vunpack.c.l.b16 %v993
        %v1332 = vunpack.c.h.b16 %v993
        %v1333 = vunpack.c.l.b16 %v994
        %v1334 = vunpack.c.h.b16 %v994
        %v1335 = vunpack.c.l.b16 %v995
        %v1336 = vunpack.c.h.b16 %v995
        %v1337 = vunpack.c.l.b16 %v996
        %v1338 = vunpack.c.h.b16 %v996
        %v1339 = vunpack.c.l.b16 %v997
        %v1340 = vunpack.c.h.b16 %v997
        %v1341 = vunpack.c.l.b16 %v998
        %v1342 = vunpack.c.h.b16 %v998
        %v1343 = vunpack.c.l.b16 %v999
        %v1344 = vunpack.c.h.b16 %v999
        %v1345 = vunpack.c.l.b16 %v1000
        %v1346 = vunpack.c.h.b16 %v1000
        %v1347 = vunpack.c.l.b16 %v1001
        %v1348 = vunpack.c.h.b16 %v1001
        %v1349 = vunpack.c.l.b16 %v1002
        %v1350 = vunpack.c.h.b16 %v1002
        %v1351 = vunpack.c.l.b16 %v1003
        %v1352 = vunpack.c.h.b16 %v1003
        %v1353 = vunpack.c.l.b16 %v1004
        %v1354 = vunpack.c.h.b16 %v1004
        %v1355 = vunpack.c.l.b16 %v1005
        %v1356 = vunpack.c.h.b16 %v1005
        %v1357 = vunpack.c.l.b16 %v1006
        %v1358 = vunpack.c.h.b16 %v1006
        %v1359 = vunpack.c.l.b16 %v1007
        %v1360 = vunpack.c.h.b16 %v1007
        %v1361 = vunpack.c.l.b16 %v1008
        %v1362 = vunpack.c.h.b16 %v1008
        %v1363 = vunpack.c.l.b16 %v1009
        %v1364 = vunpack.c.h.b16 %v1009
        %v1365 = vunpack.c.l.b16 %v1010
        %v1366 = vunpack.c.h.b16 %v1010
        %v1367 = vunpack.c.l.b16 %v1011
        %v1368 = vunpack.c.h.b16 %v1011
        %v1369 = vunpack.c.l.b16 %v1012
        %v1370 = vunpack.c.h.b16 %v1012
        %v1371 = vunpack.c.l.b16 %v1013
        %v1372 = vunpack.c.h.b16 %v1013
        %v1373 = vunpack.c.l.b16 %v1014
        %v1374 = vunpack.c.h.b16 %v1014
        %v1375 = vunpack.c.l.b16 %v1015
        %v1376 = vunpack.c.h.b16 %v1015
        %v1377 = vunpack.c.l.b16 %v1016
        %v1378 = vunpack.c.h.b16 %v1016
        %v1379 = vunpack.c.l.b16 %v1017
        %v1380 = vunpack.c.h.b16 %v1017
        %v1381 = vunpack.c.l.b16 %v1018
        %v1382 = vunpack.c.h.b16 %v1018
        %v1383 = vunpack.c.l.b16 %v1019
        %v1384 = vunpack.c.h.b16 %v1019
        %v1385 = vunpack.c.l.b16 %v1020
        %v1386 = vunpack.c.h.b16 %v1020
        %v1387 = vunpack.c.l.b16 %v1021
        %v1388 = vunpack.c.h.b16 %v1021
        %v1389 = vunpack.c.l.b16 %v1022
        %v1390 = vunpack.c.h.b16 %v1022
        %v1391 = vunpack.c.l.b16 %v1023
        %v1392 = vunpack.c.h.b16 %v1023
        %v1393 = vunpack.c.l.b16 %v1024
        %v1394 = vunpack.c.h.b16 %v1024
        %v1395 = vunpack.c.l.b16 %v1025
        %v1396 = vunpack.c.h.b16 %v1025
        %v1397 = vunpack.c.l.b16 %v1026
        %v1398 = vunpack.c.h.b16 %v1026
        %v1399 = vunpack.c.l.b16 %v1027
        %v1400 = vunpack.c.h.b16 %v1027
        %v1401 = vunpack.c.l.b16 %v1028
        %v1402 = vunpack.c.h.b16 %v1028
        %v1403 = vunpack.c.l.b16 %v1029
        %v1404 = vunpack.c.h.b16 %v1029
        %v1405 = vunpack.c.l.b16 %v1030
        %v1406 = vunpack.c.h.b16 %v1030
        %v1407 = vunpack.c.l.b16 %v1031
        %v1408 = vunpack.c.h.b16 %v1031
        %v1409 = vunpack.c.l.b16 %v1032
        %v1410 = vunpack.c.h.b16 %v1032
        %v1411 = vunpack.c.l.b16 %v1033
        %v1412 = vunpack.c.h.b16 %v1033
        %v1413 = vunpack.c.l.b16 %v1034
        %v1414 = vunpack.c.h.b16 %v1034
        %v1415 = vunpack.c.l.b16 %v1035
        %v1416 = vunpack.c.h.b16 %v1035
        %v1417 = vunpack.c.l.b16 %v1036
        %v1418 = vunpack.c.h.b16 %v1036
        %v1419 = vunpack.c.l.b16 %v1037
        %v1420 = vunpack.c.h.b16 %v1037
        %v1421 = vunpack.c.l.b16 %v1038
        %v1422 = vunpack.c.h.b16 %v1038
        %v1423 = vunpack.c.l.b16 %v1039
        %v1424 = vunpack.c.h.b16 %v1039
        %v1425 = vunpack.c.l.b16 %v1040
        %v1426 = vunpack.c.h.b16 %v1040
        %v1427 = vunpack.c.l.b16 %v1041
        %v1428 = vunpack.c.h.b16 %v1041
        %v1429 = vunpack.c.l.b16 %v1042
        %v1430 = vunpack.c.h.b16 %v1042
        %v1431 = vunpack.c.l.b16 %v1043
        %v1432 = vunpack.c.h.b16 %v1043
        %v1433 = vunpack.c.l.b16 %v1044
        %v1434 = vunpack.c.h.b16 %v1044
        %v1435 = vunpack.c.l.b16 %v1045
        %v1436 = vunpack.c.h.b16 %v1045
        %v1437 = vunpack.c.l.b16 %v1046
        %v1438 = vunpack.c.h.b16 %v1046
        %v1439 = vunpack.c.l.b16 %v1047
        %v1440 = vunpack.c.h.b16 %v1047
        %v1441 = vunpack.c.l.b16 %v1048
        %v1442 = vunpack.c.h.b16 %v1048
        %v1443 = vpack.c.b16 %v1191, %v1187
        %v1444 = vpack.c.b16 %v1192, %v1188
        %v1445 = vpack.c.b16 %v1193, %v1189
        %v1446 = vpack.c.b16 %v1194, %v1190
        %v1447 = vpack.c.b16 %v1199, %v1195
        %v1448 = vpack.c.b16 %v1200, %v1196
        %v1449 = vpack.c.b16 %v1201, %v1197
        %v1450 = vpack.c.b16 %v1202, %v1198
        %v1451 = vpack.c.b16 %v1207, %v1203
        %v1452 = vpack.c.b16 %v1208, %v1204
        %v1453 = vpack.c.b16 %v1209, %v1205
        %v1454 = vpack.c.b16 %v1210, %v1206
        %v1455 = vpack.c.b16 %v1215, %v1211
        %v1456 = vpack.c.b16 %v1216, %v1212
        %v1457 = vpack.c.b16 %v1217, %v1213
        %v1458 = vpack.c.b16 %v1218, %v1214
        %v1459 = vpack.c.b16 %v1223, %v1219
        %v1460 = vpack.c.b16 %v1224, %v1220
        %v1461 = vpack.c.b16 %v1225, %v1221
        %v1462 = vpack.c.b16 %v1226, %v1222
        %v1463 = vpack.c.b16 %v1231, %v1227
        %v1464 = vpack.c.b16 %v1232, %v1228
        %v1465 = vpack.c.b16 %v1233, %v1229
        %v1466 = vpack.c.b16 %v1234, %v1230
        %v1467 = vpack.c.b16 %v1239, %v1235
        %v1468 = vpack.c.b16 %v1240, %v1236
        %v1469 = vpack.c.b16 %v1241, %v1237
        %v1470 = vpack.c.b16 %v1242, %v1238
        %v1471 = vpack.c.b16 %v1247, %v1243
        %v1472 = vpack.c.b16 %v1248, %v1244
        %v1473 = vpack.c.b16 %v1249, %v1245
        %v1474 = vpack.c.b16 %v1250, %v1246
        %v1475 = vpack.c.b16 %v1255, %v1251
        %v1476 = vpack.c.b16 %v1256, %v1252
        %v1477 = vpack.c.b16 %v1257, %v1253
        %v1478 = vpack.c.b16 %v1258, %v1254
        %v1479 = vpack.c.b16 %v1263, %v1259
        %v1480 = vpack.c.b16 %v1264, %v1260
        %v1481 = vpack.c.b16 %v1265, %v1261
        %v1482 = vpack.c.b16 %v1266, %v1262
        %v1483 = vpack.c.b16 %v1271, %v1267
        %v1484 = vpack.c.b16 %v1272, %v1268
        %v1485 = vpack.c.b16 %v1273, %v1269
        %v1486 = vpack.c.b16 %v1274, %v1270
        %v1487 = vpack.c.b16 %v1279, %v1275
        %v1488 = vpack.c.b16 %v1280, %v1276
        %v1489 = vpack.c.b16 %v1281, %v1277
        %v1490 = vpack.c.b16 %v1282, %v1278
        %v1491 = vpack.c.b16 %v1287, %v1283
        %v1492 = vpack.c.b16 %v1288, %v1284
        %v1493 = vpack.c.b16 %v1289, %v1285
        %v1494 = vpack.c.b16 %v1290, %v1286
        %v1495 = vpack.c.b16 %v1295, %v1291
        %v1496 = vpack.c.b16 %v1296, %v1292
        %v1497 = vpack.c.b16 %v1297, %v1293
        %v1498 = vpack.c.b16 %v1298, %v1294
        %v1499 = vpack.c.b16 %v1303, %v1299
        %v1500 = vpack.c.b16 %v1304, %v1300
        %v1501 = vpack.c.b16 %v1305, %v1301
        %v1502 = vpack.c.b16 %v1306, %v1302
        %v1503 = vpack.c.b16 %v1311, %v1307
        %v1504 = vpack.c.b16 %v1312, %v1308
        %v1505 = vpack.c.b16 %v1313, %v1309
        %v1506 = vpack.c.b16 %v1314, %v1310
        %v1507 = vpack.c.b16 %v1319, %v1315
        %v1508 = vpack.c.b16 %v1320, %v1316
        %v1509 = vpack.c.b16 %v1321, %v1317
        %v1510 = vpack.c.b16 %v1322, %v1318
        %v1511 = vpack.c.b16 %v1327, %v1323
        %v1512 = vpack.c.b16 %v1328, %v1324
        %v1513 = vpack.c.b16 %v1329, %v1325
        %v1514 = vpack.c.b16 %v1330, %v1326
        %v1515 = vpack.c.b16 %v1335, %v1331
        %v1516 = vpack.c.b16 %v1336, %v1332
        %v1517 = vpack.c.b16 %v1337, %v1333
        %v1518 = vpack.c.b16 %v1338, %v1334
        %v1519 = vpack.c.b16 %v1343, %v1339
        %v1520 = vpack.c.b16 %v1344, %v1340
        %v1521 = vpack.c.b16 %v1345, %v1341
        %v1522 = vpack.c.b16 %v1346, %v1342
        %v1523 = vpack.c.b16 %v1351, %v1347
        %v1524 = vpack.c.b16 %v1352, %v1348
        %v1525 = vpack.c.b16 %v1353, %v1349
        %v1526 = vpack.c.b16 %v1354, %v1350
        %v1527 = vpack.c.b16 %v1359, %v1355
        %v1528 = vpack.c.b16 %v1360, %v1356
        %v1529 = vpack.c.b16 %v1361, %v1357
        %v1530 = vpack.c.b16 %v1362, %v1358
        %v1531 = vpack.c.b16 %v1367, %v1363
        %v1532 = vpack.c.b16 %v1368, %v1364
        %v1533 = vpack.c.b16 %v1369, %v1365
        %v1534 = vpack.c.b16 %v1370, %v1366
        %v1535 = vpack.c.b16 %v1375, %v1371
        %v1536 = vpack.c.b16 %v1376, %v1372
        %v1537 = vpack.c.b16 %v1377, %v1373
        %v1538 = vpack.c.b16 %v1378, %v1374
        %v1539 = vpack.c.b16 %v1383, %v1379
        %v1540 = vpack.c.b16 %v1384, %v1380
        %v1541 = vpack.c.b16 %v1385, %v1381
        %v1542 = vpack.c.b16 %v1386, %v1382
        %v1543 = vpack.c.b16 %v1391, %v1387
        %v1544 = vpack.c.b16 %v1392, %v1388
        %v1545 = vpack.c.b16 %v1393, %v1389
        %v1546 = vpack.c.b16 %v1394, %v1390
        %v1547 = vpack.c.b16 %v1399, %v1395
        %v1548 = vpack.c.b16 %v1400, %v1396
        %v1549 = vpack.c.b16 %v1401, %v1397
        %v1550 = vpack.c.b16 %v1402, %v1398
        %v1551 = vpack.c.b16 %v1407, %v1403
        %v1552 = vpack.c.b16 %v1408, %v1404
        %v1553 = vpack.c.b16 %v1409, %v1405
        %v1554 = vpack.c.b16 %v1410, %v1406
        %v1555 = vpack.c.b16 %v1415, %v1411
        %v1556 = vpack.c.b16 %v1416, %v1412
        %v1557 = vpack.c.b16 %v1417, %v1413
        %v1558 = vpack.c.b16 %v1418, %v1414
        %v1559 = vpack.c.b16 %v1423, %v1419
        %v1560 = vpack.c.b16 %v1424, %v1420
        %v1561 = vpack.c.b16 %v1425, %v1421
        %v1562 = vpack.c.b16 %v1426, %v1422
        %v1563 = vpack.c.b16 %v1431, %v1427
        %v1564 = vpack.c.b16 %v1432, %v1428
        %v1565 = vpack.c.b16 %v1433, %v1429
        %v1566 = vpack.c.b16 %v1434, %v1430
        %v1567 = vpack.c.b16 %v1439, %v1435
        %v1568 = vpack.c.b16 %v1440, %v1436
        %v1569 = vpack.c.b16 %v1441, %v1437
        %v1570 = vpack.c.b16 %v1442, %v1438
        %1699 = vmatpush.bf16.msra.mxu0 %v1471
        %1700 = vmatpush.bf16.msra.mxu0 %v1467
        %1701 = vmatpush.bf16.msra.mxu0 %v1463
        %1702 = vmatpush.bf16.msra.mxu0 %v1459
        %1703 = vmatpush.bf16.msra.mxu0 %v1455
        %1704 = vmatpush.bf16.msra.mxu0 %v1451
        %1705 = vmatpush.bf16.msra.mxu0 %v1447
        %1706 = vmatpush.bf16.msra.mxu0 %v1443
        %1707 = vmatmul.bf16.gmra.mxu0 %v889
        %v1708 = vpop.f32.mrf.mxu0
        %v1709 = vadd.f32 %v1051, %v1708
        %v1710 = vpop.f32.mrf.mxu0
        %v1711 = vadd.f32 %v1051, %v1710
        %1712 = vmatmul.bf16.gmra.mxu0 %v893
        %v1713 = vpop.f32.mrf.mxu0
        %v1714 = vadd.f32 %v1051, %v1713
        %v1715 = vpop.f32.mrf.mxu0
        %v1716 = vadd.f32 %v1051, %v1715
        %1717 = vmatmul.bf16.gmra.mxu0 %v897
        %v1718 = vpop.f32.mrf.mxu0
        %v1719 = vadd.f32 %v1051, %v1718
        %v1720 = vpop.f32.mrf.mxu0
        %v1721 = vadd.f32 %v1051, %v1720
        %1722 = vmatmul.bf16.gmra.mxu0 %v901
        %v1723 = vpop.f32.mrf.mxu0
        %v1724 = vadd.f32 %v1051, %v1723
        %v1725 = vpop.f32.mrf.mxu0
        %v1726 = vadd.f32 %v1051, %v1725
        %1727 = vmatmul.bf16.gmra.mxu0 %v905
        %v1728 = vpop.f32.mrf.mxu0
        %v1729 = vadd.f32 %v1051, %v1728
        %v1730 = vpop.f32.mrf.mxu0
        %v1731 = vadd.f32 %v1051, %v1730
        %1732 = vmatmul.bf16.gmra.mxu0 %v909
        %v1733 = vpop.f32.mrf.mxu0
        %v1734 = vadd.f32 %v1051, %v1733
        %v1735 = vpop.f32.mrf.mxu0
        %v1736 = vadd.f32 %v1051, %v1735
        %1737 = vmatmul.bf16.gmra.mxu0 %v913
        %v1738 = vpop.f32.mrf.mxu0
        %v1739 = vadd.f32 %v1051, %v1738
        %v1740 = vpop.f32.mrf.mxu0
        %v1741 = vadd.f32 %v1051, %v1740
        %1742 = vmatmul.bf16.gmra.mxu0 %v917
        %v1743 = vpop.f32.mrf.mxu0
        %v1744 = vadd.f32 %v1051, %v1743
        %v1745 = vpop.f32.mrf.mxu0
        %v1746 = vadd.f32 %v1051, %v1745
        %1747 = vdwg.mxu0
        %1748 = vmatpush.bf16.msra.mxu0 %v1503
        %1749 = vmatpush.bf16.msra.mxu0 %v1499
        %1750 = vmatpush.bf16.msra.mxu0 %v1495
        %1751 = vmatpush.bf16.msra.mxu0 %v1491
        %1752 = vmatpush.bf16.msra.mxu0 %v1487
        %1753 = vmatpush.bf16.msra.mxu0 %v1483
        %1754 = vmatpush.bf16.msra.mxu0 %v1479
        %1755 = vmatpush.bf16.msra.mxu0 %v1475
        %1756 = vmatmul.bf16.gmra.mxu0 %v890
        %v1757 = vpop.f32.mrf.mxu0
        %v1758 = vadd.f32 %v1709, %v1757
        %v1759 = vpop.f32.mrf.mxu0
        %v1760 = vadd.f32 %v1711, %v1759
        %1761 = vmatmul.bf16.gmra.mxu0 %v894
        %v1762 = vpop.f32.mrf.mxu0
        %v1763 = vadd.f32 %v1714, %v1762
        %v1764 = vpop.f32.mrf.mxu0
        %v1765 = vadd.f32 %v1716, %v1764
        %1766 = vmatmul.bf16.gmra.mxu0 %v898
        %v1767 = vpop.f32.mrf.mxu0
        %v1768 = vadd.f32 %v1719, %v1767
        %v1769 = vpop.f32.mrf.mxu0
        %v1770 = vadd.f32 %v1721, %v1769
        %1771 = vmatmul.bf16.gmra.mxu0 %v902
        %v1772 = vpop.f32.mrf.mxu0
        %v1773 = vadd.f32 %v1724, %v1772
        %v1774 = vpop.f32.mrf.mxu0
        %v1775 = vadd.f32 %v1726, %v1774
        %1776 = vmatmul.bf16.gmra.mxu0 %v906
        %v1777 = vpop.f32.mrf.mxu0
        %v1778 = vadd.f32 %v1729, %v1777
        %v1779 = vpop.f32.mrf.mxu0
        %v1780 = vadd.f32 %v1731, %v1779
        %1781 = vmatmul.bf16.gmra.mxu0 %v910
        %v1782 = vpop.f32.mrf.mxu0
        %v1783 = vadd.f32 %v1734, %v1782
        %v1784 = vpop.f32.mrf.mxu0
        %v1785 = vadd.f32 %v1736, %v1784
        %1786 = vmatmul.bf16.gmra.mxu0 %v914
        %v1787 = vpop.f32.mrf.mxu0
        %v1788 = vadd.f32 %v1739, %v1787
        %v1789 = vpop.f32.mrf.mxu0
        %v1790 = vadd.f32 %v1741, %v1789
        %1791 = vmatmul.bf16.gmra.mxu0 %v918
        %v1792 = vpop.f32.mrf.mxu0
        %v1793 = vadd.f32 %v1744, %v1792
        %v1794 = vpop.f32.mrf.mxu0
        %v1795 = vadd.f32 %v1746, %v1794
        %1796 = vdwg.mxu0
        %1797 = vmatpush.bf16.msra.mxu0 %v1535
        %1798 = vmatpush.bf16.msra.mxu0 %v1531
        %1799 = vmatpush.bf16.msra.mxu0 %v1527
        %1800 = vmatpush.bf16.msra.mxu0 %v1523
        %1801 = vmatpush.bf16.msra.mxu0 %v1519
        %1802 = vmatpush.bf16.msra.mxu0 %v1515
        %1803 = vmatpush.bf16.msra.mxu0 %v1511
        %1804 = vmatpush.bf16.msra.mxu0 %v1507
        %1805 = vmatmul.bf16.gmra.mxu0 %v891
        %v1806 = vpop.f32.mrf.mxu0
        %v1807 = vadd.f32 %v1758, %v1806
        %v1808 = vpop.f32.mrf.mxu0
        %v1809 = vadd.f32 %v1760, %v1808
        %1810 = vmatmul.bf16.gmra.mxu0 %v895
        %v1811 = vpop.f32.mrf.mxu0
        %v1812 = vadd.f32 %v1763, %v1811
        %v1813 = vpop.f32.mrf.mxu0
        %v1814 = vadd.f32 %v1765, %v1813
        %1815 = vmatmul.bf16.gmra.mxu0 %v899
        %v1816 = vpop.f32.mrf.mxu0
        %v1817 = vadd.f32 %v1768, %v1816
        %v1818 = vpop.f32.mrf.mxu0
        %v1819 = vadd.f32 %v1770, %v1818
        %1820 = vmatmul.bf16.gmra.mxu0 %v903
        %v1821 = vpop.f32.mrf.mxu0
        %v1822 = vadd.f32 %v1773, %v1821
        %v1823 = vpop.f32.mrf.mxu0
        %v1824 = vadd.f32 %v1775, %v1823
        %1825 = vmatmul.bf16.gmra.mxu0 %v907
        %v1826 = vpop.f32.mrf.mxu0
        %v1827 = vadd.f32 %v1778, %v1826
        %v1828 = vpop.f32.mrf.mxu0
        %v1829 = vadd.f32 %v1780, %v1828
        %1830 = vmatmul.bf16.gmra.mxu0 %v911
        %v1831 = vpop.f32.mrf.mxu0
        %v1832 = vadd.f32 %v1783, %v1831
        %v1833 = vpop.f32.mrf.mxu0
        %v1834 = vadd.f32 %v1785, %v1833
        %1835 = vmatmul.bf16.gmra.mxu0 %v915
        %v1836 = vpop.f32.mrf.mxu0
        %v1837 = vadd.f32 %v1788, %v1836
        %v1838 = vpop.f32.mrf.mxu0
        %v1839 = vadd.f32 %v1790, %v1838
        %1840 = vmatmul.bf16.gmra.mxu0 %v919
        %v1841 = vpop.f32.mrf.mxu0
        %v1842 = vadd.f32 %v1793, %v1841
        %v1843 = vpop.f32.mrf.mxu0
        %v1844 = vadd.f32 %v1795, %v1843
        %1845 = vdwg.mxu0
        %1846 = vmatpush.bf16.msra.mxu0 %v1567
        %1847 = vmatpush.bf16.msra.mxu0 %v1563
        %1848 = vmatpush.bf16.msra.mxu0 %v1559
        %1849 = vmatpush.bf16.msra.mxu0 %v1555
        %1850 = vmatpush.bf16.msra.mxu0 %v1551
        %1851 = vmatpush.bf16.msra.mxu0 %v1547
        %1852 = vmatpush.bf16.msra.mxu0 %v1543
        %1853 = vmatpush.bf16.msra.mxu0 %v1539
        %1854 = vmatmul.bf16.gmra.mxu0 %v892
        %v1855 = vpop.f32.mrf.mxu0
        %v1856 = vadd.f32 %v1807, %v1855
        %v1857 = vpop.f32.mrf.mxu0
        %v1858 = vadd.f32 %v1809, %v1857
        %1859 = vmatmul.bf16.gmra.mxu0 %v896
        %v1860 = vpop.f32.mrf.mxu0
        %v1861 = vadd.f32 %v1812, %v1860
        %v1862 = vpop.f32.mrf.mxu0
        %v1863 = vadd.f32 %v1814, %v1862
        %1864 = vmatmul.bf16.gmra.mxu0 %v900
        %v1865 = vpop.f32.mrf.mxu0
        %v1866 = vadd.f32 %v1817, %v1865
        %v1867 = vpop.f32.mrf.mxu0
        %v1868 = vadd.f32 %v1819, %v1867
        %1869 = vmatmul.bf16.gmra.mxu0 %v904
        %v1870 = vpop.f32.mrf.mxu0
        %v1871 = vadd.f32 %v1822, %v1870
        %v1872 = vpop.f32.mrf.mxu0
        %v1873 = vadd.f32 %v1824, %v1872
        %1874 = vmatmul.bf16.gmra.mxu0 %v908
        %v1875 = vpop.f32.mrf.mxu0
        %v1876 = vadd.f32 %v1827, %v1875
        %v1877 = vpop.f32.mrf.mxu0
        %v1878 = vadd.f32 %v1829, %v1877
        %1879 = vmatmul.bf16.gmra.mxu0 %v912
        %v1880 = vpop.f32.mrf.mxu0
        %v1881 = vadd.f32 %v1832, %v1880
        %v1882 = vpop.f32.mrf.mxu0
        %v1883 = vadd.f32 %v1834, %v1882
        %1884 = vmatmul.bf16.gmra.mxu0 %v916
        %v1885 = vpop.f32.mrf.mxu0
        %v1886 = vadd.f32 %v1837, %v1885
        %v1887 = vpop.f32.mrf.mxu0
        %v1888 = vadd.f32 %v1839, %v1887
        %1889 = vmatmul.bf16.gmra.mxu0 %v920
        %v1890 = vpop.f32.mrf.mxu0
        %v1891 = vadd.f32 %v1842, %v1890
        %v1892 = vpop.f32.mrf.mxu0
        %v1893 = vadd.f32 %v1844, %v1892
        %1894 = vdwg.mxu0
        %1895 = vmatpush.bf16.msra.mxu0 %v1472
        %1896 = vmatpush.bf16.msra.mxu0 %v1468
        %1897 = vmatpush.bf16.msra.mxu0 %v1464
        %1898 = vmatpush.bf16.msra.mxu0 %v1460
        %1899 = vmatpush.bf16.msra.mxu0 %v1456
        %1900 = vmatpush.bf16.msra.mxu0 %v1452
        %1901 = vmatpush.bf16.msra.mxu0 %v1448
        %1902 = vmatpush.bf16.msra.mxu0 %v1444
        %1903 = vmatmul.bf16.gmra.mxu0 %v889
        %v1904 = vpop.f32.mrf.mxu0
        %v1905 = vadd.f32 %v1052, %v1904
        %v1906 = vpop.f32.mrf.mxu0
        %v1907 = vadd.f32 %v1052, %v1906
        %1908 = vmatmul.bf16.gmra.mxu0 %v893
        %v1909 = vpop.f32.mrf.mxu0
        %v1910 = vadd.f32 %v1052, %v1909
        %v1911 = vpop.f32.mrf.mxu0
        %v1912 = vadd.f32 %v1052, %v1911
        %1913 = vmatmul.bf16.gmra.mxu0 %v897
        %v1914 = vpop.f32.mrf.mxu0
        %v1915 = vadd.f32 %v1052, %v1914
        %v1916 = vpop.f32.mrf.mxu0
        %v1917 = vadd.f32 %v1052, %v1916
        %1918 = vmatmul.bf16.gmra.mxu0 %v901
        %v1919 = vpop.f32.mrf.mxu0
        %v1920 = vadd.f32 %v1052, %v1919
        %v1921 = vpop.f32.mrf.mxu0
        %v1922 = vadd.f32 %v1052, %v1921
        %1923 = vmatmul.bf16.gmra.mxu0 %v905
        %v1924 = vpop.f32.mrf.mxu0
        %v1925 = vadd.f32 %v1052, %v1924
        %v1926 = vpop.f32.mrf.mxu0
        %v1927 = vadd.f32 %v1052, %v1926
        %1928 = vmatmul.bf16.gmra.mxu0 %v909
        %v1929 = vpop.f32.mrf.mxu0
        %v1930 = vadd.f32 %v1052, %v1929
        %v1931 = vpop.f32.mrf.mxu0
        %v1932 = vadd.f32 %v1052, %v1931
        %1933 = vmatmul.bf16.gmra.mxu0 %v913
        %v1934 = vpop.f32.mrf.mxu0
        %v1935 = vadd.f32 %v1052, %v1934
        %v1936 = vpop.f32.mrf.mxu0
        %v1937 = vadd.f32 %v1052, %v1936
        %1938 = vmatmul.bf16.gmra.mxu0 %v917
        %v1939 = vpop.f32.mrf.mxu0
        %v1940 = vadd.f32 %v1052, %v1939
        %v1941 = vpop.f32.mrf.mxu0
        %v1942 = vadd.f32 %v1052, %v1941
        %1943 = vdwg.mxu0
        %1944 = vmatpush.bf16.msra.mxu0 %v1504
        %1945 = vmatpush.bf16.msra.mxu0 %v1500
        %1946 = vmatpush.bf16.msra.mxu0 %v1496
        %1947 = vmatpush.bf16.msra.mxu0 %v1492
        %1948 = vmatpush.bf16.msra.mxu0 %v1488
        %1949 = vmatpush.bf16.msra.mxu0 %v1484
        %1950 = vmatpush.bf16.msra.mxu0 %v1480
        %1951 = vmatpush.bf16.msra.mxu0 %v1476
        %1952 = vmatmul.bf16.gmra.mxu0 %v890
        %v1953 = vpop.f32.mrf.mxu0
        %v1954 = vadd.f32 %v1905, %v1953
        %v1955 = vpop.f32.mrf.mxu0
        %v1956 = vadd.f32 %v1907, %v1955
        %1957 = vmatmul.bf16.gmra.mxu0 %v894
        %v1958 = vpop.f32.mrf.mxu0
        %v1959 = vadd.f32 %v1910, %v1958
        %v1960 = vpop.f32.mrf.mxu0
        %v1961 = vadd.f32 %v1912, %v1960
        %1962 = vmatmul.bf16.gmra.mxu0 %v898
        %v1963 = vpop.f32.mrf.mxu0
        %v1964 = vadd.f32 %v1915, %v1963
        %v1965 = vpop.f32.mrf.mxu0
        %v1966 = vadd.f32 %v1917, %v1965
        %1967 = vmatmul.bf16.gmra.mxu0 %v902
        %v1968 = vpop.f32.mrf.mxu0
        %v1969 = vadd.f32 %v1920, %v1968
        %v1970 = vpop.f32.mrf.mxu0
        %v1971 = vadd.f32 %v1922, %v1970
        %1972 = vmatmul.bf16.gmra.mxu0 %v906
        %v1973 = vpop.f32.mrf.mxu0
        %v1974 = vadd.f32 %v1925, %v1973
        %v1975 = vpop.f32.mrf.mxu0
        %v1976 = vadd.f32 %v1927, %v1975
        %1977 = vmatmul.bf16.gmra.mxu0 %v910
        %v1978 = vpop.f32.mrf.mxu0
        %v1979 = vadd.f32 %v1930, %v1978
        %v1980 = vpop.f32.mrf.mxu0
        %v1981 = vadd.f32 %v1932, %v1980
        %1982 = vmatmul.bf16.gmra.mxu0 %v914
        %v1983 = vpop.f32.mrf.mxu0
        %v1984 = vadd.f32 %v1935, %v1983
        %v1985 = vpop.f32.mrf.mxu0
        %v1986 = vadd.f32 %v1937, %v1985
        %1987 = vmatmul.bf16.gmra.mxu0 %v918
        %v1988 = vpop.f32.mrf.mxu0
        %v1989 = vadd.f32 %v1940, %v1988
        %v1990 = vpop.f32.mrf.mxu0
        %v1991 = vadd.f32 %v1942, %v1990
        %1992 = vdwg.mxu0
        %1993 = vmatpush.bf16.msra.mxu0 %v1536
        %1994 = vmatpush.bf16.msra.mxu0 %v1532
        %1995 = vmatpush.bf16.msra.mxu0 %v1528
        %1996 = vmatpush.bf16.msra.mxu0 %v1524
        %1997 = vmatpush.bf16.msra.mxu0 %v1520
        %1998 = vmatpush.bf16.msra.mxu0 %v1516
        %1999 = vmatpush.bf16.msra.mxu0 %v1512
        %2000 = vmatpush.bf16.msra.mxu0 %v1508
        %2001 = vmatmul.bf16.gmra.mxu0 %v891
        %v2002 = vpop.f32.mrf.mxu0
        %v2003 = vadd.f32 %v1954, %v2002
        %v2004 = vpop.f32.mrf.mxu0
        %v2005 = vadd.f32 %v1956, %v2004
        %2006 = vmatmul.bf16.gmra.mxu0 %v895
        %v2007 = vpop.f32.mrf.mxu0
        %v2008 = vadd.f32 %v1959, %v2007
        %v2009 = vpop.f32.mrf.mxu0
        %v2010 = vadd.f32 %v1961, %v2009
        %2011 = vmatmul.bf16.gmra.mxu0 %v899
        %v2012 = vpop.f32.mrf.mxu0
        %v2013 = vadd.f32 %v1964, %v2012
        %v2014 = vpop.f32.mrf.mxu0
        %v2015 = vadd.f32 %v1966, %v2014
        %2016 = vmatmul.bf16.gmra.mxu0 %v903
        %v2017 = vpop.f32.mrf.mxu0
        %v2018 = vadd.f32 %v1969, %v2017
        %v2019 = vpop.f32.mrf.mxu0
        %v2020 = vadd.f32 %v1971, %v2019
        %2021 = vmatmul.bf16.gmra.mxu0 %v907
        %v2022 = vpop.f32.mrf.mxu0
        %v2023 = vadd.f32 %v1974, %v2022
        %v2024 = vpop.f32.mrf.mxu0
        %v2025 = vadd.f32 %v1976, %v2024
        %2026 = vmatmul.bf16.gmra.mxu0 %v911
        %v2027 = vpop.f32.mrf.mxu0
        %v2028 = vadd.f32 %v1979, %v2027
        %v2029 = vpop.f32.mrf.mxu0
        %v2030 = vadd.f32 %v1981, %v2029
        %2031 = vmatmul.bf16.gmra.mxu0 %v915
        %v2032 = vpop.f32.mrf.mxu0
        %v2033 = vadd.f32 %v1984, %v2032
        %v2034 = vpop.f32.mrf.mxu0
        %v2035 = vadd.f32 %v1986, %v2034
        %2036 = vmatmul.bf16.gmra.mxu0 %v919
        %v2037 = vpop.f32.mrf.mxu0
        %v2038 = vadd.f32 %v1989, %v2037
        %v2039 = vpop.f32.mrf.mxu0
        %v2040 = vadd.f32 %v1991, %v2039
        %2041 = vdwg.mxu0
        %2042 = vmatpush.bf16.msra.mxu0 %v1568
        %2043 = vmatpush.bf16.msra.mxu0 %v1564
        %2044 = vmatpush.bf16.msra.mxu0 %v1560
        %2045 = vmatpush.bf16.msra.mxu0 %v1556
        %2046 = vmatpush.bf16.msra.mxu0 %v1552
        %2047 = vmatpush.bf16.msra.mxu0 %v1548
        %2048 = vmatpush.bf16.msra.mxu0 %v1544
        %2049 = vmatpush.bf16.msra.mxu0 %v1540
        %2050 = vmatmul.bf16.gmra.mxu0 %v892
        %v2051 = vpop.f32.mrf.mxu0
        %v2052 = vadd.f32 %v2003, %v2051
        %v2053 = vpop.f32.mrf.mxu0
        %v2054 = vadd.f32 %v2005, %v2053
        %2055 = vmatmul.bf16.gmra.mxu0 %v896
        %v2056 = vpop.f32.mrf.mxu0
        %v2057 = vadd.f32 %v2008, %v2056
        %v2058 = vpop.f32.mrf.mxu0
        %v2059 = vadd.f32 %v2010, %v2058
        %2060 = vmatmul.bf16.gmra.mxu0 %v900
        %v2061 = vpop.f32.mrf.mxu0
        %v2062 = vadd.f32 %v2013, %v2061
        %v2063 = vpop.f32.mrf.mxu0
        %v2064 = vadd.f32 %v2015, %v2063
        %2065 = vmatmul.bf16.gmra.mxu0 %v904
        %v2066 = vpop.f32.mrf.mxu0
        %v2067 = vadd.f32 %v2018, %v2066
        %v2068 = vpop.f32.mrf.mxu0
        %v2069 = vadd.f32 %v2020, %v2068
        %2070 = vmatmul.bf16.gmra.mxu0 %v908
        %v2071 = vpop.f32.mrf.mxu0
        %v2072 = vadd.f32 %v2023, %v2071
        %v2073 = vpop.f32.mrf.mxu0
        %v2074 = vadd.f32 %v2025, %v2073
        %2075 = vmatmul.bf16.gmra.mxu0 %v912
        %v2076 = vpop.f32.mrf.mxu0
        %v2077 = vadd.f32 %v2028, %v2076
        %v2078 = vpop.f32.mrf.mxu0
        %v2079 = vadd.f32 %v2030, %v2078
        %2080 = vmatmul.bf16.gmra.mxu0 %v916
        %v2081 = vpop.f32.mrf.mxu0
        %v2082 = vadd.f32 %v2033, %v2081
        %v2083 = vpop.f32.mrf.mxu0
        %v2084 = vadd.f32 %v2035, %v2083
        %2085 = vmatmul.bf16.gmra.mxu0 %v920
        %v2086 = vpop.f32.mrf.mxu0
        %v2087 = vadd.f32 %v2038, %v2086
        %v2088 = vpop.f32.mrf.mxu0
        %v2089 = vadd.f32 %v2040, %v2088
        %2090 = vdwg.mxu0
        %2091 = vmatpush.bf16.msra.mxu0 %v1473
        %2092 = vmatpush.bf16.msra.mxu0 %v1469
        %2093 = vmatpush.bf16.msra.mxu0 %v1465
        %2094 = vmatpush.bf16.msra.mxu0 %v1461
        %2095 = vmatpush.bf16.msra.mxu0 %v1457
        %2096 = vmatpush.bf16.msra.mxu0 %v1453
        %2097 = vmatpush.bf16.msra.mxu0 %v1449
        %2098 = vmatpush.bf16.msra.mxu0 %v1445
        %2099 = vmatmul.bf16.gmra.mxu0 %v889
        %v2100 = vpop.f32.mrf.mxu0
        %v2101 = vadd.f32 %v1053, %v2100
        %v2102 = vpop.f32.mrf.mxu0
        %v2103 = vadd.f32 %v1053, %v2102
        %2104 = vmatmul.bf16.gmra.mxu0 %v893
        %v2105 = vpop.f32.mrf.mxu0
        %v2106 = vadd.f32 %v1053, %v2105
        %v2107 = vpop.f32.mrf.mxu0
        %v2108 = vadd.f32 %v1053, %v2107
        %2109 = vmatmul.bf16.gmra.mxu0 %v897
        %v2110 = vpop.f32.mrf.mxu0
        %v2111 = vadd.f32 %v1053, %v2110
        %v2112 = vpop.f32.mrf.mxu0
        %v2113 = vadd.f32 %v1053, %v2112
        %2114 = vmatmul.bf16.gmra.mxu0 %v901
        %v2115 = vpop.f32.mrf.mxu0
        %v2116 = vadd.f32 %v1053, %v2115
        %v2117 = vpop.f32.mrf.mxu0
        %v2118 = vadd.f32 %v1053, %v2117
        %2119 = vmatmul.bf16.gmra.mxu0 %v905
        %v2120 = vpop.f32.mrf.mxu0
        %v2121 = vadd.f32 %v1053, %v2120
        %v2122 = vpop.f32.mrf.mxu0
        %v2123 = vadd.f32 %v1053, %v2122
        %2124 = vmatmul.bf16.gmra.mxu0 %v909
        %v2125 = vpop.f32.mrf.mxu0
        %v2126 = vadd.f32 %v1053, %v2125
        %v2127 = vpop.f32.mrf.mxu0
        %v2128 = vadd.f32 %v1053, %v2127
        %2129 = vmatmul.bf16.gmra.mxu0 %v913
        %v2130 = vpop.f32.mrf.mxu0
        %v2131 = vadd.f32 %v1053, %v2130
        %v2132 = vpop.f32.mrf.mxu0
        %v2133 = vadd.f32 %v1053, %v2132
        %2134 = vmatmul.bf16.gmra.mxu0 %v917
        %v2135 = vpop.f32.mrf.mxu0
        %v2136 = vadd.f32 %v1053, %v2135
        %v2137 = vpop.f32.mrf.mxu0
        %v2138 = vadd.f32 %v1053, %v2137
        %2139 = vdwg.mxu0
        %2140 = vmatpush.bf16.msra.mxu0 %v1505
        %2141 = vmatpush.bf16.msra.mxu0 %v1501
        %2142 = vmatpush.bf16.msra.mxu0 %v1497
        %2143 = vmatpush.bf16.msra.mxu0 %v1493
        %2144 = vmatpush.bf16.msra.mxu0 %v1489
        %2145 = vmatpush.bf16.msra.mxu0 %v1485
        %2146 = vmatpush.bf16.msra.mxu0 %v1481
        %2147 = vmatpush.bf16.msra.mxu0 %v1477
        %2148 = vmatmul.bf16.gmra.mxu0 %v890
        %v2149 = vpop.f32.mrf.mxu0
        %v2150 = vadd.f32 %v2101, %v2149
        %v2151 = vpop.f32.mrf.mxu0
        %v2152 = vadd.f32 %v2103, %v2151
        %2153 = vmatmul.bf16.gmra.mxu0 %v894
        %v2154 = vpop.f32.mrf.mxu0
        %v2155 = vadd.f32 %v2106, %v2154
        %v2156 = vpop.f32.mrf.mxu0
        %v2157 = vadd.f32 %v2108, %v2156
        %2158 = vmatmul.bf16.gmra.mxu0 %v898
        %v2159 = vpop.f32.mrf.mxu0
        %v2160 = vadd.f32 %v2111, %v2159
        %v2161 = vpop.f32.mrf.mxu0
        %v2162 = vadd.f32 %v2113, %v2161
        %2163 = vmatmul.bf16.gmra.mxu0 %v902
        %v2164 = vpop.f32.mrf.mxu0
        %v2165 = vadd.f32 %v2116, %v2164
        %v2166 = vpop.f32.mrf.mxu0
        %v2167 = vadd.f32 %v2118, %v2166
        %2168 = vmatmul.bf16.gmra.mxu0 %v906
        %v2169 = vpop.f32.mrf.mxu0
        %v2170 = vadd.f32 %v2121, %v2169
        %v2171 = vpop.f32.mrf.mxu0
        %v2172 = vadd.f32 %v2123, %v2171
        %2173 = vmatmul.bf16.gmra.mxu0 %v910
        %v2174 = vpop.f32.mrf.mxu0
        %v2175 = vadd.f32 %v2126, %v2174
        %v2176 = vpop.f32.mrf.mxu0
        %v2177 = vadd.f32 %v2128, %v2176
        %2178 = vmatmul.bf16.gmra.mxu0 %v914
        %v2179 = vpop.f32.mrf.mxu0
        %v2180 = vadd.f32 %v2131, %v2179
        %v2181 = vpop.f32.mrf.mxu0
        %v2182 = vadd.f32 %v2133, %v2181
        %2183 = vmatmul.bf16.gmra.mxu0 %v918
        %v2184 = vpop.f32.mrf.mxu0
        %v2185 = vadd.f32 %v2136, %v2184
        %v2186 = vpop.f32.mrf.mxu0
        %v2187 = vadd.f32 %v2138, %v2186
        %2188 = vdwg.mxu0
        %2189 = vmatpush.bf16.msra.mxu0 %v1537
        %2190 = vmatpush.bf16.msra.mxu0 %v1533
        %2191 = vmatpush.bf16.msra.mxu0 %v1529
        %2192 = vmatpush.bf16.msra.mxu0 %v1525
        %2193 = vmatpush.bf16.msra.mxu0 %v1521
        %2194 = vmatpush.bf16.msra.mxu0 %v1517
        %2195 = vmatpush.bf16.msra.mxu0 %v1513
        %2196 = vmatpush.bf16.msra.mxu0 %v1509
        %2197 = vmatmul.bf16.gmra.mxu0 %v891
        %v2198 = vpop.f32.mrf.mxu0
        %v2199 = vadd.f32 %v2150, %v2198
        %v2200 = vpop.f32.mrf.mxu0
        %v2201 = vadd.f32 %v2152, %v2200
        %2202 = vmatmul.bf16.gmra.mxu0 %v895
        %v2203 = vpop.f32.mrf.mxu0
        %v2204 = vadd.f32 %v2155, %v2203
        %v2205 = vpop.f32.mrf.mxu0
        %v2206 = vadd.f32 %v2157, %v2205
        %2207 = vmatmul.bf16.gmra.mxu0 %v899
        %v2208 = vpop.f32.mrf.mxu0
        %v2209 = vadd.f32 %v2160, %v2208
        %v2210 = vpop.f32.mrf.mxu0
        %v2211 = vadd.f32 %v2162, %v2210
        %2212 = vmatmul.bf16.gmra.mxu0 %v903
        %v2213 = vpop.f32.mrf.mxu0
        %v2214 = vadd.f32 %v2165, %v2213
        %v2215 = vpop.f32.mrf.mxu0
        %v2216 = vadd.f32 %v2167, %v2215
        %2217 = vmatmul.bf16.gmra.mxu0 %v907
        %v2218 = vpop.f32.mrf.mxu0
        %v2219 = vadd.f32 %v2170, %v2218
        %v2220 = vpop.f32.mrf.mxu0
        %v2221 = vadd.f32 %v2172, %v2220
        %2222 = vmatmul.bf16.gmra.mxu0 %v911
        %v2223 = vpop.f32.mrf.mxu0
        %v2224 = vadd.f32 %v2175, %v2223
        %v2225 = vpop.f32.mrf.mxu0
        %v2226 = vadd.f32 %v2177, %v2225
        %2227 = vmatmul.bf16.gmra.mxu0 %v915
        %v2228 = vpop.f32.mrf.mxu0
        %v2229 = vadd.f32 %v2180, %v2228
        %v2230 = vpop.f32.mrf.mxu0
        %v2231 = vadd.f32 %v2182, %v2230
        %2232 = vmatmul.bf16.gmra.mxu0 %v919
        %v2233 = vpop.f32.mrf.mxu0
        %v2234 = vadd.f32 %v2185, %v2233
        %v2235 = vpop.f32.mrf.mxu0
        %v2236 = vadd.f32 %v2187, %v2235
        %2237 = vdwg.mxu0
        %2238 = vmatpush.bf16.msra.mxu0 %v1569
        %2239 = vmatpush.bf16.msra.mxu0 %v1565
        %2240 = vmatpush.bf16.msra.mxu0 %v1561
        %2241 = vmatpush.bf16.msra.mxu0 %v1557
        %2242 = vmatpush.bf16.msra.mxu0 %v1553
        %2243 = vmatpush.bf16.msra.mxu0 %v1549
        %2244 = vmatpush.bf16.msra.mxu0 %v1545
        %2245 = vmatpush.bf16.msra.mxu0 %v1541
        %2246 = vmatmul.bf16.gmra.mxu0 %v892
        %v2247 = vpop.f32.mrf.mxu0
        %v2248 = vadd.f32 %v2199, %v2247
        %v2249 = vpop.f32.mrf.mxu0
        %v2250 = vadd.f32 %v2201, %v2249
        %2251 = vmatmul.bf16.gmra.mxu0 %v896
        %v2252 = vpop.f32.mrf.mxu0
        %v2253 = vadd.f32 %v2204, %v2252
        %v2254 = vpop.f32.mrf.mxu0
        %v2255 = vadd.f32 %v2206, %v2254
        %2256 = vmatmul.bf16.gmra.mxu0 %v900
        %v2257 = vpop.f32.mrf.mxu0
        %v2258 = vadd.f32 %v2209, %v2257
        %v2259 = vpop.f32.mrf.mxu0
        %v2260 = vadd.f32 %v2211, %v2259
        %2261 = vmatmul.bf16.gmra.mxu0 %v904
        %v2262 = vpop.f32.mrf.mxu0
        %v2263 = vadd.f32 %v2214, %v2262
        %v2264 = vpop.f32.mrf.mxu0
        %v2265 = vadd.f32 %v2216, %v2264
        %2266 = vmatmul.bf16.gmra.mxu0 %v908
        %v2267 = vpop.f32.mrf.mxu0
        %v2268 = vadd.f32 %v2219, %v2267
        %v2269 = vpop.f32.mrf.mxu0
        %v2270 = vadd.f32 %v2221, %v2269
        %2271 = vmatmul.bf16.gmra.mxu0 %v912
        %v2272 = vpop.f32.mrf.mxu0
        %v2273 = vadd.f32 %v2224, %v2272
        %v2274 = vpop.f32.mrf.mxu0
        %v2275 = vadd.f32 %v2226, %v2274
        %2276 = vmatmul.bf16.gmra.mxu0 %v916
        %v2277 = vpop.f32.mrf.mxu0
        %v2278 = vadd.f32 %v2229, %v2277
        %v2279 = vpop.f32.mrf.mxu0
        %v2280 = vadd.f32 %v2231, %v2279
        %2281 = vmatmul.bf16.gmra.mxu0 %v920
        %v2282 = vpop.f32.mrf.mxu0
        %v2283 = vadd.f32 %v2234, %v2282
        %v2284 = vpop.f32.mrf.mxu0
        %v2285 = vadd.f32 %v2236, %v2284
        %2286 = vdwg.mxu0
        %2287 = vmatpush.bf16.msra.mxu0 %v1474
        %2288 = vmatpush.bf16.msra.mxu0 %v1470
        %2289 = vmatpush.bf16.msra.mxu0 %v1466
        %2290 = vmatpush.bf16.msra.mxu0 %v1462
        %2291 = vmatpush.bf16.msra.mxu0 %v1458
        %2292 = vmatpush.bf16.msra.mxu0 %v1454
        %2293 = vmatpush.bf16.msra.mxu0 %v1450
        %2294 = vmatpush.bf16.msra.mxu0 %v1446
        %2295 = vmatmul.bf16.gmra.mxu0 %v889
        %v2296 = vpop.f32.mrf.mxu0
        %v2297 = vadd.f32 %v1054, %v2296
        %v2298 = vpop.f32.mrf.mxu0
        %v2299 = vadd.f32 %v1054, %v2298
        %2300 = vmatmul.bf16.gmra.mxu0 %v893
        %v2301 = vpop.f32.mrf.mxu0
        %v2302 = vadd.f32 %v1054, %v2301
        %v2303 = vpop.f32.mrf.mxu0
        %v2304 = vadd.f32 %v1054, %v2303
        %2305 = vmatmul.bf16.gmra.mxu0 %v897
        %v2306 = vpop.f32.mrf.mxu0
        %v2307 = vadd.f32 %v1054, %v2306
        %v2308 = vpop.f32.mrf.mxu0
        %v2309 = vadd.f32 %v1054, %v2308
        %2310 = vmatmul.bf16.gmra.mxu0 %v901
        %v2311 = vpop.f32.mrf.mxu0
        %v2312 = vadd.f32 %v1054, %v2311
        %v2313 = vpop.f32.mrf.mxu0
        %v2314 = vadd.f32 %v1054, %v2313
        %2315 = vmatmul.bf16.gmra.mxu0 %v905
        %v2316 = vpop.f32.mrf.mxu0
        %v2317 = vadd.f32 %v1054, %v2316
        %v2318 = vpop.f32.mrf.mxu0
        %v2319 = vadd.f32 %v1054, %v2318
        %2320 = vmatmul.bf16.gmra.mxu0 %v909
        %v2321 = vpop.f32.mrf.mxu0
        %v2322 = vadd.f32 %v1054, %v2321
        %v2323 = vpop.f32.mrf.mxu0
        %v2324 = vadd.f32 %v1054, %v2323
        %2325 = vmatmul.bf16.gmra.mxu0 %v913
        %v2326 = vpop.f32.mrf.mxu0
        %v2327 = vadd.f32 %v1054, %v2326
        %v2328 = vpop.f32.mrf.mxu0
        %v2329 = vadd.f32 %v1054, %v2328
        %2330 = vmatmul.bf16.gmra.mxu0 %v917
        %v2331 = vpop.f32.mrf.mxu0
        %v2332 = vadd.f32 %v1054, %v2331
        %v2333 = vpop.f32.mrf.mxu0
        %v2334 = vadd.f32 %v1054, %v2333
        %2335 = vdwg.mxu0
        %2336 = vmatpush.bf16.msra.mxu0 %v1506
        %2337 = vmatpush.bf16.msra.mxu0 %v1502
        %2338 = vmatpush.bf16.msra.mxu0 %v1498
        %2339 = vmatpush.bf16.msra.mxu0 %v1494
        %2340 = vmatpush.bf16.msra.mxu0 %v1490
        %2341 = vmatpush.bf16.msra.mxu0 %v1486
        %2342 = vmatpush.bf16.msra.mxu0 %v1482
        %2343 = vmatpush.bf16.msra.mxu0 %v1478
        %2344 = vmatmul.bf16.gmra.mxu0 %v890
        %v2345 = vpop.f32.mrf.mxu0
        %v2346 = vadd.f32 %v2297, %v2345
        %v2347 = vpop.f32.mrf.mxu0
        %v2348 = vadd.f32 %v2299, %v2347
        %2349 = vmatmul.bf16.gmra.mxu0 %v894
        %v2350 = vpop.f32.mrf.mxu0
        %v2351 = vadd.f32 %v2302, %v2350
        %v2352 = vpop.f32.mrf.mxu0
        %v2353 = vadd.f32 %v2304, %v2352
        %2354 = vmatmul.bf16.gmra.mxu0 %v898
        %v2355 = vpop.f32.mrf.mxu0
        %v2356 = vadd.f32 %v2307, %v2355
        %v2357 = vpop.f32.mrf.mxu0
        %v2358 = vadd.f32 %v2309, %v2357
        %2359 = vmatmul.bf16.gmra.mxu0 %v902
        %v2360 = vpop.f32.mrf.mxu0
        %v2361 = vadd.f32 %v2312, %v2360
        %v2362 = vpop.f32.mrf.mxu0
        %v2363 = vadd.f32 %v2314, %v2362
        %2364 = vmatmul.bf16.gmra.mxu0 %v906
        %v2365 = vpop.f32.mrf.mxu0
        %v2366 = vadd.f32 %v2317, %v2365
        %v2367 = vpop.f32.mrf.mxu0
        %v2368 = vadd.f32 %v2319, %v2367
        %2369 = vmatmul.bf16.gmra.mxu0 %v910
        %v2370 = vpop.f32.mrf.mxu0
        %v2371 = vadd.f32 %v2322, %v2370
        %v2372 = vpop.f32.mrf.mxu0
        %v2373 = vadd.f32 %v2324, %v2372
        %2374 = vmatmul.bf16.gmra.mxu0 %v914
        %v2375 = vpop.f32.mrf.mxu0
        %v2376 = vadd.f32 %v2327, %v2375
        %v2377 = vpop.f32.mrf.mxu0
        %v2378 = vadd.f32 %v2329, %v2377
        %2379 = vmatmul.bf16.gmra.mxu0 %v918
        %v2380 = vpop.f32.mrf.mxu0
        %v2381 = vadd.f32 %v2332, %v2380
        %v2382 = vpop.f32.mrf.mxu0
        %v2383 = vadd.f32 %v2334, %v2382
        %2384 = vdwg.mxu0
        %2385 = vmatpush.bf16.msra.mxu0 %v1538
        %2386 = vmatpush.bf16.msra.mxu0 %v1534
        %2387 = vmatpush.bf16.msra.mxu0 %v1530
        %2388 = vmatpush.bf16.msra.mxu0 %v1526
        %2389 = vmatpush.bf16.msra.mxu0 %v1522
        %2390 = vmatpush.bf16.msra.mxu0 %v1518
        %2391 = vmatpush.bf16.msra.mxu0 %v1514
        %2392 = vmatpush.bf16.msra.mxu0 %v1510
        %2393 = vmatmul.bf16.gmra.mxu0 %v891
        %v2394 = vpop.f32.mrf.mxu0
        %v2395 = vadd.f32 %v2346, %v2394
        %v2396 = vpop.f32.mrf.mxu0
        %v2397 = vadd.f32 %v2348, %v2396
        %2398 = vmatmul.bf16.gmra.mxu0 %v895
        %v2399 = vpop.f32.mrf.mxu0
        %v2400 = vadd.f32 %v2351, %v2399
        %v2401 = vpop.f32.mrf.mxu0
        %v2402 = vadd.f32 %v2353, %v2401
        %2403 = vmatmul.bf16.gmra.mxu0 %v899
        %v2404 = vpop.f32.mrf.mxu0
        %v2405 = vadd.f32 %v2356, %v2404
        %v2406 = vpop.f32.mrf.mxu0
        %v2407 = vadd.f32 %v2358, %v2406
        %2408 = vmatmul.bf16.gmra.mxu0 %v903
        %v2409 = vpop.f32.mrf.mxu0
        %v2410 = vadd.f32 %v2361, %v2409
        %v2411 = vpop.f32.mrf.mxu0
        %v2412 = vadd.f32 %v2363, %v2411
        %2413 = vmatmul.bf16.gmra.mxu0 %v907
        %v2414 = vpop.f32.mrf.mxu0
        %v2415 = vadd.f32 %v2366, %v2414
        %v2416 = vpop.f32.mrf.mxu0
        %v2417 = vadd.f32 %v2368, %v2416
        %2418 = vmatmul.bf16.gmra.mxu0 %v911
        %v2419 = vpop.f32.mrf.mxu0
        %v2420 = vadd.f32 %v2371, %v2419
        %v2421 = vpop.f32.mrf.mxu0
        %v2422 = vadd.f32 %v2373, %v2421
        %2423 = vmatmul.bf16.gmra.mxu0 %v915
        %v2424 = vpop.f32.mrf.mxu0
        %v2425 = vadd.f32 %v2376, %v2424
        %v2426 = vpop.f32.mrf.mxu0
        %v2427 = vadd.f32 %v2378, %v2426
        %2428 = vmatmul.bf16.gmra.mxu0 %v919
        %v2429 = vpop.f32.mrf.mxu0
        %v2430 = vadd.f32 %v2381, %v2429
        %v2431 = vpop.f32.mrf.mxu0
        %v2432 = vadd.f32 %v2383, %v2431
        %2433 = vdwg.mxu0
        %2434 = vmatpush.bf16.msra.mxu0 %v1570
        %2435 = vmatpush.bf16.msra.mxu0 %v1566
        %2436 = vmatpush.bf16.msra.mxu0 %v1562
        %2437 = vmatpush.bf16.msra.mxu0 %v1558
        %2438 = vmatpush.bf16.msra.mxu0 %v1554
        %2439 = vmatpush.bf16.msra.mxu0 %v1550
        %2440 = vmatpush.bf16.msra.mxu0 %v1546
        %2441 = vmatpush.bf16.msra.mxu0 %v1542
        %2442 = vmatmul.bf16.gmra.mxu0 %v892
        %v2443 = vpop.f32.mrf.mxu0
        %v2444 = vadd.f32 %v2395, %v2443
        %v2445 = vpop.f32.mrf.mxu0
        %v2446 = vadd.f32 %v2397, %v2445
        %2447 = vmatmul.bf16.gmra.mxu0 %v896
        %v2448 = vpop.f32.mrf.mxu0
        %v2449 = vadd.f32 %v2400, %v2448
        %v2450 = vpop.f32.mrf.mxu0
        %v2451 = vadd.f32 %v2402, %v2450
        %2452 = vmatmul.bf16.gmra.mxu0 %v900
        %v2453 = vpop.f32.mrf.mxu0
        %v2454 = vadd.f32 %v2405, %v2453
        %v2455 = vpop.f32.mrf.mxu0
        %v2456 = vadd.f32 %v2407, %v2455
        %2457 = vmatmul.bf16.gmra.mxu0 %v904
        %v2458 = vpop.f32.mrf.mxu0
        %v2459 = vadd.f32 %v2410, %v2458
        %v2460 = vpop.f32.mrf.mxu0
        %v2461 = vadd.f32 %v2412, %v2460
        %2462 = vmatmul.bf16.gmra.mxu0 %v908
        %v2463 = vpop.f32.mrf.mxu0
        %v2464 = vadd.f32 %v2415, %v2463
        %v2465 = vpop.f32.mrf.mxu0
        %v2466 = vadd.f32 %v2417, %v2465
        %2467 = vmatmul.bf16.gmra.mxu0 %v912
        %v2468 = vpop.f32.mrf.mxu0
        %v2469 = vadd.f32 %v2420, %v2468
        %v2470 = vpop.f32.mrf.mxu0
        %v2471 = vadd.f32 %v2422, %v2470
        %2472 = vmatmul.bf16.gmra.mxu0 %v916
        %v2473 = vpop.f32.mrf.mxu0
        %v2474 = vadd.f32 %v2425, %v2473
        %v2475 = vpop.f32.mrf.mxu0
        %v2476 = vadd.f32 %v2427, %v2475
        %2477 = vmatmul.bf16.gmra.mxu0 %v920
        %v2478 = vpop.f32.mrf.mxu0
        %v2479 = vadd.f32 %v2430, %v2478
        %v2480 = vpop.f32.mrf.mxu0
        %v2481 = vadd.f32 %v2432, %v2480
        %2482 = vdwg.mxu0
        %v2483 = vtanh.pop %v1856
        %v2484 = vtanh.pop %v2052
        %v2485 = vtanh.pop %v2248
        %v2486 = vtanh.pop %v2444
        %v2487 = vtanh.pop %v1858
        %v2488 = vtanh.pop %v2054
        %v2489 = vtanh.pop %v2250
        %v2490 = vtanh.pop %v2446
        %v2491 = vtanh.pop %v1861
        %v2492 = vtanh.pop %v2057
        %v2493 = vtanh.pop %v2253
        %v2494 = vtanh.pop %v2449
        %v2495 = vtanh.pop %v1863
        %v2496 = vtanh.pop %v2059
        %v2497 = vtanh.pop %v2255
        %v2498 = vtanh.pop %v2451
        %v2499 = vtanh.pop %v1866
        %v2500 = vtanh.pop %v2062
        %v2501 = vtanh.pop %v2258
        %v2502 = vtanh.pop %v2454
        %v2503 = vtanh.pop %v1868
        %v2504 = vtanh.pop %v2064
        %v2505 = vtanh.pop %v2260
        %v2506 = vtanh.pop %v2456
        %v2507 = vtanh.pop %v1871
        %v2508 = vtanh.pop %v2067
        %v2509 = vtanh.pop %v2263
        %v2510 = vtanh.pop %v2459
        %v2511 = vtanh.pop %v1873
        %v2512 = vtanh.pop %v2069
        %v2513 = vtanh.pop %v2265
        %v2514 = vtanh.pop %v2461
        %v2515 = vtanh.pop %v1876
        %v2516 = vtanh.pop %v2072
        %v2517 = vtanh.pop %v2268
        %v2518 = vtanh.pop %v2464
        %v2519 = vtanh.pop %v1878
        %v2520 = vtanh.pop %v2074
        %v2521 = vtanh.pop %v2270
        %v2522 = vtanh.pop %v2466
        %v2523 = vtanh.pop %v1881
        %v2524 = vtanh.pop %v2077
        %v2525 = vtanh.pop %v2273
        %v2526 = vtanh.pop %v2469
        %v2527 = vtanh.pop %v1883
        %v2528 = vtanh.pop %v2079
        %v2529 = vtanh.pop %v2275
        %v2530 = vtanh.pop %v2471
        %v2531 = vtanh.pop %v1886
        %v2532 = vtanh.pop %v2082
        %v2533 = vtanh.pop %v2278
        %v2534 = vtanh.pop %v2474
        %v2535 = vtanh.pop %v1888
        %v2536 = vtanh.pop %v2084
        %v2537 = vtanh.pop %v2280
        %v2538 = vtanh.pop %v2476
        %v2539 = vtanh.pop %v1891
        %v2540 = vtanh.pop %v2087
        %v2541 = vtanh.pop %v2283
        %v2542 = vtanh.pop %v2479
        %v2543 = vtanh.pop %v1893
        %v2544 = vtanh.pop %v2089
        %v2545 = vtanh.pop %v2285
        %v2546 = vtanh.pop %v2481
        %v2547 = vpack.c.bf16 %v2487, %v2483
        %v2548 = vpack.c.bf16 %v2488, %v2484
        %v2549 = vpack.c.bf16 %v2489, %v2485
        %v2550 = vpack.c.bf16 %v2490, %v2486
        %v2551 = vpack.c.bf16 %v2495, %v2491
        %v2552 = vpack.c.bf16 %v2496, %v2492
        %v2553 = vpack.c.bf16 %v2497, %v2493
        %v2554 = vpack.c.bf16 %v2498, %v2494
        %v2555 = vpack.c.bf16 %v2503, %v2499
        %v2556 = vpack.c.bf16 %v2504, %v2500
        %v2557 = vpack.c.bf16 %v2505, %v2501
        %v2558 = vpack.c.bf16 %v2506, %v2502
        %v2559 = vpack.c.bf16 %v2511, %v2507
        %v2560 = vpack.c.bf16 %v2512, %v2508
        %v2561 = vpack.c.bf16 %v2513, %v2509
        %v2562 = vpack.c.bf16 %v2514, %v2510
        %v2563 = vpack.c.bf16 %v2519, %v2515
        %v2564 = vpack.c.bf16 %v2520, %v2516
        %v2565 = vpack.c.bf16 %v2521, %v2517
        %v2566 = vpack.c.bf16 %v2522, %v2518
        %v2567 = vpack.c.bf16 %v2527, %v2523
        %v2568 = vpack.c.bf16 %v2528, %v2524
        %v2569 = vpack.c.bf16 %v2529, %v2525
        %v2570 = vpack.c.bf16 %v2530, %v2526
        %v2571 = vpack.c.bf16 %v2535, %v2531
        %v2572 = vpack.c.bf16 %v2536, %v2532
        %v2573 = vpack.c.bf16 %v2537, %v2533
        %v2574 = vpack.c.bf16 %v2538, %v2534
        %v2575 = vpack.c.bf16 %v2543, %v2539
        %v2576 = vpack.c.bf16 %v2544, %v2540
        %v2577 = vpack.c.bf16 %v2545, %v2541
        %v2578 = vpack.c.bf16 %v2546, %v2542
        %v2579 = vld [vmem:[#allocation7] sm:$0xff]
        %v2580 = vld [vmem:[#allocation7 + $0x8] sm:$0xff]
        %v2581 = vld [vmem:[#allocation7 + $0x10] sm:$0xff]
        %v2582 = vld [vmem:[#allocation7 + $0x18] sm:$0xff]
        %v2583 = vld [vmem:[#allocation7 + $0x20] sm:$0xff]
        %v2584 = vld [vmem:[#allocation7 + $0x28] sm:$0xff]
        %v2585 = vld [vmem:[#allocation7 + $0x30] sm:$0xff]
        %v2586 = vld [vmem:[#allocation7 + $0x38] sm:$0xff]
        %v2587 = vld [vmem:[#allocation7 + $0x40] sm:$0xff]
        %v2588 = vld [vmem:[#allocation7 + $0x48] sm:$0xff]
        %v2589 = vld [vmem:[#allocation7 + $0x50] sm:$0xff]
        %v2590 = vld [vmem:[#allocation7 + $0x58] sm:$0xff]
        %v2591 = vld [vmem:[#allocation7 + $0x60] sm:$0xff]
        %v2592 = vld [vmem:[#allocation7 + $0x68] sm:$0xff]
        %v2593 = vld [vmem:[#allocation7 + $0x70] sm:$0xff]
        %v2594 = vld [vmem:[#allocation7 + $0x78] sm:$0xff]
        %v2595 = vld [vmem:[#allocation7 + $0x80] sm:$0xff]
        %v2596 = vld [vmem:[#allocation7 + $0x88] sm:$0xff]
        %v2597 = vld [vmem:[#allocation7 + $0x90] sm:$0xff]
        %v2598 = vld [vmem:[#allocation7 + $0x98] sm:$0xff]
        %v2599 = vld [vmem:[#allocation7 + $0xa0] sm:$0xff]
        %v2600 = vld [vmem:[#allocation7 + $0xa8] sm:$0xff]
        %v2601 = vld [vmem:[#allocation7 + $0xb0] sm:$0xff]
        %v2602 = vld [vmem:[#allocation7 + $0xb8] sm:$0xff]
        %v2603 = vld [vmem:[#allocation7 + $0xc0] sm:$0xff]
        %v2604 = vld [vmem:[#allocation7 + $0xc8] sm:$0xff]
        %v2605 = vld [vmem:[#allocation7 + $0xd0] sm:$0xff]
        %v2606 = vld [vmem:[#allocation7 + $0xd8] sm:$0xff]
        %v2607 = vld [vmem:[#allocation7 + $0xe0] sm:$0xff]
        %v2608 = vld [vmem:[#allocation7 + $0xe8] sm:$0xff]
        %v2609 = vld [vmem:[#allocation7 + $0xf0] sm:$0xff]
        %v2610 = vld [vmem:[#allocation7 + $0xf8] sm:$0xff]
        %v2611 = vld [vmem:[#allocation7 + $0x100] sm:$0xff]
        %v2612 = vld [vmem:[#allocation7 + $0x108] sm:$0xff]
        %v2613 = vld [vmem:[#allocation7 + $0x110] sm:$0xff]
        %v2614 = vld [vmem:[#allocation7 + $0x118] sm:$0xff]
        %v2615 = vld [vmem:[#allocation7 + $0x120] sm:$0xff]
        %v2616 = vld [vmem:[#allocation7 + $0x128] sm:$0xff]
        %v2617 = vld [vmem:[#allocation7 + $0x130] sm:$0xff]
        %v2618 = vld [vmem:[#allocation7 + $0x138] sm:$0xff]
        %v2619 = vld [vmem:[#allocation7 + $0x140] sm:$0xff]
        %v2620 = vld [vmem:[#allocation7 + $0x148] sm:$0xff]
        %v2621 = vld [vmem:[#allocation7 + $0x150] sm:$0xff]
        %v2622 = vld [vmem:[#allocation7 + $0x158] sm:$0xff]
        %v2623 = vld [vmem:[#allocation7 + $0x160] sm:$0xff]
        %v2624 = vld [vmem:[#allocation7 + $0x168] sm:$0xff]
        %v2625 = vld [vmem:[#allocation7 + $0x170] sm:$0xff]
        %v2626 = vld [vmem:[#allocation7 + $0x178] sm:$0xff]
        %v2627 = vld [vmem:[#allocation7 + $0x180] sm:$0xff]
        %v2628 = vld [vmem:[#allocation7 + $0x188] sm:$0xff]
        %v2629 = vld [vmem:[#allocation7 + $0x190] sm:$0xff]
        %v2630 = vld [vmem:[#allocation7 + $0x198] sm:$0xff]
        %v2631 = vld [vmem:[#allocation7 + $0x1a0] sm:$0xff]
        %v2632 = vld [vmem:[#allocation7 + $0x1a8] sm:$0xff]
        %v2633 = vld [vmem:[#allocation7 + $0x1b0] sm:$0xff]
        %v2634 = vld [vmem:[#allocation7 + $0x1b8] sm:$0xff]
        %v2635 = vld [vmem:[#allocation7 + $0x1c0] sm:$0xff]
        %v2636 = vld [vmem:[#allocation7 + $0x1c8] sm:$0xff]
        %v2637 = vld [vmem:[#allocation7 + $0x1d0] sm:$0xff]
        %v2638 = vld [vmem:[#allocation7 + $0x1d8] sm:$0xff]
        %v2639 = vld [vmem:[#allocation7 + $0x1e0] sm:$0xff]
        %v2640 = vld [vmem:[#allocation7 + $0x1e8] sm:$0xff]
        %v2641 = vld [vmem:[#allocation7 + $0x1f0] sm:$0xff]
        %v2642 = vld [vmem:[#allocation7 + $0x1f8] sm:$0xff]
        %v2643 = vld [vmem:[#allocation7 + $0x200] sm:$0xff]
        %v2644 = vld [vmem:[#allocation7 + $0x208] sm:$0xff]
        %v2645 = vld [vmem:[#allocation7 + $0x210] sm:$0xff]
        %v2646 = vld [vmem:[#allocation7 + $0x218] sm:$0xff]
        %v2647 = vld [vmem:[#allocation7 + $0x220] sm:$0xff]
        %v2648 = vld [vmem:[#allocation7 + $0x228] sm:$0xff]
        %v2649 = vld [vmem:[#allocation7 + $0x230] sm:$0xff]
        %v2650 = vld [vmem:[#allocation7 + $0x238] sm:$0xff]
        %v2651 = vld [vmem:[#allocation7 + $0x240] sm:$0xff]
        %v2652 = vld [vmem:[#allocation7 + $0x248] sm:$0xff]
        %v2653 = vld [vmem:[#allocation7 + $0x250] sm:$0xff]
        %v2654 = vld [vmem:[#allocation7 + $0x258] sm:$0xff]
        %v2655 = vld [vmem:[#allocation7 + $0x260] sm:$0xff]
        %v2656 = vld [vmem:[#allocation7 + $0x268] sm:$0xff]
        %v2657 = vld [vmem:[#allocation7 + $0x270] sm:$0xff]
        %v2658 = vld [vmem:[#allocation7 + $0x278] sm:$0xff]
        %v2659 = vld [vmem:[#allocation7 + $0x280] sm:$0xff]
        %v2660 = vld [vmem:[#allocation7 + $0x288] sm:$0xff]
        %v2661 = vld [vmem:[#allocation7 + $0x290] sm:$0xff]
        %v2662 = vld [vmem:[#allocation7 + $0x298] sm:$0xff]
        %v2663 = vld [vmem:[#allocation7 + $0x2a0] sm:$0xff]
        %v2664 = vld [vmem:[#allocation7 + $0x2a8] sm:$0xff]
        %v2665 = vld [vmem:[#allocation7 + $0x2b0] sm:$0xff]
        %v2666 = vld [vmem:[#allocation7 + $0x2b8] sm:$0xff]
        %v2667 = vld [vmem:[#allocation7 + $0x2c0] sm:$0xff]
        %v2668 = vld [vmem:[#allocation7 + $0x2c8] sm:$0xff]
        %v2669 = vld [vmem:[#allocation7 + $0x2d0] sm:$0xff]
        %v2670 = vld [vmem:[#allocation7 + $0x2d8] sm:$0xff]
        %v2671 = vld [vmem:[#allocation7 + $0x2e0] sm:$0xff]
        %v2672 = vld [vmem:[#allocation7 + $0x2e8] sm:$0xff]
        %v2673 = vld [vmem:[#allocation7 + $0x2f0] sm:$0xff]
        %v2674 = vld [vmem:[#allocation7 + $0x2f8] sm:$0xff]
        %v2675 = vld [vmem:[#allocation7 + $0x300] sm:$0xff]
        %v2676 = vld [vmem:[#allocation7 + $0x308] sm:$0xff]
        %v2677 = vld [vmem:[#allocation7 + $0x310] sm:$0xff]
        %v2678 = vld [vmem:[#allocation7 + $0x318] sm:$0xff]
        %v2679 = vld [vmem:[#allocation7 + $0x320] sm:$0xff]
        %v2680 = vld [vmem:[#allocation7 + $0x328] sm:$0xff]
        %v2681 = vld [vmem:[#allocation7 + $0x330] sm:$0xff]
        %v2682 = vld [vmem:[#allocation7 + $0x338] sm:$0xff]
        %v2683 = vld [vmem:[#allocation7 + $0x340] sm:$0xff]
        %v2684 = vld [vmem:[#allocation7 + $0x348] sm:$0xff]
        %v2685 = vld [vmem:[#allocation7 + $0x350] sm:$0xff]
        %v2686 = vld [vmem:[#allocation7 + $0x358] sm:$0xff]
        %v2687 = vld [vmem:[#allocation7 + $0x360] sm:$0xff]
        %v2688 = vld [vmem:[#allocation7 + $0x368] sm:$0xff]
        %v2689 = vld [vmem:[#allocation7 + $0x370] sm:$0xff]
        %v2690 = vld [vmem:[#allocation7 + $0x378] sm:$0xff]
        %v2691 = vld [vmem:[#allocation7 + $0x380] sm:$0xff]
        %v2692 = vld [vmem:[#allocation7 + $0x388] sm:$0xff]
        %v2693 = vld [vmem:[#allocation7 + $0x390] sm:$0xff]
        %v2694 = vld [vmem:[#allocation7 + $0x398] sm:$0xff]
        %v2695 = vld [vmem:[#allocation7 + $0x3a0] sm:$0xff]
        %v2696 = vld [vmem:[#allocation7 + $0x3a8] sm:$0xff]
        %v2697 = vld [vmem:[#allocation7 + $0x3b0] sm:$0xff]
        %v2698 = vld [vmem:[#allocation7 + $0x3b8] sm:$0xff]
        %v2699 = vld [vmem:[#allocation7 + $0x3c0] sm:$0xff]
        %v2700 = vld [vmem:[#allocation7 + $0x3c8] sm:$0xff]
        %v2701 = vld [vmem:[#allocation7 + $0x3d0] sm:$0xff]
        %v2702 = vld [vmem:[#allocation7 + $0x3d8] sm:$0xff]
        %v2703 = vld [vmem:[#allocation7 + $0x3e0] sm:$0xff]
        %v2704 = vld [vmem:[#allocation7 + $0x3e8] sm:$0xff]
        %v2705 = vld [vmem:[#allocation7 + $0x3f0] sm:$0xff]
        %v2706 = vld [vmem:[#allocation7 + $0x3f8] sm:$0xff]
        %v2707 = vld [vmem:[#allocation8] sm:$0xf]
        %v2709 = vperm.slane %v2707, 0
        %v2710 = vperm.slane %v2707, 1
        %v2711 = vperm.slane %v2707, 2
        %v2712 = vperm.slane %v2707, 3
        %v2845 = vunpack.c.l.b16 %v2579
        %v2846 = vunpack.c.h.b16 %v2579
        %v2847 = vunpack.c.l.b16 %v2580
        %v2848 = vunpack.c.h.b16 %v2580
        %v2849 = vunpack.c.l.b16 %v2581
        %v2850 = vunpack.c.h.b16 %v2581
        %v2851 = vunpack.c.l.b16 %v2582
        %v2852 = vunpack.c.h.b16 %v2582
        %v2853 = vunpack.c.l.b16 %v2583
        %v2854 = vunpack.c.h.b16 %v2583
        %v2855 = vunpack.c.l.b16 %v2584
        %v2856 = vunpack.c.h.b16 %v2584
        %v2857 = vunpack.c.l.b16 %v2585
        %v2858 = vunpack.c.h.b16 %v2585
        %v2859 = vunpack.c.l.b16 %v2586
        %v2860 = vunpack.c.h.b16 %v2586
        %v2861 = vunpack.c.l.b16 %v2587
        %v2862 = vunpack.c.h.b16 %v2587
        %v2863 = vunpack.c.l.b16 %v2588
        %v2864 = vunpack.c.h.b16 %v2588
        %v2865 = vunpack.c.l.b16 %v2589
        %v2866 = vunpack.c.h.b16 %v2589
        %v2867 = vunpack.c.l.b16 %v2590
        %v2868 = vunpack.c.h.b16 %v2590
        %v2869 = vunpack.c.l.b16 %v2591
        %v2870 = vunpack.c.h.b16 %v2591
        %v2871 = vunpack.c.l.b16 %v2592
        %v2872 = vunpack.c.h.b16 %v2592
        %v2873 = vunpack.c.l.b16 %v2593
        %v2874 = vunpack.c.h.b16 %v2593
        %v2875 = vunpack.c.l.b16 %v2594
        %v2876 = vunpack.c.h.b16 %v2594
        %v2877 = vunpack.c.l.b16 %v2595
        %v2878 = vunpack.c.h.b16 %v2595
        %v2879 = vunpack.c.l.b16 %v2596
        %v2880 = vunpack.c.h.b16 %v2596
        %v2881 = vunpack.c.l.b16 %v2597
        %v2882 = vunpack.c.h.b16 %v2597
        %v2883 = vunpack.c.l.b16 %v2598
        %v2884 = vunpack.c.h.b16 %v2598
        %v2885 = vunpack.c.l.b16 %v2599
        %v2886 = vunpack.c.h.b16 %v2599
        %v2887 = vunpack.c.l.b16 %v2600
        %v2888 = vunpack.c.h.b16 %v2600
        %v2889 = vunpack.c.l.b16 %v2601
        %v2890 = vunpack.c.h.b16 %v2601
        %v2891 = vunpack.c.l.b16 %v2602
        %v2892 = vunpack.c.h.b16 %v2602
        %v2893 = vunpack.c.l.b16 %v2603
        %v2894 = vunpack.c.h.b16 %v2603
        %v2895 = vunpack.c.l.b16 %v2604
        %v2896 = vunpack.c.h.b16 %v2604
        %v2897 = vunpack.c.l.b16 %v2605
        %v2898 = vunpack.c.h.b16 %v2605
        %v2899 = vunpack.c.l.b16 %v2606
        %v2900 = vunpack.c.h.b16 %v2606
        %v2901 = vunpack.c.l.b16 %v2607
        %v2902 = vunpack.c.h.b16 %v2607
        %v2903 = vunpack.c.l.b16 %v2608
        %v2904 = vunpack.c.h.b16 %v2608
        %v2905 = vunpack.c.l.b16 %v2609
        %v2906 = vunpack.c.h.b16 %v2609
        %v2907 = vunpack.c.l.b16 %v2610
        %v2908 = vunpack.c.h.b16 %v2610
        %v2909 = vunpack.c.l.b16 %v2611
        %v2910 = vunpack.c.h.b16 %v2611
        %v2911 = vunpack.c.l.b16 %v2612
        %v2912 = vunpack.c.h.b16 %v2612
        %v2913 = vunpack.c.l.b16 %v2613
        %v2914 = vunpack.c.h.b16 %v2613
        %v2915 = vunpack.c.l.b16 %v2614
        %v2916 = vunpack.c.h.b16 %v2614
        %v2917 = vunpack.c.l.b16 %v2615
        %v2918 = vunpack.c.h.b16 %v2615
        %v2919 = vunpack.c.l.b16 %v2616
        %v2920 = vunpack.c.h.b16 %v2616
        %v2921 = vunpack.c.l.b16 %v2617
        %v2922 = vunpack.c.h.b16 %v2617
        %v2923 = vunpack.c.l.b16 %v2618
        %v2924 = vunpack.c.h.b16 %v2618
        %v2925 = vunpack.c.l.b16 %v2619
        %v2926 = vunpack.c.h.b16 %v2619
        %v2927 = vunpack.c.l.b16 %v2620
        %v2928 = vunpack.c.h.b16 %v2620
        %v2929 = vunpack.c.l.b16 %v2621
        %v2930 = vunpack.c.h.b16 %v2621
        %v2931 = vunpack.c.l.b16 %v2622
        %v2932 = vunpack.c.h.b16 %v2622
        %v2933 = vunpack.c.l.b16 %v2623
        %v2934 = vunpack.c.h.b16 %v2623
        %v2935 = vunpack.c.l.b16 %v2624
        %v2936 = vunpack.c.h.b16 %v2624
        %v2937 = vunpack.c.l.b16 %v2625
        %v2938 = vunpack.c.h.b16 %v2625
        %v2939 = vunpack.c.l.b16 %v2626
        %v2940 = vunpack.c.h.b16 %v2626
        %v2941 = vunpack.c.l.b16 %v2627
        %v2942 = vunpack.c.h.b16 %v2627
        %v2943 = vunpack.c.l.b16 %v2628
        %v2944 = vunpack.c.h.b16 %v2628
        %v2945 = vunpack.c.l.b16 %v2629
        %v2946 = vunpack.c.h.b16 %v2629
        %v2947 = vunpack.c.l.b16 %v2630
        %v2948 = vunpack.c.h.b16 %v2630
        %v2949 = vunpack.c.l.b16 %v2631
        %v2950 = vunpack.c.h.b16 %v2631
        %v2951 = vunpack.c.l.b16 %v2632
        %v2952 = vunpack.c.h.b16 %v2632
        %v2953 = vunpack.c.l.b16 %v2633
        %v2954 = vunpack.c.h.b16 %v2633
        %v2955 = vunpack.c.l.b16 %v2634
        %v2956 = vunpack.c.h.b16 %v2634
        %v2957 = vunpack.c.l.b16 %v2635
        %v2958 = vunpack.c.h.b16 %v2635
        %v2959 = vunpack.c.l.b16 %v2636
        %v2960 = vunpack.c.h.b16 %v2636
        %v2961 = vunpack.c.l.b16 %v2637
        %v2962 = vunpack.c.h.b16 %v2637
        %v2963 = vunpack.c.l.b16 %v2638
        %v2964 = vunpack.c.h.b16 %v2638
        %v2965 = vunpack.c.l.b16 %v2639
        %v2966 = vunpack.c.h.b16 %v2639
        %v2967 = vunpack.c.l.b16 %v2640
        %v2968 = vunpack.c.h.b16 %v2640
        %v2969 = vunpack.c.l.b16 %v2641
        %v2970 = vunpack.c.h.b16 %v2641
        %v2971 = vunpack.c.l.b16 %v2642
        %v2972 = vunpack.c.h.b16 %v2642
        %v2973 = vunpack.c.l.b16 %v2643
        %v2974 = vunpack.c.h.b16 %v2643
        %v2975 = vunpack.c.l.b16 %v2644
        %v2976 = vunpack.c.h.b16 %v2644
        %v2977 = vunpack.c.l.b16 %v2645
        %v2978 = vunpack.c.h.b16 %v2645
        %v2979 = vunpack.c.l.b16 %v2646
        %v2980 = vunpack.c.h.b16 %v2646
        %v2981 = vunpack.c.l.b16 %v2647
        %v2982 = vunpack.c.h.b16 %v2647
        %v2983 = vunpack.c.l.b16 %v2648
        %v2984 = vunpack.c.h.b16 %v2648
        %v2985 = vunpack.c.l.b16 %v2649
        %v2986 = vunpack.c.h.b16 %v2649
        %v2987 = vunpack.c.l.b16 %v2650
        %v2988 = vunpack.c.h.b16 %v2650
        %v2989 = vunpack.c.l.b16 %v2651
        %v2990 = vunpack.c.h.b16 %v2651
        %v2991 = vunpack.c.l.b16 %v2652
        %v2992 = vunpack.c.h.b16 %v2652
        %v2993 = vunpack.c.l.b16 %v2653
        %v2994 = vunpack.c.h.b16 %v2653
        %v2995 = vunpack.c.l.b16 %v2654
        %v2996 = vunpack.c.h.b16 %v2654
        %v2997 = vunpack.c.l.b16 %v2655
        %v2998 = vunpack.c.h.b16 %v2655
        %v2999 = vunpack.c.l.b16 %v2656
        %v3000 = vunpack.c.h.b16 %v2656
        %v3001 = vunpack.c.l.b16 %v2657
        %v3002 = vunpack.c.h.b16 %v2657
        %v3003 = vunpack.c.l.b16 %v2658
        %v3004 = vunpack.c.h.b16 %v2658
        %v3005 = vunpack.c.l.b16 %v2659
        %v3006 = vunpack.c.h.b16 %v2659
        %v3007 = vunpack.c.l.b16 %v2660
        %v3008 = vunpack.c.h.b16 %v2660
        %v3009 = vunpack.c.l.b16 %v2661
        %v3010 = vunpack.c.h.b16 %v2661
        %v3011 = vunpack.c.l.b16 %v2662
        %v3012 = vunpack.c.h.b16 %v2662
        %v3013 = vunpack.c.l.b16 %v2663
        %v3014 = vunpack.c.h.b16 %v2663
        %v3015 = vunpack.c.l.b16 %v2664
        %v3016 = vunpack.c.h.b16 %v2664
        %v3017 = vunpack.c.l.b16 %v2665
        %v3018 = vunpack.c.h.b16 %v2665
        %v3019 = vunpack.c.l.b16 %v2666
        %v3020 = vunpack.c.h.b16 %v2666
        %v3021 = vunpack.c.l.b16 %v2667
        %v3022 = vunpack.c.h.b16 %v2667
        %v3023 = vunpack.c.l.b16 %v2668
        %v3024 = vunpack.c.h.b16 %v2668
        %v3025 = vunpack.c.l.b16 %v2669
        %v3026 = vunpack.c.h.b16 %v2669
        %v3027 = vunpack.c.l.b16 %v2670
        %v3028 = vunpack.c.h.b16 %v2670
        %v3029 = vunpack.c.l.b16 %v2671
        %v3030 = vunpack.c.h.b16 %v2671
        %v3031 = vunpack.c.l.b16 %v2672
        %v3032 = vunpack.c.h.b16 %v2672
        %v3033 = vunpack.c.l.b16 %v2673
        %v3034 = vunpack.c.h.b16 %v2673
        %v3035 = vunpack.c.l.b16 %v2674
        %v3036 = vunpack.c.h.b16 %v2674
        %v3037 = vunpack.c.l.b16 %v2675
        %v3038 = vunpack.c.h.b16 %v2675
        %v3039 = vunpack.c.l.b16 %v2676
        %v3040 = vunpack.c.h.b16 %v2676
        %v3041 = vunpack.c.l.b16 %v2677
        %v3042 = vunpack.c.h.b16 %v2677
        %v3043 = vunpack.c.l.b16 %v2678
        %v3044 = vunpack.c.h.b16 %v2678
        %v3045 = vunpack.c.l.b16 %v2679
        %v3046 = vunpack.c.h.b16 %v2679
        %v3047 = vunpack.c.l.b16 %v2680
        %v3048 = vunpack.c.h.b16 %v2680
        %v3049 = vunpack.c.l.b16 %v2681
        %v3050 = vunpack.c.h.b16 %v2681
        %v3051 = vunpack.c.l.b16 %v2682
        %v3052 = vunpack.c.h.b16 %v2682
        %v3053 = vunpack.c.l.b16 %v2683
        %v3054 = vunpack.c.h.b16 %v2683
        %v3055 = vunpack.c.l.b16 %v2684
        %v3056 = vunpack.c.h.b16 %v2684
        %v3057 = vunpack.c.l.b16 %v2685
        %v3058 = vunpack.c.h.b16 %v2685
        %v3059 = vunpack.c.l.b16 %v2686
        %v3060 = vunpack.c.h.b16 %v2686
        %v3061 = vunpack.c.l.b16 %v2687
        %v3062 = vunpack.c.h.b16 %v2687
        %v3063 = vunpack.c.l.b16 %v2688
        %v3064 = vunpack.c.h.b16 %v2688
        %v3065 = vunpack.c.l.b16 %v2689
        %v3066 = vunpack.c.h.b16 %v2689
        %v3067 = vunpack.c.l.b16 %v2690
        %v3068 = vunpack.c.h.b16 %v2690
        %v3069 = vunpack.c.l.b16 %v2691
        %v3070 = vunpack.c.h.b16 %v2691
        %v3071 = vunpack.c.l.b16 %v2692
        %v3072 = vunpack.c.h.b16 %v2692
        %v3073 = vunpack.c.l.b16 %v2693
        %v3074 = vunpack.c.h.b16 %v2693
        %v3075 = vunpack.c.l.b16 %v2694
        %v3076 = vunpack.c.h.b16 %v2694
        %v3077 = vunpack.c.l.b16 %v2695
        %v3078 = vunpack.c.h.b16 %v2695
        %v3079 = vunpack.c.l.b16 %v2696
        %v3080 = vunpack.c.h.b16 %v2696
        %v3081 = vunpack.c.l.b16 %v2697
        %v3082 = vunpack.c.h.b16 %v2697
        %v3083 = vunpack.c.l.b16 %v2698
        %v3084 = vunpack.c.h.b16 %v2698
        %v3085 = vunpack.c.l.b16 %v2699
        %v3086 = vunpack.c.h.b16 %v2699
        %v3087 = vunpack.c.l.b16 %v2700
        %v3088 = vunpack.c.h.b16 %v2700
        %v3089 = vunpack.c.l.b16 %v2701
        %v3090 = vunpack.c.h.b16 %v2701
        %v3091 = vunpack.c.l.b16 %v2702
        %v3092 = vunpack.c.h.b16 %v2702
        %v3093 = vunpack.c.l.b16 %v2703
        %v3094 = vunpack.c.h.b16 %v2703
        %v3095 = vunpack.c.l.b16 %v2704
        %v3096 = vunpack.c.h.b16 %v2704
        %v3097 = vunpack.c.l.b16 %v2705
        %v3098 = vunpack.c.h.b16 %v2705
        %v3099 = vunpack.c.l.b16 %v2706
        %v3100 = vunpack.c.h.b16 %v2706
        %v3101 = vpack.c.b16 %v2849, %v2845
        %v3102 = vpack.c.b16 %v2850, %v2846
        %v3103 = vpack.c.b16 %v2851, %v2847
        %v3104 = vpack.c.b16 %v2852, %v2848
        %v3105 = vpack.c.b16 %v2857, %v2853
        %v3106 = vpack.c.b16 %v2858, %v2854
        %v3107 = vpack.c.b16 %v2859, %v2855
        %v3108 = vpack.c.b16 %v2860, %v2856
        %v3109 = vpack.c.b16 %v2865, %v2861
        %v3110 = vpack.c.b16 %v2866, %v2862
        %v3111 = vpack.c.b16 %v2867, %v2863
        %v3112 = vpack.c.b16 %v2868, %v2864
        %v3113 = vpack.c.b16 %v2873, %v2869
        %v3114 = vpack.c.b16 %v2874, %v2870
        %v3115 = vpack.c.b16 %v2875, %v2871
        %v3116 = vpack.c.b16 %v2876, %v2872
        %v3117 = vpack.c.b16 %v2881, %v2877
        %v3118 = vpack.c.b16 %v2882, %v2878
        %v3119 = vpack.c.b16 %v2883, %v2879
        %v3120 = vpack.c.b16 %v2884, %v2880
        %v3121 = vpack.c.b16 %v2889, %v2885
        %v3122 = vpack.c.b16 %v2890, %v2886
        %v3123 = vpack.c.b16 %v2891, %v2887
        %v3124 = vpack.c.b16 %v2892, %v2888
        %v3125 = vpack.c.b16 %v2897, %v2893
        %v3126 = vpack.c.b16 %v2898, %v2894
        %v3127 = vpack.c.b16 %v2899, %v2895
        %v3128 = vpack.c.b16 %v2900, %v2896
        %v3129 = vpack.c.b16 %v2905, %v2901
        %v3130 = vpack.c.b16 %v2906, %v2902
        %v3131 = vpack.c.b16 %v2907, %v2903
        %v3132 = vpack.c.b16 %v2908, %v2904
        %v3133 = vpack.c.b16 %v2913, %v2909
        %v3134 = vpack.c.b16 %v2914, %v2910
        %v3135 = vpack.c.b16 %v2915, %v2911
        %v3136 = vpack.c.b16 %v2916, %v2912
        %v3137 = vpack.c.b16 %v2921, %v2917
        %v3138 = vpack.c.b16 %v2922, %v2918
        %v3139 = vpack.c.b16 %v2923, %v2919
        %v3140 = vpack.c.b16 %v2924, %v2920
        %v3141 = vpack.c.b16 %v2929, %v2925
        %v3142 = vpack.c.b16 %v2930, %v2926
        %v3143 = vpack.c.b16 %v2931, %v2927
        %v3144 = vpack.c.b16 %v2932, %v2928
        %v3145 = vpack.c.b16 %v2937, %v2933
        %v3146 = vpack.c.b16 %v2938, %v2934
        %v3147 = vpack.c.b16 %v2939, %v2935
        %v3148 = vpack.c.b16 %v2940, %v2936
        %v3149 = vpack.c.b16 %v2945, %v2941
        %v3150 = vpack.c.b16 %v2946, %v2942
        %v3151 = vpack.c.b16 %v2947, %v2943
        %v3152 = vpack.c.b16 %v2948, %v2944
        %v3153 = vpack.c.b16 %v2953, %v2949
        %v3154 = vpack.c.b16 %v2954, %v2950
        %v3155 = vpack.c.b16 %v2955, %v2951
        %v3156 = vpack.c.b16 %v2956, %v2952
        %v3157 = vpack.c.b16 %v2961, %v2957
        %v3158 = vpack.c.b16 %v2962, %v2958
        %v3159 = vpack.c.b16 %v2963, %v2959
        %v3160 = vpack.c.b16 %v2964, %v2960
        %v3161 = vpack.c.b16 %v2969, %v2965
        %v3162 = vpack.c.b16 %v2970, %v2966
        %v3163 = vpack.c.b16 %v2971, %v2967
        %v3164 = vpack.c.b16 %v2972, %v2968
        %v3165 = vpack.c.b16 %v2977, %v2973
        %v3166 = vpack.c.b16 %v2978, %v2974
        %v3167 = vpack.c.b16 %v2979, %v2975
        %v3168 = vpack.c.b16 %v2980, %v2976
        %v3169 = vpack.c.b16 %v2985, %v2981
        %v3170 = vpack.c.b16 %v2986, %v2982
        %v3171 = vpack.c.b16 %v2987, %v2983
        %v3172 = vpack.c.b16 %v2988, %v2984
        %v3173 = vpack.c.b16 %v2993, %v2989
        %v3174 = vpack.c.b16 %v2994, %v2990
        %v3175 = vpack.c.b16 %v2995, %v2991
        %v3176 = vpack.c.b16 %v2996, %v2992
        %v3177 = vpack.c.b16 %v3001, %v2997
        %v3178 = vpack.c.b16 %v3002, %v2998
        %v3179 = vpack.c.b16 %v3003, %v2999
        %v3180 = vpack.c.b16 %v3004, %v3000
        %v3181 = vpack.c.b16 %v3009, %v3005
        %v3182 = vpack.c.b16 %v3010, %v3006
        %v3183 = vpack.c.b16 %v3011, %v3007
        %v3184 = vpack.c.b16 %v3012, %v3008
        %v3185 = vpack.c.b16 %v3017, %v3013
        %v3186 = vpack.c.b16 %v3018, %v3014
        %v3187 = vpack.c.b16 %v3019, %v3015
        %v3188 = vpack.c.b16 %v3020, %v3016
        %v3189 = vpack.c.b16 %v3025, %v3021
        %v3190 = vpack.c.b16 %v3026, %v3022
        %v3191 = vpack.c.b16 %v3027, %v3023
        %v3192 = vpack.c.b16 %v3028, %v3024
        %v3193 = vpack.c.b16 %v3033, %v3029
        %v3194 = vpack.c.b16 %v3034, %v3030
        %v3195 = vpack.c.b16 %v3035, %v3031
        %v3196 = vpack.c.b16 %v3036, %v3032
        %v3197 = vpack.c.b16 %v3041, %v3037
        %v3198 = vpack.c.b16 %v3042, %v3038
        %v3199 = vpack.c.b16 %v3043, %v3039
        %v3200 = vpack.c.b16 %v3044, %v3040
        %v3201 = vpack.c.b16 %v3049, %v3045
        %v3202 = vpack.c.b16 %v3050, %v3046
        %v3203 = vpack.c.b16 %v3051, %v3047
        %v3204 = vpack.c.b16 %v3052, %v3048
        %v3205 = vpack.c.b16 %v3057, %v3053
        %v3206 = vpack.c.b16 %v3058, %v3054
        %v3207 = vpack.c.b16 %v3059, %v3055
        %v3208 = vpack.c.b16 %v3060, %v3056
        %v3209 = vpack.c.b16 %v3065, %v3061
        %v3210 = vpack.c.b16 %v3066, %v3062
        %v3211 = vpack.c.b16 %v3067, %v3063
        %v3212 = vpack.c.b16 %v3068, %v3064
        %v3213 = vpack.c.b16 %v3073, %v3069
        %v3214 = vpack.c.b16 %v3074, %v3070
        %v3215 = vpack.c.b16 %v3075, %v3071
        %v3216 = vpack.c.b16 %v3076, %v3072
        %v3217 = vpack.c.b16 %v3081, %v3077
        %v3218 = vpack.c.b16 %v3082, %v3078
        %v3219 = vpack.c.b16 %v3083, %v3079
        %v3220 = vpack.c.b16 %v3084, %v3080
        %v3221 = vpack.c.b16 %v3089, %v3085
        %v3222 = vpack.c.b16 %v3090, %v3086
        %v3223 = vpack.c.b16 %v3091, %v3087
        %v3224 = vpack.c.b16 %v3092, %v3088
        %v3225 = vpack.c.b16 %v3097, %v3093
        %v3226 = vpack.c.b16 %v3098, %v3094
        %v3227 = vpack.c.b16 %v3099, %v3095
        %v3228 = vpack.c.b16 %v3100, %v3096
        %3357 = vmatpush.bf16.msra.mxu0 %v3129
        %3358 = vmatpush.bf16.msra.mxu0 %v3125
        %3359 = vmatpush.bf16.msra.mxu0 %v3121
        %3360 = vmatpush.bf16.msra.mxu0 %v3117
        %3361 = vmatpush.bf16.msra.mxu0 %v3113
        %3362 = vmatpush.bf16.msra.mxu0 %v3109
        %3363 = vmatpush.bf16.msra.mxu0 %v3105
        %3364 = vmatpush.bf16.msra.mxu0 %v3101
        %3365 = vmatmul.bf16.gmra.mxu0 %v2547
        %v3366 = vpop.f32.mrf.mxu0
        %v3367 = vadd.f32 %v2709, %v3366
        %v3368 = vpop.f32.mrf.mxu0
        %v3369 = vadd.f32 %v2709, %v3368
        %3370 = vmatmul.bf16.gmra.mxu0 %v2551
        %v3371 = vpop.f32.mrf.mxu0
        %v3372 = vadd.f32 %v2709, %v3371
        %v3373 = vpop.f32.mrf.mxu0
        %v3374 = vadd.f32 %v2709, %v3373
        %3375 = vmatmul.bf16.gmra.mxu0 %v2555
        %v3376 = vpop.f32.mrf.mxu0
        %v3377 = vadd.f32 %v2709, %v3376
        %v3378 = vpop.f32.mrf.mxu0
        %v3379 = vadd.f32 %v2709, %v3378
        %3380 = vmatmul.bf16.gmra.mxu0 %v2559
        %v3381 = vpop.f32.mrf.mxu0
        %v3382 = vadd.f32 %v2709, %v3381
        %v3383 = vpop.f32.mrf.mxu0
        %v3384 = vadd.f32 %v2709, %v3383
        %3385 = vmatmul.bf16.gmra.mxu0 %v2563
        %v3386 = vpop.f32.mrf.mxu0
        %v3387 = vadd.f32 %v2709, %v3386
        %v3388 = vpop.f32.mrf.mxu0
        %v3389 = vadd.f32 %v2709, %v3388
        %3390 = vmatmul.bf16.gmra.mxu0 %v2567
        %v3391 = vpop.f32.mrf.mxu0
        %v3392 = vadd.f32 %v2709, %v3391
        %v3393 = vpop.f32.mrf.mxu0
        %v3394 = vadd.f32 %v2709, %v3393
        %3395 = vmatmul.bf16.gmra.mxu0 %v2571
        %v3396 = vpop.f32.mrf.mxu0
        %v3397 = vadd.f32 %v2709, %v3396
        %v3398 = vpop.f32.mrf.mxu0
        %v3399 = vadd.f32 %v2709, %v3398
        %3400 = vmatmul.bf16.gmra.mxu0 %v2575
        %v3401 = vpop.f32.mrf.mxu0
        %v3402 = vadd.f32 %v2709, %v3401
        %v3403 = vpop.f32.mrf.mxu0
        %v3404 = vadd.f32 %v2709, %v3403
        %3405 = vdwg.mxu0
        %3406 = vmatpush.bf16.msra.mxu0 %v3161
        %3407 = vmatpush.bf16.msra.mxu0 %v3157
        %3408 = vmatpush.bf16.msra.mxu0 %v3153
        %3409 = vmatpush.bf16.msra.mxu0 %v3149
        %3410 = vmatpush.bf16.msra.mxu0 %v3145
        %3411 = vmatpush.bf16.msra.mxu0 %v3141
        %3412 = vmatpush.bf16.msra.mxu0 %v3137
        %3413 = vmatpush.bf16.msra.mxu0 %v3133
        %3414 = vmatmul.bf16.gmra.mxu0 %v2548
        %v3415 = vpop.f32.mrf.mxu0
        %v3416 = vadd.f32 %v3367, %v3415
        %v3417 = vpop.f32.mrf.mxu0
        %v3418 = vadd.f32 %v3369, %v3417
        %3419 = vmatmul.bf16.gmra.mxu0 %v2552
        %v3420 = vpop.f32.mrf.mxu0
        %v3421 = vadd.f32 %v3372, %v3420
        %v3422 = vpop.f32.mrf.mxu0
        %v3423 = vadd.f32 %v3374, %v3422
        %3424 = vmatmul.bf16.gmra.mxu0 %v2556
        %v3425 = vpop.f32.mrf.mxu0
        %v3426 = vadd.f32 %v3377, %v3425
        %v3427 = vpop.f32.mrf.mxu0
        %v3428 = vadd.f32 %v3379, %v3427
        %3429 = vmatmul.bf16.gmra.mxu0 %v2560
        %v3430 = vpop.f32.mrf.mxu0
        %v3431 = vadd.f32 %v3382, %v3430
        %v3432 = vpop.f32.mrf.mxu0
        %v3433 = vadd.f32 %v3384, %v3432
        %3434 = vmatmul.bf16.gmra.mxu0 %v2564
        %v3435 = vpop.f32.mrf.mxu0
        %v3436 = vadd.f32 %v3387, %v3435
        %v3437 = vpop.f32.mrf.mxu0
        %v3438 = vadd.f32 %v3389, %v3437
        %3439 = vmatmul.bf16.gmra.mxu0 %v2568
        %v3440 = vpop.f32.mrf.mxu0
        %v3441 = vadd.f32 %v3392, %v3440
        %v3442 = vpop.f32.mrf.mxu0
        %v3443 = vadd.f32 %v3394, %v3442
        %3444 = vmatmul.bf16.gmra.mxu0 %v2572
        %v3445 = vpop.f32.mrf.mxu0
        %v3446 = vadd.f32 %v3397, %v3445
        %v3447 = vpop.f32.mrf.mxu0
        %v3448 = vadd.f32 %v3399, %v3447
        %3449 = vmatmul.bf16.gmra.mxu0 %v2576
        %v3450 = vpop.f32.mrf.mxu0
        %v3451 = vadd.f32 %v3402, %v3450
        %v3452 = vpop.f32.mrf.mxu0
        %v3453 = vadd.f32 %v3404, %v3452
        %3454 = vdwg.mxu0
        %3455 = vmatpush.bf16.msra.mxu0 %v3193
        %3456 = vmatpush.bf16.msra.mxu0 %v3189
        %3457 = vmatpush.bf16.msra.mxu0 %v3185
        %3458 = vmatpush.bf16.msra.mxu0 %v3181
        %3459 = vmatpush.bf16.msra.mxu0 %v3177
        %3460 = vmatpush.bf16.msra.mxu0 %v3173
        %3461 = vmatpush.bf16.msra.mxu0 %v3169
        %3462 = vmatpush.bf16.msra.mxu0 %v3165
        %3463 = vmatmul.bf16.gmra.mxu0 %v2549
        %v3464 = vpop.f32.mrf.mxu0
        %v3465 = vadd.f32 %v3416, %v3464
        %v3466 = vpop.f32.mrf.mxu0
        %v3467 = vadd.f32 %v3418, %v3466
        %3468 = vmatmul.bf16.gmra.mxu0 %v2553
        %v3469 = vpop.f32.mrf.mxu0
        %v3470 = vadd.f32 %v3421, %v3469
        %v3471 = vpop.f32.mrf.mxu0
        %v3472 = vadd.f32 %v3423, %v3471
        %3473 = vmatmul.bf16.gmra.mxu0 %v2557
        %v3474 = vpop.f32.mrf.mxu0
        %v3475 = vadd.f32 %v3426, %v3474
        %v3476 = vpop.f32.mrf.mxu0
        %v3477 = vadd.f32 %v3428, %v3476
        %3478 = vmatmul.bf16.gmra.mxu0 %v2561
        %v3479 = vpop.f32.mrf.mxu0
        %v3480 = vadd.f32 %v3431, %v3479
        %v3481 = vpop.f32.mrf.mxu0
        %v3482 = vadd.f32 %v3433, %v3481
        %3483 = vmatmul.bf16.gmra.mxu0 %v2565
        %v3484 = vpop.f32.mrf.mxu0
        %v3485 = vadd.f32 %v3436, %v3484
        %v3486 = vpop.f32.mrf.mxu0
        %v3487 = vadd.f32 %v3438, %v3486
        %3488 = vmatmul.bf16.gmra.mxu0 %v2569
        %v3489 = vpop.f32.mrf.mxu0
        %v3490 = vadd.f32 %v3441, %v3489
        %v3491 = vpop.f32.mrf.mxu0
        %v3492 = vadd.f32 %v3443, %v3491
        %3493 = vmatmul.bf16.gmra.mxu0 %v2573
        %v3494 = vpop.f32.mrf.mxu0
        %v3495 = vadd.f32 %v3446, %v3494
        %v3496 = vpop.f32.mrf.mxu0
        %v3497 = vadd.f32 %v3448, %v3496
        %3498 = vmatmul.bf16.gmra.mxu0 %v2577
        %v3499 = vpop.f32.mrf.mxu0
        %v3500 = vadd.f32 %v3451, %v3499
        %v3501 = vpop.f32.mrf.mxu0
        %v3502 = vadd.f32 %v3453, %v3501
        %3503 = vdwg.mxu0
        %3504 = vmatpush.bf16.msra.mxu0 %v3225
        %3505 = vmatpush.bf16.msra.mxu0 %v3221
        %3506 = vmatpush.bf16.msra.mxu0 %v3217
        %3507 = vmatpush.bf16.msra.mxu0 %v3213
        %3508 = vmatpush.bf16.msra.mxu0 %v3209
        %3509 = vmatpush.bf16.msra.mxu0 %v3205
        %3510 = vmatpush.bf16.msra.mxu0 %v3201
        %3511 = vmatpush.bf16.msra.mxu0 %v3197
        %3512 = vmatmul.bf16.gmra.mxu0 %v2550
        %v3513 = vpop.f32.mrf.mxu0
        %v3514 = vadd.f32 %v3465, %v3513
        %v3515 = vpop.f32.mrf.mxu0
        %v3516 = vadd.f32 %v3467, %v3515
        %3517 = vmatmul.bf16.gmra.mxu0 %v2554
        %v3518 = vpop.f32.mrf.mxu0
        %v3519 = vadd.f32 %v3470, %v3518
        %v3520 = vpop.f32.mrf.mxu0
        %v3521 = vadd.f32 %v3472, %v3520
        %3522 = vmatmul.bf16.gmra.mxu0 %v2558
        %v3523 = vpop.f32.mrf.mxu0
        %v3524 = vadd.f32 %v3475, %v3523
        %v3525 = vpop.f32.mrf.mxu0
        %v3526 = vadd.f32 %v3477, %v3525
        %3527 = vmatmul.bf16.gmra.mxu0 %v2562
        %v3528 = vpop.f32.mrf.mxu0
        %v3529 = vadd.f32 %v3480, %v3528
        %v3530 = vpop.f32.mrf.mxu0
        %v3531 = vadd.f32 %v3482, %v3530
        %3532 = vmatmul.bf16.gmra.mxu0 %v2566
        %v3533 = vpop.f32.mrf.mxu0
        %v3534 = vadd.f32 %v3485, %v3533
        %v3535 = vpop.f32.mrf.mxu0
        %v3536 = vadd.f32 %v3487, %v3535
        %3537 = vmatmul.bf16.gmra.mxu0 %v2570
        %v3538 = vpop.f32.mrf.mxu0
        %v3539 = vadd.f32 %v3490, %v3538
        %v3540 = vpop.f32.mrf.mxu0
        %v3541 = vadd.f32 %v3492, %v3540
        %3542 = vmatmul.bf16.gmra.mxu0 %v2574
        %v3543 = vpop.f32.mrf.mxu0
        %v3544 = vadd.f32 %v3495, %v3543
        %v3545 = vpop.f32.mrf.mxu0
        %v3546 = vadd.f32 %v3497, %v3545
        %3547 = vmatmul.bf16.gmra.mxu0 %v2578
        %v3548 = vpop.f32.mrf.mxu0
        %v3549 = vadd.f32 %v3500, %v3548
        %v3550 = vpop.f32.mrf.mxu0
        %v3551 = vadd.f32 %v3502, %v3550
        %3552 = vdwg.mxu0
        %3553 = vmatpush.bf16.msra.mxu0 %v3130
        %3554 = vmatpush.bf16.msra.mxu0 %v3126
        %3555 = vmatpush.bf16.msra.mxu0 %v3122
        %3556 = vmatpush.bf16.msra.mxu0 %v3118
        %3557 = vmatpush.bf16.msra.mxu0 %v3114
        %3558 = vmatpush.bf16.msra.mxu0 %v3110
        %3559 = vmatpush.bf16.msra.mxu0 %v3106
        %3560 = vmatpush.bf16.msra.mxu0 %v3102
        %3561 = vmatmul.bf16.gmra.mxu0 %v2547
        %v3562 = vpop.f32.mrf.mxu0
        %v3563 = vadd.f32 %v2710, %v3562
        %v3564 = vpop.f32.mrf.mxu0
        %v3565 = vadd.f32 %v2710, %v3564
        %3566 = vmatmul.bf16.gmra.mxu0 %v2551
        %v3567 = vpop.f32.mrf.mxu0
        %v3568 = vadd.f32 %v2710, %v3567
        %v3569 = vpop.f32.mrf.mxu0
        %v3570 = vadd.f32 %v2710, %v3569
        %3571 = vmatmul.bf16.gmra.mxu0 %v2555
        %v3572 = vpop.f32.mrf.mxu0
        %v3573 = vadd.f32 %v2710, %v3572
        %v3574 = vpop.f32.mrf.mxu0
        %v3575 = vadd.f32 %v2710, %v3574
        %3576 = vmatmul.bf16.gmra.mxu0 %v2559
        %v3577 = vpop.f32.mrf.mxu0
        %v3578 = vadd.f32 %v2710, %v3577
        %v3579 = vpop.f32.mrf.mxu0
        %v3580 = vadd.f32 %v2710, %v3579
        %3581 = vmatmul.bf16.gmra.mxu0 %v2563
        %v3582 = vpop.f32.mrf.mxu0
        %v3583 = vadd.f32 %v2710, %v3582
        %v3584 = vpop.f32.mrf.mxu0
        %v3585 = vadd.f32 %v2710, %v3584
        %3586 = vmatmul.bf16.gmra.mxu0 %v2567
        %v3587 = vpop.f32.mrf.mxu0
        %v3588 = vadd.f32 %v2710, %v3587
        %v3589 = vpop.f32.mrf.mxu0
        %v3590 = vadd.f32 %v2710, %v3589
        %3591 = vmatmul.bf16.gmra.mxu0 %v2571
        %v3592 = vpop.f32.mrf.mxu0
        %v3593 = vadd.f32 %v2710, %v3592
        %v3594 = vpop.f32.mrf.mxu0
        %v3595 = vadd.f32 %v2710, %v3594
        %3596 = vmatmul.bf16.gmra.mxu0 %v2575
        %v3597 = vpop.f32.mrf.mxu0
        %v3598 = vadd.f32 %v2710, %v3597
        %v3599 = vpop.f32.mrf.mxu0
        %v3600 = vadd.f32 %v2710, %v3599
        %3601 = vdwg.mxu0
        %3602 = vmatpush.bf16.msra.mxu0 %v3162
        %3603 = vmatpush.bf16.msra.mxu0 %v3158
        %3604 = vmatpush.bf16.msra.mxu0 %v3154
        %3605 = vmatpush.bf16.msra.mxu0 %v3150
        %3606 = vmatpush.bf16.msra.mxu0 %v3146
        %3607 = vmatpush.bf16.msra.mxu0 %v3142
        %3608 = vmatpush.bf16.msra.mxu0 %v3138
        %3609 = vmatpush.bf16.msra.mxu0 %v3134
        %3610 = vmatmul.bf16.gmra.mxu0 %v2548
        %v3611 = vpop.f32.mrf.mxu0
        %v3612 = vadd.f32 %v3563, %v3611
        %v3613 = vpop.f32.mrf.mxu0
        %v3614 = vadd.f32 %v3565, %v3613
        %3615 = vmatmul.bf16.gmra.mxu0 %v2552
        %v3616 = vpop.f32.mrf.mxu0
        %v3617 = vadd.f32 %v3568, %v3616
        %v3618 = vpop.f32.mrf.mxu0
        %v3619 = vadd.f32 %v3570, %v3618
        %3620 = vmatmul.bf16.gmra.mxu0 %v2556
        %v3621 = vpop.f32.mrf.mxu0
        %v3622 = vadd.f32 %v3573, %v3621
        %v3623 = vpop.f32.mrf.mxu0
        %v3624 = vadd.f32 %v3575, %v3623
        %3625 = vmatmul.bf16.gmra.mxu0 %v2560
        %v3626 = vpop.f32.mrf.mxu0
        %v3627 = vadd.f32 %v3578, %v3626
        %v3628 = vpop.f32.mrf.mxu0
        %v3629 = vadd.f32 %v3580, %v3628
        %3630 = vmatmul.bf16.gmra.mxu0 %v2564
        %v3631 = vpop.f32.mrf.mxu0
        %v3632 = vadd.f32 %v3583, %v3631
        %v3633 = vpop.f32.mrf.mxu0
        %v3634 = vadd.f32 %v3585, %v3633
        %3635 = vmatmul.bf16.gmra.mxu0 %v2568
        %v3636 = vpop.f32.mrf.mxu0
        %v3637 = vadd.f32 %v3588, %v3636
        %v3638 = vpop.f32.mrf.mxu0
        %v3639 = vadd.f32 %v3590, %v3638
        %3640 = vmatmul.bf16.gmra.mxu0 %v2572
        %v3641 = vpop.f32.mrf.mxu0
        %v3642 = vadd.f32 %v3593, %v3641
        %v3643 = vpop.f32.mrf.mxu0
        %v3644 = vadd.f32 %v3595, %v3643
        %3645 = vmatmul.bf16.gmra.mxu0 %v2576
        %v3646 = vpop.f32.mrf.mxu0
        %v3647 = vadd.f32 %v3598, %v3646
        %v3648 = vpop.f32.mrf.mxu0
        %v3649 = vadd.f32 %v3600, %v3648
        %3650 = vdwg.mxu0
        %3651 = vmatpush.bf16.msra.mxu0 %v3194
        %3652 = vmatpush.bf16.msra.mxu0 %v3190
        %3653 = vmatpush.bf16.msra.mxu0 %v3186
        %3654 = vmatpush.bf16.msra.mxu0 %v3182
        %3655 = vmatpush.bf16.msra.mxu0 %v3178
        %3656 = vmatpush.bf16.msra.mxu0 %v3174
        %3657 = vmatpush.bf16.msra.mxu0 %v3170
        %3658 = vmatpush.bf16.msra.mxu0 %v3166
        %3659 = vmatmul.bf16.gmra.mxu0 %v2549
        %v3660 = vpop.f32.mrf.mxu0
        %v3661 = vadd.f32 %v3612, %v3660
        %v3662 = vpop.f32.mrf.mxu0
        %v3663 = vadd.f32 %v3614, %v3662
        %3664 = vmatmul.bf16.gmra.mxu0 %v2553
        %v3665 = vpop.f32.mrf.mxu0
        %v3666 = vadd.f32 %v3617, %v3665
        %v3667 = vpop.f32.mrf.mxu0
        %v3668 = vadd.f32 %v3619, %v3667
        %3669 = vmatmul.bf16.gmra.mxu0 %v2557
        %v3670 = vpop.f32.mrf.mxu0
        %v3671 = vadd.f32 %v3622, %v3670
        %v3672 = vpop.f32.mrf.mxu0
        %v3673 = vadd.f32 %v3624, %v3672
        %3674 = vmatmul.bf16.gmra.mxu0 %v2561
        %v3675 = vpop.f32.mrf.mxu0
        %v3676 = vadd.f32 %v3627, %v3675
        %v3677 = vpop.f32.mrf.mxu0
        %v3678 = vadd.f32 %v3629, %v3677
        %3679 = vmatmul.bf16.gmra.mxu0 %v2565
        %v3680 = vpop.f32.mrf.mxu0
        %v3681 = vadd.f32 %v3632, %v3680
        %v3682 = vpop.f32.mrf.mxu0
        %v3683 = vadd.f32 %v3634, %v3682
        %3684 = vmatmul.bf16.gmra.mxu0 %v2569
        %v3685 = vpop.f32.mrf.mxu0
        %v3686 = vadd.f32 %v3637, %v3685
        %v3687 = vpop.f32.mrf.mxu0
        %v3688 = vadd.f32 %v3639, %v3687
        %3689 = vmatmul.bf16.gmra.mxu0 %v2573
        %v3690 = vpop.f32.mrf.mxu0
        %v3691 = vadd.f32 %v3642, %v3690
        %v3692 = vpop.f32.mrf.mxu0
        %v3693 = vadd.f32 %v3644, %v3692
        %3694 = vmatmul.bf16.gmra.mxu0 %v2577
        %v3695 = vpop.f32.mrf.mxu0
        %v3696 = vadd.f32 %v3647, %v3695
        %v3697 = vpop.f32.mrf.mxu0
        %v3698 = vadd.f32 %v3649, %v3697
        %3699 = vdwg.mxu0
        %3700 = vmatpush.bf16.msra.mxu0 %v3226
        %3701 = vmatpush.bf16.msra.mxu0 %v3222
        %3702 = vmatpush.bf16.msra.mxu0 %v3218
        %3703 = vmatpush.bf16.msra.mxu0 %v3214
        %3704 = vmatpush.bf16.msra.mxu0 %v3210
        %3705 = vmatpush.bf16.msra.mxu0 %v3206
        %3706 = vmatpush.bf16.msra.mxu0 %v3202
        %3707 = vmatpush.bf16.msra.mxu0 %v3198
        %3708 = vmatmul.bf16.gmra.mxu0 %v2550
        %v3709 = vpop.f32.mrf.mxu0
        %v3710 = vadd.f32 %v3661, %v3709
        %v3711 = vpop.f32.mrf.mxu0
        %v3712 = vadd.f32 %v3663, %v3711
        %3713 = vmatmul.bf16.gmra.mxu0 %v2554
        %v3714 = vpop.f32.mrf.mxu0
        %v3715 = vadd.f32 %v3666, %v3714
        %v3716 = vpop.f32.mrf.mxu0
        %v3717 = vadd.f32 %v3668, %v3716
        %3718 = vmatmul.bf16.gmra.mxu0 %v2558
        %v3719 = vpop.f32.mrf.mxu0
        %v3720 = vadd.f32 %v3671, %v3719
        %v3721 = vpop.f32.mrf.mxu0
        %v3722 = vadd.f32 %v3673, %v3721
        %3723 = vmatmul.bf16.gmra.mxu0 %v2562
        %v3724 = vpop.f32.mrf.mxu0
        %v3725 = vadd.f32 %v3676, %v3724
        %v3726 = vpop.f32.mrf.mxu0
        %v3727 = vadd.f32 %v3678, %v3726
        %3728 = vmatmul.bf16.gmra.mxu0 %v2566
        %v3729 = vpop.f32.mrf.mxu0
        %v3730 = vadd.f32 %v3681, %v3729
        %v3731 = vpop.f32.mrf.mxu0
        %v3732 = vadd.f32 %v3683, %v3731
        %3733 = vmatmul.bf16.gmra.mxu0 %v2570
        %v3734 = vpop.f32.mrf.mxu0
        %v3735 = vadd.f32 %v3686, %v3734
        %v3736 = vpop.f32.mrf.mxu0
        %v3737 = vadd.f32 %v3688, %v3736
        %3738 = vmatmul.bf16.gmra.mxu0 %v2574
        %v3739 = vpop.f32.mrf.mxu0
        %v3740 = vadd.f32 %v3691, %v3739
        %v3741 = vpop.f32.mrf.mxu0
        %v3742 = vadd.f32 %v3693, %v3741
        %3743 = vmatmul.bf16.gmra.mxu0 %v2578
        %v3744 = vpop.f32.mrf.mxu0
        %v3745 = vadd.f32 %v3696, %v3744
        %v3746 = vpop.f32.mrf.mxu0
        %v3747 = vadd.f32 %v3698, %v3746
        %3748 = vdwg.mxu0
        %3749 = vmatpush.bf16.msra.mxu0 %v3131
        %3750 = vmatpush.bf16.msra.mxu0 %v3127
        %3751 = vmatpush.bf16.msra.mxu0 %v3123
        %3752 = vmatpush.bf16.msra.mxu0 %v3119
        %3753 = vmatpush.bf16.msra.mxu0 %v3115
        %3754 = vmatpush.bf16.msra.mxu0 %v3111
        %3755 = vmatpush.bf16.msra.mxu0 %v3107
        %3756 = vmatpush.bf16.msra.mxu0 %v3103
        %3757 = vmatmul.bf16.gmra.mxu0 %v2547
        %v3758 = vpop.f32.mrf.mxu0
        %v3759 = vadd.f32 %v2711, %v3758
        %v3760 = vpop.f32.mrf.mxu0
        %v3761 = vadd.f32 %v2711, %v3760
        %3762 = vmatmul.bf16.gmra.mxu0 %v2551
        %v3763 = vpop.f32.mrf.mxu0
        %v3764 = vadd.f32 %v2711, %v3763
        %v3765 = vpop.f32.mrf.mxu0
        %v3766 = vadd.f32 %v2711, %v3765
        %3767 = vmatmul.bf16.gmra.mxu0 %v2555
        %v3768 = vpop.f32.mrf.mxu0
        %v3769 = vadd.f32 %v2711, %v3768
        %v3770 = vpop.f32.mrf.mxu0
        %v3771 = vadd.f32 %v2711, %v3770
        %3772 = vmatmul.bf16.gmra.mxu0 %v2559
        %v3773 = vpop.f32.mrf.mxu0
        %v3774 = vadd.f32 %v2711, %v3773
        %v3775 = vpop.f32.mrf.mxu0
        %v3776 = vadd.f32 %v2711, %v3775
        %3777 = vmatmul.bf16.gmra.mxu0 %v2563
        %v3778 = vpop.f32.mrf.mxu0
        %v3779 = vadd.f32 %v2711, %v3778
        %v3780 = vpop.f32.mrf.mxu0
        %v3781 = vadd.f32 %v2711, %v3780
        %3782 = vmatmul.bf16.gmra.mxu0 %v2567
        %v3783 = vpop.f32.mrf.mxu0
        %v3784 = vadd.f32 %v2711, %v3783
        %v3785 = vpop.f32.mrf.mxu0
        %v3786 = vadd.f32 %v2711, %v3785
        %3787 = vmatmul.bf16.gmra.mxu0 %v2571
        %v3788 = vpop.f32.mrf.mxu0
        %v3789 = vadd.f32 %v2711, %v3788
        %v3790 = vpop.f32.mrf.mxu0
        %v3791 = vadd.f32 %v2711, %v3790
        %3792 = vmatmul.bf16.gmra.mxu0 %v2575
        %v3793 = vpop.f32.mrf.mxu0
        %v3794 = vadd.f32 %v2711, %v3793
        %v3795 = vpop.f32.mrf.mxu0
        %v3796 = vadd.f32 %v2711, %v3795
        %3797 = vdwg.mxu0
        %3798 = vmatpush.bf16.msra.mxu0 %v3163
        %3799 = vmatpush.bf16.msra.mxu0 %v3159
        %3800 = vmatpush.bf16.msra.mxu0 %v3155
        %3801 = vmatpush.bf16.msra.mxu0 %v3151
        %3802 = vmatpush.bf16.msra.mxu0 %v3147
        %3803 = vmatpush.bf16.msra.mxu0 %v3143
        %3804 = vmatpush.bf16.msra.mxu0 %v3139
        %3805 = vmatpush.bf16.msra.mxu0 %v3135
        %3806 = vmatmul.bf16.gmra.mxu0 %v2548
        %v3807 = vpop.f32.mrf.mxu0
        %v3808 = vadd.f32 %v3759, %v3807
        %v3809 = vpop.f32.mrf.mxu0
        %v3810 = vadd.f32 %v3761, %v3809
        %3811 = vmatmul.bf16.gmra.mxu0 %v2552
        %v3812 = vpop.f32.mrf.mxu0
        %v3813 = vadd.f32 %v3764, %v3812
        %v3814 = vpop.f32.mrf.mxu0
        %v3815 = vadd.f32 %v3766, %v3814
        %3816 = vmatmul.bf16.gmra.mxu0 %v2556
        %v3817 = vpop.f32.mrf.mxu0
        %v3818 = vadd.f32 %v3769, %v3817
        %v3819 = vpop.f32.mrf.mxu0
        %v3820 = vadd.f32 %v3771, %v3819
        %3821 = vmatmul.bf16.gmra.mxu0 %v2560
        %v3822 = vpop.f32.mrf.mxu0
        %v3823 = vadd.f32 %v3774, %v3822
        %v3824 = vpop.f32.mrf.mxu0
        %v3825 = vadd.f32 %v3776, %v3824
        %3826 = vmatmul.bf16.gmra.mxu0 %v2564
        %v3827 = vpop.f32.mrf.mxu0
        %v3828 = vadd.f32 %v3779, %v3827
        %v3829 = vpop.f32.mrf.mxu0
        %v3830 = vadd.f32 %v3781, %v3829
        %3831 = vmatmul.bf16.gmra.mxu0 %v2568
        %v3832 = vpop.f32.mrf.mxu0
        %v3833 = vadd.f32 %v3784, %v3832
        %v3834 = vpop.f32.mrf.mxu0
        %v3835 = vadd.f32 %v3786, %v3834
        %3836 = vmatmul.bf16.gmra.mxu0 %v2572
        %v3837 = vpop.f32.mrf.mxu0
        %v3838 = vadd.f32 %v3789, %v3837
        %v3839 = vpop.f32.mrf.mxu0
        %v3840 = vadd.f32 %v3791, %v3839
        %3841 = vmatmul.bf16.gmra.mxu0 %v2576
        %v3842 = vpop.f32.mrf.mxu0
        %v3843 = vadd.f32 %v3794, %v3842
        %v3844 = vpop.f32.mrf.mxu0
        %v3845 = vadd.f32 %v3796, %v3844
        %3846 = vdwg.mxu0
        %3847 = vmatpush.bf16.msra.mxu0 %v3195
        %3848 = vmatpush.bf16.msra.mxu0 %v3191
        %3849 = vmatpush.bf16.msra.mxu0 %v3187
        %3850 = vmatpush.bf16.msra.mxu0 %v3183
        %3851 = vmatpush.bf16.msra.mxu0 %v3179
        %3852 = vmatpush.bf16.msra.mxu0 %v3175
        %3853 = vmatpush.bf16.msra.mxu0 %v3171
        %3854 = vmatpush.bf16.msra.mxu0 %v3167
        %3855 = vmatmul.bf16.gmra.mxu0 %v2549
        %v3856 = vpop.f32.mrf.mxu0
        %v3857 = vadd.f32 %v3808, %v3856
        %v3858 = vpop.f32.mrf.mxu0
        %v3859 = vadd.f32 %v3810, %v3858
        %3860 = vmatmul.bf16.gmra.mxu0 %v2553
        %v3861 = vpop.f32.mrf.mxu0
        %v3862 = vadd.f32 %v3813, %v3861
        %v3863 = vpop.f32.mrf.mxu0
        %v3864 = vadd.f32 %v3815, %v3863
        %3865 = vmatmul.bf16.gmra.mxu0 %v2557
        %v3866 = vpop.f32.mrf.mxu0
        %v3867 = vadd.f32 %v3818, %v3866
        %v3868 = vpop.f32.mrf.mxu0
        %v3869 = vadd.f32 %v3820, %v3868
        %3870 = vmatmul.bf16.gmra.mxu0 %v2561
        %v3871 = vpop.f32.mrf.mxu0
        %v3872 = vadd.f32 %v3823, %v3871
        %v3873 = vpop.f32.mrf.mxu0
        %v3874 = vadd.f32 %v3825, %v3873
        %3875 = vmatmul.bf16.gmra.mxu0 %v2565
        %v3876 = vpop.f32.mrf.mxu0
        %v3877 = vadd.f32 %v3828, %v3876
        %v3878 = vpop.f32.mrf.mxu0
        %v3879 = vadd.f32 %v3830, %v3878
        %3880 = vmatmul.bf16.gmra.mxu0 %v2569
        %v3881 = vpop.f32.mrf.mxu0
        %v3882 = vadd.f32 %v3833, %v3881
        %v3883 = vpop.f32.mrf.mxu0
        %v3884 = vadd.f32 %v3835, %v3883
        %3885 = vmatmul.bf16.gmra.mxu0 %v2573
        %v3886 = vpop.f32.mrf.mxu0
        %v3887 = vadd.f32 %v3838, %v3886
        %v3888 = vpop.f32.mrf.mxu0
        %v3889 = vadd.f32 %v3840, %v3888
        %3890 = vmatmul.bf16.gmra.mxu0 %v2577
        %v3891 = vpop.f32.mrf.mxu0
        %v3892 = vadd.f32 %v3843, %v3891
        %v3893 = vpop.f32.mrf.mxu0
        %v3894 = vadd.f32 %v3845, %v3893
        %3895 = vdwg.mxu0
        %3896 = vmatpush.bf16.msra.mxu0 %v3227
        %3897 = vmatpush.bf16.msra.mxu0 %v3223
        %3898 = vmatpush.bf16.msra.mxu0 %v3219
        %3899 = vmatpush.bf16.msra.mxu0 %v3215
        %3900 = vmatpush.bf16.msra.mxu0 %v3211
        %3901 = vmatpush.bf16.msra.mxu0 %v3207
        %3902 = vmatpush.bf16.msra.mxu0 %v3203
        %3903 = vmatpush.bf16.msra.mxu0 %v3199
        %3904 = vmatmul.bf16.gmra.mxu0 %v2550
        %v3905 = vpop.f32.mrf.mxu0
        %v3906 = vadd.f32 %v3857, %v3905
        %v3907 = vpop.f32.mrf.mxu0
        %v3908 = vadd.f32 %v3859, %v3907
        %3909 = vmatmul.bf16.gmra.mxu0 %v2554
        %v3910 = vpop.f32.mrf.mxu0
        %v3911 = vadd.f32 %v3862, %v3910
        %v3912 = vpop.f32.mrf.mxu0
        %v3913 = vadd.f32 %v3864, %v3912
        %3914 = vmatmul.bf16.gmra.mxu0 %v2558
        %v3915 = vpop.f32.mrf.mxu0
        %v3916 = vadd.f32 %v3867, %v3915
        %v3917 = vpop.f32.mrf.mxu0
        %v3918 = vadd.f32 %v3869, %v3917
        %3919 = vmatmul.bf16.gmra.mxu0 %v2562
        %v3920 = vpop.f32.mrf.mxu0
        %v3921 = vadd.f32 %v3872, %v3920
        %v3922 = vpop.f32.mrf.mxu0
        %v3923 = vadd.f32 %v3874, %v3922
        %3924 = vmatmul.bf16.gmra.mxu0 %v2566
        %v3925 = vpop.f32.mrf.mxu0
        %v3926 = vadd.f32 %v3877, %v3925
        %v3927 = vpop.f32.mrf.mxu0
        %v3928 = vadd.f32 %v3879, %v3927
        %3929 = vmatmul.bf16.gmra.mxu0 %v2570
        %v3930 = vpop.f32.mrf.mxu0
        %v3931 = vadd.f32 %v3882, %v3930
        %v3932 = vpop.f32.mrf.mxu0
        %v3933 = vadd.f32 %v3884, %v3932
        %3934 = vmatmul.bf16.gmra.mxu0 %v2574
        %v3935 = vpop.f32.mrf.mxu0
        %v3936 = vadd.f32 %v3887, %v3935
        %v3937 = vpop.f32.mrf.mxu0
        %v3938 = vadd.f32 %v3889, %v3937
        %3939 = vmatmul.bf16.gmra.mxu0 %v2578
        %v3940 = vpop.f32.mrf.mxu0
        %v3941 = vadd.f32 %v3892, %v3940
        %v3942 = vpop.f32.mrf.mxu0
        %v3943 = vadd.f32 %v3894, %v3942
        %3944 = vdwg.mxu0
        %3945 = vmatpush.bf16.msra.mxu0 %v3132
        %3946 = vmatpush.bf16.msra.mxu0 %v3128
        %3947 = vmatpush.bf16.msra.mxu0 %v3124
        %3948 = vmatpush.bf16.msra.mxu0 %v3120
        %3949 = vmatpush.bf16.msra.mxu0 %v3116
        %3950 = vmatpush.bf16.msra.mxu0 %v3112
        %3951 = vmatpush.bf16.msra.mxu0 %v3108
        %3952 = vmatpush.bf16.msra.mxu0 %v3104
        %3953 = vmatmul.bf16.gmra.mxu0 %v2547
        %v3954 = vpop.f32.mrf.mxu0
        %v3955 = vadd.f32 %v2712, %v3954
        %v3956 = vpop.f32.mrf.mxu0
        %v3957 = vadd.f32 %v2712, %v3956
        %3958 = vmatmul.bf16.gmra.mxu0 %v2551
        %v3959 = vpop.f32.mrf.mxu0
        %v3960 = vadd.f32 %v2712, %v3959
        %v3961 = vpop.f32.mrf.mxu0
        %v3962 = vadd.f32 %v2712, %v3961
        %3963 = vmatmul.bf16.gmra.mxu0 %v2555
        %v3964 = vpop.f32.mrf.mxu0
        %v3965 = vadd.f32 %v2712, %v3964
        %v3966 = vpop.f32.mrf.mxu0
        %v3967 = vadd.f32 %v2712, %v3966
        %3968 = vmatmul.bf16.gmra.mxu0 %v2559
        %v3969 = vpop.f32.mrf.mxu0
        %v3970 = vadd.f32 %v2712, %v3969
        %v3971 = vpop.f32.mrf.mxu0
        %v3972 = vadd.f32 %v2712, %v3971
        %3973 = vmatmul.bf16.gmra.mxu0 %v2563
        %v3974 = vpop.f32.mrf.mxu0
        %v3975 = vadd.f32 %v2712, %v3974
        %v3976 = vpop.f32.mrf.mxu0
        %v3977 = vadd.f32 %v2712, %v3976
        %3978 = vmatmul.bf16.gmra.mxu0 %v2567
        %v3979 = vpop.f32.mrf.mxu0
        %v3980 = vadd.f32 %v2712, %v3979
        %v3981 = vpop.f32.mrf.mxu0
        %v3982 = vadd.f32 %v2712, %v3981
        %3983 = vmatmul.bf16.gmra.mxu0 %v2571
        %v3984 = vpop.f32.mrf.mxu0
        %v3985 = vadd.f32 %v2712, %v3984
        %v3986 = vpop.f32.mrf.mxu0
        %v3987 = vadd.f32 %v2712, %v3986
        %3988 = vmatmul.bf16.gmra.mxu0 %v2575
        %v3989 = vpop.f32.mrf.mxu0
        %v3990 = vadd.f32 %v2712, %v3989
        %v3991 = vpop.f32.mrf.mxu0
        %v3992 = vadd.f32 %v2712, %v3991
        %3993 = vdwg.mxu0
        %3994 = vmatpush.bf16.msra.mxu0 %v3164
        %3995 = vmatpush.bf16.msra.mxu0 %v3160
        %3996 = vmatpush.bf16.msra.mxu0 %v3156
        %3997 = vmatpush.bf16.msra.mxu0 %v3152
        %3998 = vmatpush.bf16.msra.mxu0 %v3148
        %3999 = vmatpush.bf16.msra.mxu0 %v3144
        %4000 = vmatpush.bf16.msra.mxu0 %v3140
        %4001 = vmatpush.bf16.msra.mxu0 %v3136
        %4002 = vmatmul.bf16.gmra.mxu0 %v2548
        %v4003 = vpop.f32.mrf.mxu0
        %v4004 = vadd.f32 %v3955, %v4003
        %v4005 = vpop.f32.mrf.mxu0
        %v4006 = vadd.f32 %v3957, %v4005
        %4007 = vmatmul.bf16.gmra.mxu0 %v2552
        %v4008 = vpop.f32.mrf.mxu0
        %v4009 = vadd.f32 %v3960, %v4008
        %v4010 = vpop.f32.mrf.mxu0
        %v4011 = vadd.f32 %v3962, %v4010
        %4012 = vmatmul.bf16.gmra.mxu0 %v2556
        %v4013 = vpop.f32.mrf.mxu0
        %v4014 = vadd.f32 %v3965, %v4013
        %v4015 = vpop.f32.mrf.mxu0
        %v4016 = vadd.f32 %v3967, %v4015
        %4017 = vmatmul.bf16.gmra.mxu0 %v2560
        %v4018 = vpop.f32.mrf.mxu0
        %v4019 = vadd.f32 %v3970, %v4018
        %v4020 = vpop.f32.mrf.mxu0
        %v4021 = vadd.f32 %v3972, %v4020
        %4022 = vmatmul.bf16.gmra.mxu0 %v2564
        %v4023 = vpop.f32.mrf.mxu0
        %v4024 = vadd.f32 %v3975, %v4023
        %v4025 = vpop.f32.mrf.mxu0
        %v4026 = vadd.f32 %v3977, %v4025
        %4027 = vmatmul.bf16.gmra.mxu0 %v2568
        %v4028 = vpop.f32.mrf.mxu0
        %v4029 = vadd.f32 %v3980, %v4028
        %v4030 = vpop.f32.mrf.mxu0
        %v4031 = vadd.f32 %v3982, %v4030
        %4032 = vmatmul.bf16.gmra.mxu0 %v2572
        %v4033 = vpop.f32.mrf.mxu0
        %v4034 = vadd.f32 %v3985, %v4033
        %v4035 = vpop.f32.mrf.mxu0
        %v4036 = vadd.f32 %v3987, %v4035
        %4037 = vmatmul.bf16.gmra.mxu0 %v2576
        %v4038 = vpop.f32.mrf.mxu0
        %v4039 = vadd.f32 %v3990, %v4038
        %v4040 = vpop.f32.mrf.mxu0
        %v4041 = vadd.f32 %v3992, %v4040
        %4042 = vdwg.mxu0
        %4043 = vmatpush.bf16.msra.mxu0 %v3196
        %4044 = vmatpush.bf16.msra.mxu0 %v3192
        %4045 = vmatpush.bf16.msra.mxu0 %v3188
        %4046 = vmatpush.bf16.msra.mxu0 %v3184
        %4047 = vmatpush.bf16.msra.mxu0 %v3180
        %4048 = vmatpush.bf16.msra.mxu0 %v3176
        %4049 = vmatpush.bf16.msra.mxu0 %v3172
        %4050 = vmatpush.bf16.msra.mxu0 %v3168
        %4051 = vmatmul.bf16.gmra.mxu0 %v2549
        %v4052 = vpop.f32.mrf.mxu0
        %v4053 = vadd.f32 %v4004, %v4052
        %v4054 = vpop.f32.mrf.mxu0
        %v4055 = vadd.f32 %v4006, %v4054
        %4056 = vmatmul.bf16.gmra.mxu0 %v2553
        %v4057 = vpop.f32.mrf.mxu0
        %v4058 = vadd.f32 %v4009, %v4057
        %v4059 = vpop.f32.mrf.mxu0
        %v4060 = vadd.f32 %v4011, %v4059
        %4061 = vmatmul.bf16.gmra.mxu0 %v2557
        %v4062 = vpop.f32.mrf.mxu0
        %v4063 = vadd.f32 %v4014, %v4062
        %v4064 = vpop.f32.mrf.mxu0
        %v4065 = vadd.f32 %v4016, %v4064
        %4066 = vmatmul.bf16.gmra.mxu0 %v2561
        %v4067 = vpop.f32.mrf.mxu0
        %v4068 = vadd.f32 %v4019, %v4067
        %v4069 = vpop.f32.mrf.mxu0
        %v4070 = vadd.f32 %v4021, %v4069
        %4071 = vmatmul.bf16.gmra.mxu0 %v2565
        %v4072 = vpop.f32.mrf.mxu0
        %v4073 = vadd.f32 %v4024, %v4072
        %v4074 = vpop.f32.mrf.mxu0
        %v4075 = vadd.f32 %v4026, %v4074
        %4076 = vmatmul.bf16.gmra.mxu0 %v2569
        %v4077 = vpop.f32.mrf.mxu0
        %v4078 = vadd.f32 %v4029, %v4077
        %v4079 = vpop.f32.mrf.mxu0
        %v4080 = vadd.f32 %v4031, %v4079
        %4081 = vmatmul.bf16.gmra.mxu0 %v2573
        %v4082 = vpop.f32.mrf.mxu0
        %v4083 = vadd.f32 %v4034, %v4082
        %v4084 = vpop.f32.mrf.mxu0
        %v4085 = vadd.f32 %v4036, %v4084
        %4086 = vmatmul.bf16.gmra.mxu0 %v2577
        %v4087 = vpop.f32.mrf.mxu0
        %v4088 = vadd.f32 %v4039, %v4087
        %v4089 = vpop.f32.mrf.mxu0
        %v4090 = vadd.f32 %v4041, %v4089
        %4091 = vdwg.mxu0
        %4092 = vmatpush.bf16.msra.mxu0 %v3228
        %4093 = vmatpush.bf16.msra.mxu0 %v3224
        %4094 = vmatpush.bf16.msra.mxu0 %v3220
        %4095 = vmatpush.bf16.msra.mxu0 %v3216
        %4096 = vmatpush.bf16.msra.mxu0 %v3212
        %4097 = vmatpush.bf16.msra.mxu0 %v3208
        %4098 = vmatpush.bf16.msra.mxu0 %v3204
        %4099 = vmatpush.bf16.msra.mxu0 %v3200
        %4100 = vmatmul.bf16.gmra.mxu0 %v2550
        %v4101 = vpop.f32.mrf.mxu0
        %v4102 = vadd.f32 %v4053, %v4101
        %v4103 = vpop.f32.mrf.mxu0
        %v4104 = vadd.f32 %v4055, %v4103
        %4105 = vmatmul.bf16.gmra.mxu0 %v2554
        %v4106 = vpop.f32.mrf.mxu0
        %v4107 = vadd.f32 %v4058, %v4106
        %v4108 = vpop.f32.mrf.mxu0
        %v4109 = vadd.f32 %v4060, %v4108
        %4110 = vmatmul.bf16.gmra.mxu0 %v2558
        %v4111 = vpop.f32.mrf.mxu0
        %v4112 = vadd.f32 %v4063, %v4111
        %v4113 = vpop.f32.mrf.mxu0
        %v4114 = vadd.f32 %v4065, %v4113
        %4115 = vmatmul.bf16.gmra.mxu0 %v2562
        %v4116 = vpop.f32.mrf.mxu0
        %v4117 = vadd.f32 %v4068, %v4116
        %v4118 = vpop.f32.mrf.mxu0
        %v4119 = vadd.f32 %v4070, %v4118
        %4120 = vmatmul.bf16.gmra.mxu0 %v2566
        %v4121 = vpop.f32.mrf.mxu0
        %v4122 = vadd.f32 %v4073, %v4121
        %v4123 = vpop.f32.mrf.mxu0
        %v4124 = vadd.f32 %v4075, %v4123
        %4125 = vmatmul.bf16.gmra.mxu0 %v2570
        %v4126 = vpop.f32.mrf.mxu0
        %v4127 = vadd.f32 %v4078, %v4126
        %v4128 = vpop.f32.mrf.mxu0
        %v4129 = vadd.f32 %v4080, %v4128
        %4130 = vmatmul.bf16.gmra.mxu0 %v2574
        %v4131 = vpop.f32.mrf.mxu0
        %v4132 = vadd.f32 %v4083, %v4131
        %v4133 = vpop.f32.mrf.mxu0
        %v4134 = vadd.f32 %v4085, %v4133
        %4135 = vmatmul.bf16.gmra.mxu0 %v2578
        %v4136 = vpop.f32.mrf.mxu0
        %v4137 = vadd.f32 %v4088, %v4136
        %v4138 = vpop.f32.mrf.mxu0
        %v4139 = vadd.f32 %v4090, %v4138
        %4140 = vdwg.mxu0
        %v4141 = vtanh.pop %v3514
        %v4142 = vtanh.pop %v3710
        %v4143 = vtanh.pop %v3906
        %v4144 = vtanh.pop %v4102
        %v4145 = vtanh.pop %v3516
        %v4146 = vtanh.pop %v3712
        %v4147 = vtanh.pop %v3908
        %v4148 = vtanh.pop %v4104
        %v4149 = vtanh.pop %v3519
        %v4150 = vtanh.pop %v3715
        %v4151 = vtanh.pop %v3911
        %v4152 = vtanh.pop %v4107
        %v4153 = vtanh.pop %v3521
        %v4154 = vtanh.pop %v3717
        %v4155 = vtanh.pop %v3913
        %v4156 = vtanh.pop %v4109
        %v4157 = vtanh.pop %v3524
        %v4158 = vtanh.pop %v3720
        %v4159 = vtanh.pop %v3916
        %v4160 = vtanh.pop %v4112
        %v4161 = vtanh.pop %v3526
        %v4162 = vtanh.pop %v3722
        %v4163 = vtanh.pop %v3918
        %v4164 = vtanh.pop %v4114
        %v4165 = vtanh.pop %v3529
        %v4166 = vtanh.pop %v3725
        %v4167 = vtanh.pop %v3921
        %v4168 = vtanh.pop %v4117
        %v4169 = vtanh.pop %v3531
        %v4170 = vtanh.pop %v3727
        %v4171 = vtanh.pop %v3923
        %v4172 = vtanh.pop %v4119
        %v4173 = vtanh.pop %v3534
        %v4174 = vtanh.pop %v3730
        %v4175 = vtanh.pop %v3926
        %v4176 = vtanh.pop %v4122
        %v4177 = vtanh.pop %v3536
        %v4178 = vtanh.pop %v3732
        %v4179 = vtanh.pop %v3928
        %v4180 = vtanh.pop %v4124
        %v4181 = vtanh.pop %v3539
        %v4182 = vtanh.pop %v3735
        %v4183 = vtanh.pop %v3931
        %v4184 = vtanh.pop %v4127
        %v4185 = vtanh.pop %v3541
        %v4186 = vtanh.pop %v3737
        %v4187 = vtanh.pop %v3933
        %v4188 = vtanh.pop %v4129
        %v4189 = vtanh.pop %v3544
        %v4190 = vtanh.pop %v3740
        %v4191 = vtanh.pop %v3936
        %v4192 = vtanh.pop %v4132
        %v4193 = vtanh.pop %v3546
        %v4194 = vtanh.pop %v3742
        %v4195 = vtanh.pop %v3938
        %v4196 = vtanh.pop %v4134
        %v4197 = vtanh.pop %v3549
        %v4198 = vtanh.pop %v3745
        %v4199 = vtanh.pop %v3941
        %v4200 = vtanh.pop %v4137
        %v4201 = vtanh.pop %v3551
        %v4202 = vtanh.pop %v3747
        %v4203 = vtanh.pop %v3943
        %v4204 = vtanh.pop %v4139
        %v4205 = vpack.c.bf16 %v4145, %v4141
        %v4206 = vpack.c.bf16 %v4146, %v4142
        %v4207 = vpack.c.bf16 %v4147, %v4143
        %v4208 = vpack.c.bf16 %v4148, %v4144
        %v4209 = vpack.c.bf16 %v4153, %v4149
        %v4210 = vpack.c.bf16 %v4154, %v4150
        %v4211 = vpack.c.bf16 %v4155, %v4151
        %v4212 = vpack.c.bf16 %v4156, %v4152
        %v4213 = vpack.c.bf16 %v4161, %v4157
        %v4214 = vpack.c.bf16 %v4162, %v4158
        %v4215 = vpack.c.bf16 %v4163, %v4159
        %v4216 = vpack.c.bf16 %v4164, %v4160
        %v4217 = vpack.c.bf16 %v4169, %v4165
        %v4218 = vpack.c.bf16 %v4170, %v4166
        %v4219 = vpack.c.bf16 %v4171, %v4167
        %v4220 = vpack.c.bf16 %v4172, %v4168
        %v4221 = vpack.c.bf16 %v4177, %v4173
        %v4222 = vpack.c.bf16 %v4178, %v4174
        %v4223 = vpack.c.bf16 %v4179, %v4175
        %v4224 = vpack.c.bf16 %v4180, %v4176
        %v4225 = vpack.c.bf16 %v4185, %v4181
        %v4226 = vpack.c.bf16 %v4186, %v4182
        %v4227 = vpack.c.bf16 %v4187, %v4183
        %v4228 = vpack.c.bf16 %v4188, %v4184
        %v4229 = vpack.c.bf16 %v4193, %v4189
        %v4230 = vpack.c.bf16 %v4194, %v4190
        %v4231 = vpack.c.bf16 %v4195, %v4191
        %v4232 = vpack.c.bf16 %v4196, %v4192
        %v4233 = vpack.c.bf16 %v4201, %v4197
        %v4234 = vpack.c.bf16 %v4202, %v4198
        %v4235 = vpack.c.bf16 %v4203, %v4199
        %v4236 = vpack.c.bf16 %v4204, %v4200
        %v4237 = vld [vmem:[%s7] sm:$0xf]
        %v4238 = vld [vmem:[%s7 + $0x4] sm:$0xf]
        %v4239 = vld [vmem:[%s7 + $0x8] sm:$0xf]
        %v4240 = vld [vmem:[%s7 + $0xc] sm:$0xf]
        %v4241 = vld [vmem:[%s7 + $0x10] sm:$0xf]
        %v4242 = vld [vmem:[%s7 + $0x14] sm:$0xf]
        %v4243 = vld [vmem:[%s7 + $0x18] sm:$0xf]
        %v4244 = vld [vmem:[%s7 + $0x1c] sm:$0xf]
        %v4245 = vld [vmem:[%s7 + $0x20] sm:$0xf]
        %v4246 = vld [vmem:[%s7 + $0x24] sm:$0xf]
        %v4247 = vld [vmem:[%s7 + $0x28] sm:$0xf]
        %v4248 = vld [vmem:[%s7 + $0x2c] sm:$0xf]
        %v4249 = vld [vmem:[%s7 + $0x30] sm:$0xf]
        %v4250 = vld [vmem:[%s7 + $0x34] sm:$0xf]
        %v4251 = vld [vmem:[%s7 + $0x38] sm:$0xf]
        %v4252 = vld [vmem:[%s7 + $0x3c] sm:$0xf]
        %v4253 = vld [vmem:[%s7 + $0x40] sm:$0xf]
        %v4254 = vld [vmem:[%s7 + $0x44] sm:$0xf]
        %v4255 = vld [vmem:[%s7 + $0x48] sm:$0xf]
        %v4256 = vld [vmem:[%s7 + $0x4c] sm:$0xf]
        %v4257 = vld [vmem:[%s7 + $0x50] sm:$0xf]
        %v4258 = vld [vmem:[%s7 + $0x54] sm:$0xf]
        %v4259 = vld [vmem:[%s7 + $0x58] sm:$0xf]
        %v4260 = vld [vmem:[%s7 + $0x5c] sm:$0xf]
        %v4261 = vld [vmem:[%s7 + $0x60] sm:$0xf]
        %v4262 = vld [vmem:[%s7 + $0x64] sm:$0xf]
        %v4263 = vld [vmem:[%s7 + $0x68] sm:$0xf]
        %v4264 = vld [vmem:[%s7 + $0x6c] sm:$0xf]
        %v4265 = vld [vmem:[%s7 + $0x70] sm:$0xf]
        %v4266 = vld [vmem:[%s7 + $0x74] sm:$0xf]
        %v4267 = vld [vmem:[%s7 + $0x78] sm:$0xf]
        %v4268 = vld [vmem:[%s7 + $0x7c] sm:$0xf]
        %v4269 = vld [vmem:[%s7 + $0x80] sm:$0xf]
        %v4270 = vld [vmem:[%s7 + $0x84] sm:$0xf]
        %v4271 = vld [vmem:[%s7 + $0x88] sm:$0xf]
        %v4272 = vld [vmem:[%s7 + $0x8c] sm:$0xf]
        %v4273 = vld [vmem:[%s7 + $0x90] sm:$0xf]
        %v4274 = vld [vmem:[%s7 + $0x94] sm:$0xf]
        %v4275 = vld [vmem:[%s7 + $0x98] sm:$0xf]
        %v4276 = vld [vmem:[%s7 + $0x9c] sm:$0xf]
        %v4277 = vld [vmem:[%s7 + $0xa0] sm:$0xf]
        %v4278 = vld [vmem:[%s7 + $0xa4] sm:$0xf]
        %v4279 = vld [vmem:[%s7 + $0xa8] sm:$0xf]
        %v4280 = vld [vmem:[%s7 + $0xac] sm:$0xf]
        %v4281 = vld [vmem:[%s7 + $0xb0] sm:$0xf]
        %v4282 = vld [vmem:[%s7 + $0xb4] sm:$0xf]
        %v4283 = vld [vmem:[%s7 + $0xb8] sm:$0xf]
        %v4284 = vld [vmem:[%s7 + $0xbc] sm:$0xf]
        %v4285 = vld [vmem:[%s7 + $0xc0] sm:$0xf]
        %v4286 = vld [vmem:[%s7 + $0xc4] sm:$0xf]
        %v4287 = vld [vmem:[%s7 + $0xc8] sm:$0xf]
        %v4288 = vld [vmem:[%s7 + $0xcc] sm:$0xf]
        %v4289 = vld [vmem:[%s7 + $0xd0] sm:$0xf]
        %v4290 = vld [vmem:[%s7 + $0xd4] sm:$0xf]
        %v4291 = vld [vmem:[%s7 + $0xd8] sm:$0xf]
        %v4292 = vld [vmem:[%s7 + $0xdc] sm:$0xf]
        %v4293 = vld [vmem:[%s7 + $0xe0] sm:$0xf]
        %v4294 = vld [vmem:[%s7 + $0xe4] sm:$0xf]
        %v4295 = vld [vmem:[%s7 + $0xe8] sm:$0xf]
        %v4296 = vld [vmem:[%s7 + $0xec] sm:$0xf]
        %v4297 = vld [vmem:[%s7 + $0xf0] sm:$0xf]
        %v4298 = vld [vmem:[%s7 + $0xf4] sm:$0xf]
        %v4299 = vld [vmem:[%s7 + $0xf8] sm:$0xf]
        %v4300 = vld [vmem:[%s7 + $0xfc] sm:$0xf]
        %v4301 = vld [vmem:[%s8] sm:$0x1]
        %v4303 = vperm.slane %v4301, 0
        %v4369 = vunpack.c.l.b16 %v4237
        %v4370 = vunpack.c.l.b16 %v4238
        %v4371 = vunpack.c.l.b16 %v4239
        %v4372 = vunpack.c.l.b16 %v4240
        %v4373 = vunpack.c.l.b16 %v4241
        %v4374 = vunpack.c.l.b16 %v4242
        %v4375 = vunpack.c.l.b16 %v4243
        %v4376 = vunpack.c.l.b16 %v4244
        %v4377 = vunpack.c.l.b16 %v4245
        %v4378 = vunpack.c.l.b16 %v4246
        %v4379 = vunpack.c.l.b16 %v4247
        %v4380 = vunpack.c.l.b16 %v4248
        %v4381 = vunpack.c.l.b16 %v4249
        %v4382 = vunpack.c.l.b16 %v4250
        %v4383 = vunpack.c.l.b16 %v4251
        %v4384 = vunpack.c.l.b16 %v4252
        %v4385 = vunpack.c.l.b16 %v4253
        %v4386 = vunpack.c.l.b16 %v4254
        %v4387 = vunpack.c.l.b16 %v4255
        %v4388 = vunpack.c.l.b16 %v4256
        %v4389 = vunpack.c.l.b16 %v4257
        %v4390 = vunpack.c.l.b16 %v4258
        %v4391 = vunpack.c.l.b16 %v4259
        %v4392 = vunpack.c.l.b16 %v4260
        %v4393 = vunpack.c.l.b16 %v4261
        %v4394 = vunpack.c.l.b16 %v4262
        %v4395 = vunpack.c.l.b16 %v4263
        %v4396 = vunpack.c.l.b16 %v4264
        %v4397 = vunpack.c.l.b16 %v4265
        %v4398 = vunpack.c.l.b16 %v4266
        %v4399 = vunpack.c.l.b16 %v4267
        %v4400 = vunpack.c.l.b16 %v4268
        %v4401 = vunpack.c.l.b16 %v4269
        %v4402 = vunpack.c.l.b16 %v4270
        %v4403 = vunpack.c.l.b16 %v4271
        %v4404 = vunpack.c.l.b16 %v4272
        %v4405 = vunpack.c.l.b16 %v4273
        %v4406 = vunpack.c.l.b16 %v4274
        %v4407 = vunpack.c.l.b16 %v4275
        %v4408 = vunpack.c.l.b16 %v4276
        %v4409 = vunpack.c.l.b16 %v4277
        %v4410 = vunpack.c.l.b16 %v4278
        %v4411 = vunpack.c.l.b16 %v4279
        %v4412 = vunpack.c.l.b16 %v4280
        %v4413 = vunpack.c.l.b16 %v4281
        %v4414 = vunpack.c.l.b16 %v4282
        %v4415 = vunpack.c.l.b16 %v4283
        %v4416 = vunpack.c.l.b16 %v4284
        %v4417 = vunpack.c.l.b16 %v4285
        %v4418 = vunpack.c.l.b16 %v4286
        %v4419 = vunpack.c.l.b16 %v4287
        %v4420 = vunpack.c.l.b16 %v4288
        %v4421 = vunpack.c.l.b16 %v4289
        %v4422 = vunpack.c.l.b16 %v4290
        %v4423 = vunpack.c.l.b16 %v4291
        %v4424 = vunpack.c.l.b16 %v4292
        %v4425 = vunpack.c.l.b16 %v4293
        %v4426 = vunpack.c.l.b16 %v4294
        %v4427 = vunpack.c.l.b16 %v4295
        %v4428 = vunpack.c.l.b16 %v4296
        %v4429 = vunpack.c.l.b16 %v4297
        %v4430 = vunpack.c.l.b16 %v4298
        %v4431 = vunpack.c.l.b16 %v4299
        %v4432 = vunpack.c.l.b16 %v4300
        %v4433 = vpack.c.b16 %v4370, %v4369
        %v4434 = vpack.c.b16 %v4372, %v4371
        %v4435 = vpack.c.b16 %v4374, %v4373
        %v4436 = vpack.c.b16 %v4376, %v4375
        %v4437 = vpack.c.b16 %v4378, %v4377
        %v4438 = vpack.c.b16 %v4380, %v4379
        %v4439 = vpack.c.b16 %v4382, %v4381
        %v4440 = vpack.c.b16 %v4384, %v4383
        %v4441 = vpack.c.b16 %v4386, %v4385
        %v4442 = vpack.c.b16 %v4388, %v4387
        %v4443 = vpack.c.b16 %v4390, %v4389
        %v4444 = vpack.c.b16 %v4392, %v4391
        %v4445 = vpack.c.b16 %v4394, %v4393
        %v4446 = vpack.c.b16 %v4396, %v4395
        %v4447 = vpack.c.b16 %v4398, %v4397
        %v4448 = vpack.c.b16 %v4400, %v4399
        %v4449 = vpack.c.b16 %v4402, %v4401
        %v4450 = vpack.c.b16 %v4404, %v4403
        %v4451 = vpack.c.b16 %v4406, %v4405
        %v4452 = vpack.c.b16 %v4408, %v4407
        %v4453 = vpack.c.b16 %v4410, %v4409
        %v4454 = vpack.c.b16 %v4412, %v4411
        %v4455 = vpack.c.b16 %v4414, %v4413
        %v4456 = vpack.c.b16 %v4416, %v4415
        %v4457 = vpack.c.b16 %v4418, %v4417
        %v4458 = vpack.c.b16 %v4420, %v4419
        %v4459 = vpack.c.b16 %v4422, %v4421
        %v4460 = vpack.c.b16 %v4424, %v4423
        %v4461 = vpack.c.b16 %v4426, %v4425
        %v4462 = vpack.c.b16 %v4428, %v4427
        %v4463 = vpack.c.b16 %v4430, %v4429
        %v4464 = vpack.c.b16 %v4432, %v4431
        %4497 = vmatpush.bf16.msra.mxu0 %v4440
        %4498 = vmatpush.bf16.msra.mxu0 %v4439
        %4499 = vmatpush.bf16.msra.mxu0 %v4438
        %4500 = vmatpush.bf16.msra.mxu0 %v4437
        %4501 = vmatpush.bf16.msra.mxu0 %v4436
        %4502 = vmatpush.bf16.msra.mxu0 %v4435
        %4503 = vmatpush.bf16.msra.mxu0 %v4434
        %4504 = vmatpush.bf16.msra.mxu0 %v4433
        %4505 = vmatmul.bf16.gmra.mxu0 %v4205
        %v4506 = vpop.f32.mrf.mxu0
        %v4507 = vadd.f32 %v4303, %v4506
        %v4508 = vpop.f32.mrf.mxu0
        %v4509 = vadd.f32 %v4303, %v4508
        %4510 = vmatmul.bf16.gmra.mxu0 %v4209
        %v4511 = vpop.f32.mrf.mxu0
        %v4512 = vadd.f32 %v4303, %v4511
        %v4513 = vpop.f32.mrf.mxu0
        %v4514 = vadd.f32 %v4303, %v4513
        %4515 = vmatmul.bf16.gmra.mxu0 %v4213
        %v4516 = vpop.f32.mrf.mxu0
        %v4517 = vadd.f32 %v4303, %v4516
        %v4518 = vpop.f32.mrf.mxu0
        %v4519 = vadd.f32 %v4303, %v4518
        %4520 = vmatmul.bf16.gmra.mxu0 %v4217
        %v4521 = vpop.f32.mrf.mxu0
        %v4522 = vadd.f32 %v4303, %v4521
        %v4523 = vpop.f32.mrf.mxu0
        %v4524 = vadd.f32 %v4303, %v4523
        %4525 = vmatmul.bf16.gmra.mxu0 %v4221
        %v4526 = vpop.f32.mrf.mxu0
        %v4527 = vadd.f32 %v4303, %v4526
        %v4528 = vpop.f32.mrf.mxu0
        %v4529 = vadd.f32 %v4303, %v4528
        %4530 = vmatmul.bf16.gmra.mxu0 %v4225
        %v4531 = vpop.f32.mrf.mxu0
        %v4532 = vadd.f32 %v4303, %v4531
        %v4533 = vpop.f32.mrf.mxu0
        %v4534 = vadd.f32 %v4303, %v4533
        %4535 = vmatmul.bf16.gmra.mxu0 %v4229
        %v4536 = vpop.f32.mrf.mxu0
        %v4537 = vadd.f32 %v4303, %v4536
        %v4538 = vpop.f32.mrf.mxu0
        %v4539 = vadd.f32 %v4303, %v4538
        %4540 = vmatmul.bf16.gmra.mxu0 %v4233
        %v4541 = vpop.f32.mrf.mxu0
        %v4542 = vadd.f32 %v4303, %v4541
        %v4543 = vpop.f32.mrf.mxu0
        %v4544 = vadd.f32 %v4303, %v4543
        %4545 = vdwg.mxu0
        %4546 = vmatpush.bf16.msra.mxu0 %v4448
        %4547 = vmatpush.bf16.msra.mxu0 %v4447
        %4548 = vmatpush.bf16.msra.mxu0 %v4446
        %4549 = vmatpush.bf16.msra.mxu0 %v4445
        %4550 = vmatpush.bf16.msra.mxu0 %v4444
        %4551 = vmatpush.bf16.msra.mxu0 %v4443
        %4552 = vmatpush.bf16.msra.mxu0 %v4442
        %4553 = vmatpush.bf16.msra.mxu0 %v4441
        %4554 = vmatmul.bf16.gmra.mxu0 %v4206
        %v4555 = vpop.f32.mrf.mxu0
        %v4556 = vadd.f32 %v4507, %v4555
        %v4557 = vpop.f32.mrf.mxu0
        %v4558 = vadd.f32 %v4509, %v4557
        %4559 = vmatmul.bf16.gmra.mxu0 %v4210
        %v4560 = vpop.f32.mrf.mxu0
        %v4561 = vadd.f32 %v4512, %v4560
        %v4562 = vpop.f32.mrf.mxu0
        %v4563 = vadd.f32 %v4514, %v4562
        %4564 = vmatmul.bf16.gmra.mxu0 %v4214
        %v4565 = vpop.f32.mrf.mxu0
        %v4566 = vadd.f32 %v4517, %v4565
        %v4567 = vpop.f32.mrf.mxu0
        %v4568 = vadd.f32 %v4519, %v4567
        %4569 = vmatmul.bf16.gmra.mxu0 %v4218
        %v4570 = vpop.f32.mrf.mxu0
        %v4571 = vadd.f32 %v4522, %v4570
        %v4572 = vpop.f32.mrf.mxu0
        %v4573 = vadd.f32 %v4524, %v4572
        %4574 = vmatmul.bf16.gmra.mxu0 %v4222
        %v4575 = vpop.f32.mrf.mxu0
        %v4576 = vadd.f32 %v4527, %v4575
        %v4577 = vpop.f32.mrf.mxu0
        %v4578 = vadd.f32 %v4529, %v4577
        %4579 = vmatmul.bf16.gmra.mxu0 %v4226
        %v4580 = vpop.f32.mrf.mxu0
        %v4581 = vadd.f32 %v4532, %v4580
        %v4582 = vpop.f32.mrf.mxu0
        %v4583 = vadd.f32 %v4534, %v4582
        %4584 = vmatmul.bf16.gmra.mxu0 %v4230
        %v4585 = vpop.f32.mrf.mxu0
        %v4586 = vadd.f32 %v4537, %v4585
        %v4587 = vpop.f32.mrf.mxu0
        %v4588 = vadd.f32 %v4539, %v4587
        %4589 = vmatmul.bf16.gmra.mxu0 %v4234
        %v4590 = vpop.f32.mrf.mxu0
        %v4591 = vadd.f32 %v4542, %v4590
        %v4592 = vpop.f32.mrf.mxu0
        %v4593 = vadd.f32 %v4544, %v4592
        %4594 = vdwg.mxu0
        %4595 = vmatpush.bf16.msra.mxu0 %v4456
        %4596 = vmatpush.bf16.msra.mxu0 %v4455
        %4597 = vmatpush.bf16.msra.mxu0 %v4454
        %4598 = vmatpush.bf16.msra.mxu0 %v4453
        %4599 = vmatpush.bf16.msra.mxu0 %v4452
        %4600 = vmatpush.bf16.msra.mxu0 %v4451
        %4601 = vmatpush.bf16.msra.mxu0 %v4450
        %4602 = vmatpush.bf16.msra.mxu0 %v4449
        %4603 = vmatmul.bf16.gmra.mxu0 %v4207
        %v4604 = vpop.f32.mrf.mxu0
        %v4605 = vadd.f32 %v4556, %v4604
        %v4606 = vpop.f32.mrf.mxu0
        %v4607 = vadd.f32 %v4558, %v4606
        %4608 = vmatmul.bf16.gmra.mxu0 %v4211
        %v4609 = vpop.f32.mrf.mxu0
        %v4610 = vadd.f32 %v4561, %v4609
        %v4611 = vpop.f32.mrf.mxu0
        %v4612 = vadd.f32 %v4563, %v4611
        %4613 = vmatmul.bf16.gmra.mxu0 %v4215
        %v4614 = vpop.f32.mrf.mxu0
        %v4615 = vadd.f32 %v4566, %v4614
        %v4616 = vpop.f32.mrf.mxu0
        %v4617 = vadd.f32 %v4568, %v4616
        %4618 = vmatmul.bf16.gmra.mxu0 %v4219
        %v4619 = vpop.f32.mrf.mxu0
        %v4620 = vadd.f32 %v4571, %v4619
        %v4621 = vpop.f32.mrf.mxu0
        %v4622 = vadd.f32 %v4573, %v4621
        %4623 = vmatmul.bf16.gmra.mxu0 %v4223
        %v4624 = vpop.f32.mrf.mxu0
        %v4625 = vadd.f32 %v4576, %v4624
        %v4626 = vpop.f32.mrf.mxu0
        %v4627 = vadd.f32 %v4578, %v4626
        %4628 = vmatmul.bf16.gmra.mxu0 %v4227
        %v4629 = vpop.f32.mrf.mxu0
        %v4630 = vadd.f32 %v4581, %v4629
        %v4631 = vpop.f32.mrf.mxu0
        %v4632 = vadd.f32 %v4583, %v4631
        %4633 = vmatmul.bf16.gmra.mxu0 %v4231
        %v4634 = vpop.f32.mrf.mxu0
        %v4635 = vadd.f32 %v4586, %v4634
        %v4636 = vpop.f32.mrf.mxu0
        %v4637 = vadd.f32 %v4588, %v4636
        %4638 = vmatmul.bf16.gmra.mxu0 %v4235
        %v4639 = vpop.f32.mrf.mxu0
        %v4640 = vadd.f32 %v4591, %v4639
        %v4641 = vpop.f32.mrf.mxu0
        %v4642 = vadd.f32 %v4593, %v4641
        %4643 = vdwg.mxu0
        %4644 = vmatpush.bf16.msra.mxu0 %v4464
        %4645 = vmatpush.bf16.msra.mxu0 %v4463
        %4646 = vmatpush.bf16.msra.mxu0 %v4462
        %4647 = vmatpush.bf16.msra.mxu0 %v4461
        %4648 = vmatpush.bf16.msra.mxu0 %v4460
        %4649 = vmatpush.bf16.msra.mxu0 %v4459
        %4650 = vmatpush.bf16.msra.mxu0 %v4458
        %4651 = vmatpush.bf16.msra.mxu0 %v4457
        %4652 = vmatmul.bf16.gmra.mxu0 %v4208
        %v4653 = vpop.f32.mrf.mxu0
        %v4654 = vadd.f32 %v4605, %v4653
        %v4655 = vpop.f32.mrf.mxu0
        %v4656 = vadd.f32 %v4607, %v4655
        %4657 = vmatmul.bf16.gmra.mxu0 %v4212
        %v4658 = vpop.f32.mrf.mxu0
        %v4659 = vadd.f32 %v4610, %v4658
        %v4660 = vpop.f32.mrf.mxu0
        %v4661 = vadd.f32 %v4612, %v4660
        %4662 = vmatmul.bf16.gmra.mxu0 %v4216
        %v4663 = vpop.f32.mrf.mxu0
        %v4664 = vadd.f32 %v4615, %v4663
        %v4665 = vpop.f32.mrf.mxu0
        %v4666 = vadd.f32 %v4617, %v4665
        %4667 = vmatmul.bf16.gmra.mxu0 %v4220
        %v4668 = vpop.f32.mrf.mxu0
        %v4669 = vadd.f32 %v4620, %v4668
        %v4670 = vpop.f32.mrf.mxu0
        %v4671 = vadd.f32 %v4622, %v4670
        %4672 = vmatmul.bf16.gmra.mxu0 %v4224
        %v4673 = vpop.f32.mrf.mxu0
        %v4674 = vadd.f32 %v4625, %v4673
        %v4675 = vpop.f32.mrf.mxu0
        %v4676 = vadd.f32 %v4627, %v4675
        %4677 = vmatmul.bf16.gmra.mxu0 %v4228
        %v4678 = vpop.f32.mrf.mxu0
        %v4679 = vadd.f32 %v4630, %v4678
        %v4680 = vpop.f32.mrf.mxu0
        %v4681 = vadd.f32 %v4632, %v4680
        %4682 = vmatmul.bf16.gmra.mxu0 %v4232
        %v4683 = vpop.f32.mrf.mxu0
        %v4684 = vadd.f32 %v4635, %v4683
        %v4685 = vpop.f32.mrf.mxu0
        %v4686 = vadd.f32 %v4637, %v4685
        %4687 = vmatmul.bf16.gmra.mxu0 %v4236
        %v4688 = vpop.f32.mrf.mxu0
        %v4689 = vadd.f32 %v4640, %v4688
        %v4690 = vpop.f32.mrf.mxu0
        %v4691 = vadd.f32 %v4642, %v4690
        %4692 = vdwg.mxu0
        %4693 = vst [vmem:[%s389] sm:$0xff] %v4654
        %4694 = vst [vmem:[%s389 + $0x8] sm:$0xff] %v4656
        %4695 = vst [vmem:[%s389 + $0x10] sm:$0xff] %v4659
        %4696 = vst [vmem:[%s389 + $0x18] sm:$0xff] %v4661
        %4697 = vst [vmem:[%s389 + $0x20] sm:$0xff] %v4664
        %4698 = vst [vmem:[%s389 + $0x28] sm:$0xff] %v4666
        %4699 = vst [vmem:[%s389 + $0x30] sm:$0xff] %v4669
        %4700 = vst [vmem:[%s389 + $0x38] sm:$0xff] %v4671
        %4701 = vst [vmem:[%s389 + $0x40] sm:$0xff] %v4674
        %4702 = vst [vmem:[%s389 + $0x48] sm:$0xff] %v4676
        %4703 = vst [vmem:[%s389 + $0x50] sm:$0xff] %v4679
        %4704 = vst [vmem:[%s389 + $0x58] sm:$0xff] %v4681
        %4705 = vst [vmem:[%s389 + $0x60] sm:$0xff] %v4684
        %4706 = vst [vmem:[%s389 + $0x68] sm:$0xff] %v4686
        %4707 = vst [vmem:[%s389 + $0x70] sm:$0xff] %v4689
        %4708 = vst [vmem:[%s389 + $0x78] sm:$0xff] %v4691
        %s4709 = sand.u32 %s228, 1
        %s4710 = scalar_lea.sflag [#allocation4], %s4709
        %s4711 = sand.u32 %s228, 1
        %s4712 = smul.addr %s4711, 128
        %s4713 = scalar_lea.vmem [#allocation10], %s4712
        // Predicated region
        $region73: #{tpu_custom_call.1} parent=55 // pred_check
          %p4714 = pneg %p238
        $region74: #{tpu_custom_call.1} parent=55 // pred_check_branch
          %4716 = sbr.rel (%p4714) target = $region76
        $region75: #{tpu_custom_call.1} parent=55 // pred_region
          %s4717 = smul.u32 16, %s26
          %4719 = vsyncadd %s4710, 0
          %s4720 = smul.addr %s4717, 8
          %s4721 = scalar_lea.hbm %s9, %s4720
          %s4722 = sshll.u32 %s4713, 4
          %s4723 = int_to_ptr.vmem [resolvable:$true] %s4722
          %s4724 = sshll.u32 %s4721, 4
          %s4725 = int_to_ptr.hbm [resolvable:$true] %s4724
          %4730 = dma.vmem_to_hbm [thread:$0]  %s4723, 2048, %s4725, %s4710, 128, 128, 8
        $region76: #{tpu_custom_call.1} parent=55 // pred_fallthru
          _
      $region56: #{tpu_custom_call.1} parent=5 // pred_fallthru
        _
      %p4731 = scmp.le.s32.totalorder 2, %s21
      // Predicated region
      $region77: #{tpu_custom_call.1} parent=5 // pred_check
        %p4732 = pneg %p4731
      $region78: #{tpu_custom_call.1} parent=5 // pred_check_branch
        %4734 = sbr.rel (%p4732) target = $region80
      $region79: #{tpu_custom_call.1} parent=5 // pred_region
        %s4735 = ssub.s32 %s21, 2
        // Predicated region
        $region81: #{tpu_custom_call.1} parent=79 // pred_check
          %p4736 = pneg %p244
        $region82: #{tpu_custom_call.1} parent=79 // pred_check_branch
          %4738 = sbr.rel (%p4736) target = $region84
        $region83: #{tpu_custom_call.1} parent=79 // pred_region
          %s4739 = sand.u32 %s229, 1
          %s4740 = scalar_lea.sflag [#allocation4], %s4739
          %s4741 = sand.u32 %s229, 1
          %s4742 = smul.addr %s4741, 128
          %s4743 = scalar_lea.vmem [#allocation10], %s4742
          %4745 = dma.done %s4740, 2048
        $region84: #{tpu_custom_call.1} parent=79 // pred_fallthru
          _
      $region80: #{tpu_custom_call.1} parent=5 // pred_fallthru
        _
    $region6: #{tpu_custom_call.1} parent=1 // loop_footer
      %s25 = sadd.s32 1, %s21
    $region7: #{tpu_custom_call.1} parent=1 // loop_footer_branch
      %20 = sbr.rel target = $region3
    $region8: #{tpu_custom_call.1} parent=1 // loop_exit
      _
    %4746 = vsyncpa [#allocation3], 1
    %s4747 = scalar_lea.sflag [#allocation3], 1
    %4748 = vsyncpa %s4747, 1
    %4749 = vsyncpa [#allocation6], 1
    %4750 = vsyncpa [#allocation9], 1
    %4751 = vsyncpa [#allocation4], 1
    %s4752 = scalar_lea.sflag [#allocation4], 1
    %4753 = vsyncpa %s4752, 1

</llo_original>
